<compile_context>
chip_gen: v6e
topology: v6e:2x2x1
jax: 0.10.0
libtpu: 0.0.40
codegen_flags: <defaults>
</compile_context>

<pallas_src>
import numpy as np
import jax
import jax.numpy as jnp
from jax.experimental import pallas as pl
from jax.experimental.pallas import tpu as pltpu

_VMEM_LIMIT = 48 * 1024 * 1024   # keep per-step VMEM well under v7x's 64 MiB


def _row_tile(h, target=16):
    """Largest even divisor of h that is <= target (h itself if already small)."""
    if h <= target:
        return h
    for t in range(target, 1, -1):
        if h % t == 0 and t % 2 == 0:
            return t
    return h


def _dim_tile(d, target=512):
    if d <= target:
        return d
    return target if d % target == 0 else d


# ---------------- conv3x3 (pad 1) + bias + ReLU (+ fused 2x2/2 maxpool) ----------------

def _make_conv_kernel(th, pool):
    def kernel(x_ref, w_ref, b_ref, o_ref, pad_ref):
        # x_ref  : (1, H, W, Cin)     whole image, resident across the row-tile axis
        # w_ref  : (9*Cin, Cout)      bf16, 3x3 taps folded into the contraction dim
        # b_ref  : (1, Cout)          f32
        # o_ref  : (1, THo, Wo, Cout) bf16 row tile of the output
        # pad_ref: (TH+2, W+2, Cin)   bf16 scratch = zero-padded halo'd input tile
        W, Cin = x_ref.shape[2], x_ref.shape[3]
        Cout = w_ref.shape[1]
        r = pl.program_id(1)
        r0 = r * th

        # --- build the zero-padded halo tile in VMEM (replaces glue-side jnp.pad) ---
        zrow = jnp.zeros((1, W + 2, Cin), pad_ref.dtype)
        zcol = jnp.zeros((th, 1, Cin), pad_ref.dtype)
        pad_ref[pl.ds(0, 1), :, :] = zrow                       # top halo row (default 0)
        pad_ref[pl.ds(th + 1, 1), :, :] = zrow                  # bottom halo row
        pad_ref[pl.ds(1, th), pl.ds(0, 1), :] = zcol            # left border col
        pad_ref[pl.ds(1, th), pl.ds(W + 1, 1), :] = zcol        # right border col
        pad_ref[pl.ds(1, th), pl.ds(1, W), :] = (
            x_ref[0, pl.ds(r0, th), :, :].astype(pad_ref.dtype))

        @pl.when(r > 0)
        def _():                                                # real top halo row
            pad_ref[pl.ds(0, 1), pl.ds(1, W), :] = (
                x_ref[0, pl.ds(r0 - 1, 1), :, :].astype(pad_ref.dtype))

        @pl.when(r < pl.num_programs(1) - 1)
        def _():                                                # real bottom halo row
            pad_ref[pl.ds(th + 1, 1), pl.ds(1, W), :] = (
                x_ref[0, pl.ds(r0 + th, 1), :, :].astype(pad_ref.dtype))

        # --- im2col: 9 shifted taps on the channel axis -> ONE MXU matmul, K = 9*Cin ---
        taps = [pad_ref[pl.ds(kh, th), pl.ds(kw, W), :]
                for kh in range(3) for kw in range(3)]
        col = jnp.concatenate(taps, axis=-1).reshape(th * W, 9 * Cin)   # bf16
        acc = jnp.dot(col, w_ref[...], preferred_element_type=jnp.float32)

        y = jnp.maximum(acc + b_ref[...], 0.0)                  # bias + ReLU in f32
        if pool:
            # 2x2/2 maxpool: row pairs first (cheap major-dim regroup), then col pairs
            y = y.reshape(th // 2, 2, W, Cout).max(axis=1)
            y = y.reshape(th // 2, W // 2, 2, Cout).max(axis=2)
            o_ref[0] = y.astype(o_ref.dtype)
        else:
            o_ref[0] = y.reshape(th, W, Cout).astype(o_ref.dtype)
    return kernel


def conv3x3_relu(x, w_col, b, *, pool):
    """x: (N,H,W,Cin) f32/bf16; w_col: (9*Cin, Cout) bf16; b: (1, Cout) f32."""
    N, H, W, Cin = x.shape
    Cout = w_col.shape[1]
    th = _row_tile(H)
    if pool:
        assert th % 2 == 0 and W % 2 == 0
    R = H // th
    Ho, Wo = (H // 2, W // 2) if pool else (H, W)
    tho = th // 2 if pool else th
    cost = pl.CostEstimate(
        flops=2 * N * H * W * 9 * Cin * Cout,
        transcendentals=0,
        bytes_accessed=(N * H * W * Cin * x.dtype.itemsize
                        + 9 * Cin * Cout * 2 + Cout * 4
                        + N * Ho * Wo * Cout * 2))
    return pl.pallas_call(
        _make_conv_kernel(th, pool),
        out_shape=jax.ShapeDtypeStruct((N, Ho, Wo, Cout), jnp.bfloat16),
        grid=(N, R),
        in_specs=[
            pl.BlockSpec((1, H, W, Cin), lambda n, r: (n, 0, 0, 0)),   # resident per image
            pl.BlockSpec((9 * Cin, Cout), lambda n, r: (0, 0)),        # resident weights
            pl.BlockSpec((1, Cout), lambda n, r: (0, 0)),
        ],
        out_specs=pl.BlockSpec((1, tho, Wo, Cout), lambda n, r: (n, r, 0, 0)),
        scratch_shapes=[pltpu.VMEM((th + 2, W + 2, Cin), jnp.bfloat16)],
        compiler_params=pltpu.CompilerParams(
            dimension_semantics=("parallel", "parallel"),
            vmem_limit_bytes=_VMEM_LIMIT),
        cost_estimate=cost,
    )(x, w_col, b)


# ------------------- tiled linear (+ optional ReLU) for fc6 / fc7 / classifier -------------------

def _make_linear_kernel(relu):
    def kernel(x_ref, w_ref, b_ref, o_ref, acc_ref):
        @pl.when(pl.program_id(2) == 0)
        def _():
            acc_ref[...] = jnp.zeros_like(acc_ref)
        acc_ref[...] += jnp.dot(x_ref[...].astype(jnp.bfloat16), w_ref[...],
                                preferred_element_type=jnp.float32)
        @pl.when(pl.program_id(2) == pl.num_programs(2) - 1)
        def _():
            y = acc_ref[...] + b_ref[...]
            if relu:
                y = jnp.maximum(y, 0.0)
            o_ref[...] = y.astype(o_ref.dtype)
    return kernel


def linear(x, w, b, *, relu):
    """x: (M, K); w: (K, Nout) bf16 pre-transposed; b: (1, Nout) f32."""
    M, K = x.shape
    Nout = w.shape[1]
    tk = _dim_tile(K)
    tn = _dim_tile(Nout)
    cost = pl.CostEstimate(
        flops=2 * M * K * Nout,
        transcendentals=0,
        bytes_accessed=M * K * x.dtype.itemsize + K * Nout * 2 + Nout * 4 + M * Nout * 4)
    return pl.pallas_call(
        _make_linear_kernel(relu),
        out_shape=jax.ShapeDtypeStruct((M, Nout), jnp.float32),
        grid=(1, Nout // tn, K // tk),
        in_specs=[
            pl.BlockSpec((M, tk), lambda i, j, k: (i, k)),
            pl.BlockSpec((tk, tn), lambda i, j, k: (k, j)),
            pl.BlockSpec((1, tn), lambda i, j, k: (0, j)),
        ],
        out_specs=pl.BlockSpec((M, tn), lambda i, j, k: (i, j)),
        scratch_shapes=[pltpu.VMEM((M, tn), jnp.float32)],
        compiler_params=pltpu.CompilerParams(
            dimension_semantics=("parallel", "parallel", "arbitrary"),
            vmem_limit_bytes=_VMEM_LIMIT),
        cost_estimate=cost,
    )(x, w, b)


# --------------------------------------- full model ---------------------------------------

def modified_vgg16_forward(params, x_nchw):
    h = jnp.transpose(x_nchw, (0, 2, 3, 1))        # NCHW -> NHWC (channels on lanes)
    for block in params["features"]:
        for li, (w_col, b) in enumerate(block):
            h = conv3x3_relu(h, w_col, b, pool=(li == len(block) - 1))
    # TODO(synk): PyTorch's View(-1, 25088) flattens in (C,H,W) order; this flattens NHWC
    # (matches the JAX reference below).  Pretrained fc6 columns would need permuting.
    feats = h.reshape(h.shape[0], -1)
    w6, b6, w7, b7, wc, bc = params["head"]
    a1 = linear(feats, w6, b6, relu=True)     # fc6 + ReLU  (Dropout = identity @ eval)
    a2 = linear(a1, w7, b7, relu=True)        # fc7 + ReLU  (Dropout = identity @ eval)
    return linear(a2, wc, bc, relu=False)     # active dataset classifier (raw logits)


# ------------------------------------ pure-JAX reference ----------------------------------

def modified_vgg16_forward_ref(params, x_nchw):
    h = jnp.transpose(x_nchw, (0, 2, 3, 1)).astype(jnp.float32)
    for block in params["features"]:
        for (w_col, b) in block:
            cin, cout = w_col.shape[0] // 9, w_col.shape[1]
            w = w_col.reshape(3, 3, cin, cout)            # bf16 HWIO
            y = jax.lax.conv_general_dilated(
                h.astype(jnp.bfloat16), w, window_strides=(1, 1), padding="SAME",
                dimension_numbers=("NHWC", "HWIO", "NHWC"),
                preferred_element_type=jnp.float32)
            h = jnp.maximum(y + b, 0.0)
        N, H, W, C = h.shape
        h = h.reshape(N, H // 2, 2, W // 2, 2, C).max(axis=(2, 4))
    feats = h.reshape(h.shape[0], -1)
    w6, b6, w7, b7, wc, bc = params["head"]
    a1 = jnp.maximum(jnp.dot(feats.astype(jnp.bfloat16), w6,
                             preferred_element_type=jnp.float32) + b6, 0.0)
    a2 = jnp.maximum(jnp.dot(a1.astype(jnp.bfloat16), w7,
                             preferred_element_type=jnp.float32) + b7, 0.0)
    return jnp.dot(a2.astype(jnp.bfloat16), wc,
                   preferred_element_type=jnp.float32) + bc


# -------------------------------------------- params --------------------------------------

def init_params(key, *, in_ch, cfg, fc_dim, n_classes, spatial):
    def u(k, shape, scale=0.1):
        return jax.random.uniform(k, shape, jnp.float32, minval=-scale, maxval=scale)

    n_conv = sum(len(b) for b in cfg)
    keys = iter(jax.random.split(key, 2 * n_conv + 6))
    features, cin = [], in_ch
    for block in cfg:
        layers = []
        for cout in block:
            w = u(next(keys), (3, 3, cin, cout))
            # fold 3x3 taps into K and pre-cast to bf16 ONCE (no per-forward transform)
            layers.append((w.reshape(9 * cin, cout).astype(jnp.bfloat16),
                           u(next(keys), (1, cout))))
            cin = cout
        features.append(layers)
    s = spatial // (2 ** len(cfg))
    flat = cin * s * s
    # FC weights stored pre-transposed (in, out) and bf16; biases f32.
    w6 = u(next(keys), (flat, fc_dim)).astype(jnp.bfloat16);     b6 = u(next(keys), (1, fc_dim))
    w7 = u(next(keys), (fc_dim, fc_dim)).astype(jnp.bfloat16);   b7 = u(next(keys), (1, fc_dim))
    wc = u(next(keys), (fc_dim, n_classes)).astype(jnp.bfloat16); bc = u(next(keys), (1, n_classes))
    return {"features": features, "head": (w6, b6, w7, b7, wc, bc)}


# --------------------------------------------- main ---------------------------------------

if __name__ == "__main__":
    # Scaled-down VGG16: 13 convs in 5 blocks (real: 64/128/256/512/512 ch,
    # 224x224 input, fc 4096); small but structure-consistent shapes here.
    N, IN_CH, SPATIAL = 2, 3, 32
    CFG = ((8, 8), (16, 16), (16, 16, 16), (32, 32, 32), (32, 32, 32))
    FC_DIM, N_CLASSES = 64, 10

    key = jax.random.PRNGKey(0)
    kp, kx = jax.random.split(key)
    params = init_params(kp, in_ch=IN_CH, cfg=CFG, fc_dim=FC_DIM,
                         n_classes=N_CLASSES, spatial=SPATIAL)
    x = jax.random.uniform(kx, (N, IN_CH, SPATIAL, SPATIAL), jnp.float32)

    out = jax.block_until_ready(modified_vgg16_forward(params, x))
    ref = jax.block_until_ready(modified_vgg16_forward_ref(params, x))

    assert out.shape == (N, N_CLASSES), out.shape
    out_np, ref_np = np.asarray(out), np.asarray(ref)
    atol = 1e-2 * float(np.max(np.abs(ref_np))) + 1e-6
    np.testing.assert_allclose(out_np, ref_np, rtol=1e-2, atol=atol)
    print("KERNEL_OK")
</pallas_src>

<mosaic_0001>
module attributes {stable_mosaic.version = 11 : i64} {
  func.func @kernel(%arg0: i32, %arg1: i32, %arg2: memref<1x32x32x3xf32, #tpu.memory_space<vmem>>, %arg3: memref<27x8xbf16, #tpu.memory_space<vmem>>, %arg4: memref<1x8xf32, #tpu.memory_space<vmem>>, %arg5: memref<1x16x32x8xbf16, #tpu.memory_space<vmem>>, %arg6: memref<18x34x3xbf16, #tpu.memory_space<vmem>>) attributes {dimension_semantics = [#tpu.dimension_semantics<parallel>, #tpu.dimension_semantics<parallel>], iteration_bounds = array<i64: 2, 2>, scalar_prefetch = 0 : i64, scratch_operands = 1 : i64, tpu.core_type = #tpu.core_type<tc>, window_params = [{transform_indices = @transform_0, window_bounds = array<i64: 1, 32, 32, 3>}, {pipeline_mode = #tpu.pipeline_mode<synchronous>, transform_indices = @transform_1, window_bounds = array<i64: 27, 8>}, {pipeline_mode = #tpu.pipeline_mode<synchronous>, transform_indices = @transform_2, window_bounds = array<i64: 1, 8>}, {transform_indices = @transform_3, window_bounds = array<i64: 1, 16, 32, 8>}]} {
    %c16_i32 = arith.constant 16 : i32
    %0 = arith.muli %arg1, %c16_i32 : i32
    %cst = arith.constant 0.000000e+00 : bf16
    %1 = vector.broadcast %cst : bf16 to vector<1x34x3xbf16>
    %cst_0 = arith.constant 0.000000e+00 : bf16
    %2 = vector.broadcast %cst_0 : bf16 to vector<16x1x3xbf16>
    %c0 = arith.constant 0 : index
    %c0_1 = arith.constant 0 : index
    %c0_2 = arith.constant 0 : index
    %3 = vector.load %arg6[%c0, %c0_1, %c0_2] : memref<18x34x3xbf16, #tpu.memory_space<vmem>>, vector<1x34x3xbf16>
    tpu.vector_store %arg6[%c0, %c0_1, %c0_2], %1 {strides = array<i32>} : memref<18x34x3xbf16, #tpu.memory_space<vmem>>, vector<1x34x3xbf16>,
    %c17 = arith.constant 17 : index
    %c0_3 = arith.constant 0 : index
    %c0_4 = arith.constant 0 : index
    %4 = vector.load %arg6[%c17, %c0_3, %c0_4] : memref<18x34x3xbf16, #tpu.memory_space<vmem>>, vector<1x34x3xbf16>
    tpu.vector_store %arg6[%c17, %c0_3, %c0_4], %1 {strides = array<i32>} : memref<18x34x3xbf16, #tpu.memory_space<vmem>>, vector<1x34x3xbf16>,
    %c1 = arith.constant 1 : index
    %c0_5 = arith.constant 0 : index
    %c0_6 = arith.constant 0 : index
    %5 = vector.load %arg6[%c1, %c0_5, %c0_6] : memref<18x34x3xbf16, #tpu.memory_space<vmem>>, vector<16x1x3xbf16>
    tpu.vector_store %arg6[%c1, %c0_5, %c0_6], %2 {strides = array<i32>} : memref<18x34x3xbf16, #tpu.memory_space<vmem>>, vector<16x1x3xbf16>,
    %c1_7 = arith.constant 1 : index
    %c33 = arith.constant 33 : index
    %c0_8 = arith.constant 0 : index
    %6 = vector.load %arg6[%c1_7, %c33, %c0_8] : memref<18x34x3xbf16, #tpu.memory_space<vmem>>, vector<16x1x3xbf16>
    tpu.vector_store %arg6[%c1_7, %c33, %c0_8], %2 {strides = array<i32>} : memref<18x34x3xbf16, #tpu.memory_space<vmem>>, vector<16x1x3xbf16>,
    %c0_9 = arith.constant 0 : index
    %7 = arith.index_cast %0 : i32 to index
    %c0_10 = arith.constant 0 : index
    %c0_11 = arith.constant 0 : index
    %8 = vector.load %arg2[%c0_9, %7, %c0_10, %c0_11] : memref<1x32x32x3xf32, #tpu.memory_space<vmem>>, vector<1x16x32x3xf32>
    %9 = vector.shape_cast %8 : vector<1x16x32x3xf32> to vector<16x32x3xf32>
    %10 = arith.truncf %9 : vector<16x32x3xf32> to vector<16x32x3xbf16>
    %c1_12 = arith.constant 1 : index
    %c1_13 = arith.constant 1 : index
    %c0_14 = arith.constant 0 : index
    %11 = vector.load %arg6[%c1_12, %c1_13, %c0_14] : memref<18x34x3xbf16, #tpu.memory_space<vmem>>, vector<16x32x3xbf16>
    tpu.vector_store %arg6[%c1_12, %c1_13, %c0_14], %10 {strides = array<i32>} : memref<18x34x3xbf16, #tpu.memory_space<vmem>>, vector<16x32x3xbf16>,
    %c0_i32 = arith.constant 0 : i32
    %12 = arith.cmpi sgt, %arg1, %c0_i32 : i32
    %13 = arith.extui %12 : i1 to i32
    %c0_i32_15 = arith.constant 0 : i32
    %14 = arith.cmpi ne, %13, %c0_i32_15 : i32
    scf.if %14 {
      %c1_i32_53 = arith.constant 1 : i32
      %41 = arith.subi %0, %c1_i32_53 : i32
      %c0_54 = arith.constant 0 : index
      %42 = arith.index_cast %41 : i32 to index
      %c0_55 = arith.constant 0 : index
      %c0_56 = arith.constant 0 : index
      %43 = vector.load %arg2[%c0_54, %42, %c0_55, %c0_56] : memref<1x32x32x3xf32, #tpu.memory_space<vmem>>, vector<1x1x32x3xf32>
      %44 = vector.shape_cast %43 : vector<1x1x32x3xf32> to vector<1x32x3xf32>
      %45 = arith.truncf %44 : vector<1x32x3xf32> to vector<1x32x3xbf16>
      %c0_57 = arith.constant 0 : index
      %c1_58 = arith.constant 1 : index
      %c0_59 = arith.constant 0 : index
      %46 = vector.load %arg6[%c0_57, %c1_58, %c0_59] : memref<18x34x3xbf16, #tpu.memory_space<vmem>>, vector<1x32x3xbf16>
      tpu.vector_store %arg6[%c0_57, %c1_58, %c0_59], %45 {strides = array<i32>} : memref<18x34x3xbf16, #tpu.memory_space<vmem>>, vector<1x32x3xbf16>,
    } else {
    }
    %c1_i32 = arith.constant 1 : i32
    %15 = arith.cmpi slt, %arg1, %c1_i32 : i32
    %16 = arith.extui %15 : i1 to i32
    %c0_i32_16 = arith.constant 0 : i32
    %17 = arith.cmpi ne, %16, %c0_i32_16 : i32
    scf.if %17 {
      %c16_i32_53 = arith.constant 16 : i32
      %41 = arith.addi %0, %c16_i32_53 : i32
      %c0_54 = arith.constant 0 : index
      %42 = arith.index_cast %41 : i32 to index
      %c0_55 = arith.constant 0 : index
      %c0_56 = arith.constant 0 : index
      %43 = vector.load %arg2[%c0_54, %42, %c0_55, %c0_56] : memref<1x32x32x3xf32, #tpu.memory_space<vmem>>, vector<1x1x32x3xf32>
      %44 = vector.shape_cast %43 : vector<1x1x32x3xf32> to vector<1x32x3xf32>
      %45 = arith.truncf %44 : vector<1x32x3xf32> to vector<1x32x3xbf16>
      %c17_57 = arith.constant 17 : index
      %c1_58 = arith.constant 1 : index
      %c0_59 = arith.constant 0 : index
      %46 = vector.load %arg6[%c17_57, %c1_58, %c0_59] : memref<18x34x3xbf16, #tpu.memory_space<vmem>>, vector<1x32x3xbf16>
      tpu.vector_store %arg6[%c17_57, %c1_58, %c0_59], %45 {strides = array<i32>} : memref<18x34x3xbf16, #tpu.memory_space<vmem>>, vector<1x32x3xbf16>,
    } else {
    }
    %c0_17 = arith.constant 0 : index
    %c0_18 = arith.constant 0 : index
    %c0_19 = arith.constant 0 : index
    %18 = vector.load %arg6[%c0_17, %c0_18, %c0_19] : memref<18x34x3xbf16, #tpu.memory_space<vmem>>, vector<16x32x3xbf16>
    %c0_20 = arith.constant 0 : index
    %c1_21 = arith.constant 1 : index
    %c0_22 = arith.constant 0 : index
    %19 = vector.load %arg6[%c0_20, %c1_21, %c0_22] : memref<18x34x3xbf16, #tpu.memory_space<vmem>>, vector<16x32x3xbf16>
    %c0_23 = arith.constant 0 : index
    %c2 = arith.constant 2 : index
    %c0_24 = arith.constant 0 : index
    %20 = vector.load %arg6[%c0_23, %c2, %c0_24] : memref<18x34x3xbf16, #tpu.memory_space<vmem>>, vector<16x32x3xbf16>
    %c1_25 = arith.constant 1 : index
    %c0_26 = arith.constant 0 : index
    %c0_27 = arith.constant 0 : index
    %21 = vector.load %arg6[%c1_25, %c0_26, %c0_27] : memref<18x34x3xbf16, #tpu.memory_space<vmem>>, vector<16x32x3xbf16>
    %c1_28 = arith.constant 1 : index
    %c1_29 = arith.constant 1 : index
    %c0_30 = arith.constant 0 : index
    %22 = vector.load %arg6[%c1_28, %c1_29, %c0_30] : memref<18x34x3xbf16, #tpu.memory_space<vmem>>, vector<16x32x3xbf16>
    %c1_31 = arith.constant 1 : index
    %c2_32 = arith.constant 2 : index
    %c0_33 = arith.constant 0 : index
    %23 = vector.load %arg6[%c1_31, %c2_32, %c0_33] : memref<18x34x3xbf16, #tpu.memory_space<vmem>>, vector<16x32x3xbf16>
    %c2_34 = arith.constant 2 : index
    %c0_35 = arith.constant 0 : index
    %c0_36 = arith.constant 0 : index
    %24 = vector.load %arg6[%c2_34, %c0_35, %c0_36] : memref<18x34x3xbf16, #tpu.memory_space<vmem>>, vector<16x32x3xbf16>
    %c2_37 = arith.constant 2 : index
    %c1_38 = arith.constant 1 : index
    %c0_39 = arith.constant 0 : index
    %25 = vector.load %arg6[%c2_37, %c1_38, %c0_39] : memref<18x34x3xbf16, #tpu.memory_space<vmem>>, vector<16x32x3xbf16>
    %c2_40 = arith.constant 2 : index
    %c2_41 = arith.constant 2 : index
    %c0_42 = arith.constant 0 : index
    %26 = vector.load %arg6[%c2_40, %c2_41, %c0_42] : memref<18x34x3xbf16, #tpu.memory_space<vmem>>, vector<16x32x3xbf16>
    %27 = tpu.concatenate %18, %19, %20, %21, %22, %23, %24, %25, %26 in 2 : vector<16x32x3xbf16>, vector<16x32x3xbf16>, vector<16x32x3xbf16>, vector<16x32x3xbf16>, vector<16x32x3xbf16>, vector<16x32x3xbf16>, vector<16x32x3xbf16>, vector<16x32x3xbf16>, vector<16x32x3xbf16> -> vector<16x32x27xbf16>
    %28 = vector.shape_cast %27 : vector<16x32x27xbf16> to vector<512x27xbf16>
    %c0_43 = arith.constant 0 : index
    %c0_44 = arith.constant 0 : index
    %29 = vector.load %arg3[%c0_43, %c0_44] : memref<27x8xbf16, #tpu.memory_space<vmem>>, vector<27x8xbf16>
    %cst_45 = arith.constant dense<0.000000e+00> : vector<512x8xf32>
    %30 = tpu.matmul %28, %29, %cst_45 {dimension_numbers = #tpu.dot_dimension_numbers<[1], [0], [0], [1], [0, 0, 1, 1], [], []>} : vector<512x27xbf16>, vector<27x8xbf16>, vector<512x8xf32> -> vector<512x8xf32>
    %c0_46 = arith.constant 0 : index
    %c0_47 = arith.constant 0 : index
    %31 = vector.load %arg4[%c0_46, %c0_47] : memref<1x8xf32, #tpu.memory_space<vmem>>, vector<1x8xf32>
    %32 = vector.broadcast %31 : vector<1x8xf32> to vector<512x8xf32>
    %33 = arith.addf %30, %32 : vector<512x8xf32>
    %cst_48 = arith.constant 0.000000e+00 : f32
    %34 = vector.broadcast %cst_48 : f32 to vector<512x8xf32>
    %35 = arith.maximumf %33, %34 : vector<512x8xf32>
    %36 = vector.shape_cast %35 : vector<512x8xf32> to vector<16x32x8xf32>
    %37 = arith.truncf %36 : vector<16x32x8xf32> to vector<16x32x8xbf16>
    %c0_49 = arith.constant 0 : index
    %c0_50 = arith.constant 0 : index
    %c0_51 = arith.constant 0 : index
    %c0_52 = arith.constant 0 : index
    %38 = vector.load %arg5[%c0_49, %c0_50, %c0_51, %c0_52] : memref<1x16x32x8xbf16, #tpu.memory_space<vmem>>, vector<1x16x32x8xbf16>
    %39 = vector.shape_cast %38 : vector<1x16x32x8xbf16> to vector<16x32x8xbf16>
    %40 = vector.shape_cast %37 : vector<16x32x8xbf16> to vector<1x16x32x8xbf16>
    tpu.vector_store %arg5[%c0_49, %c0_50, %c0_51, %c0_52], %40 {strides = array<i32>} : memref<1x16x32x8xbf16, #tpu.memory_space<vmem>>, vector<1x16x32x8xbf16>,
    return
  }
  func.func @transform_0(%arg0: i32, %arg1: i32) -> (i32, i32, i32, i32) {
    %c0_i32 = arith.constant 0 : i32
    %c0_i32_0 = arith.constant 0 : i32
    %c0_i32_1 = arith.constant 0 : i32
    %c0_i32_2 = arith.constant 0 : i32
    return %arg0, %c0_i32, %c0_i32_0, %c0_i32_1 : i32, i32, i32, i32
  }
  func.func @transform_1(%arg0: i32, %arg1: i32) -> (i32, i32) {
    %c0_i32 = arith.constant 0 : i32
    %c0_i32_0 = arith.constant 0 : i32
    %c0_i32_1 = arith.constant 0 : i32
    return %c0_i32, %c0_i32_0 : i32, i32
  }
  func.func @transform_2(%arg0: i32, %arg1: i32) -> (i32, i32) {
    %c0_i32 = arith.constant 0 : i32
    %c0_i32_0 = arith.constant 0 : i32
    %c0_i32_1 = arith.constant 0 : i32
    return %c0_i32, %c0_i32_0 : i32, i32
  }
  func.func @transform_3(%arg0: i32, %arg1: i32) -> (i32, i32, i32, i32) {
    %c0_i32 = arith.constant 0 : i32
    %c0_i32_0 = arith.constant 0 : i32
    %c0_i32_1 = arith.constant 0 : i32
    return %arg0, %arg1, %c0_i32, %c0_i32_0 : i32, i32, i32, i32
  }
}

</mosaic_0001>

<llo_original>
// kernel: tpu_custom_call.1
$region0: #{tpu_custom_call.1}
  #allocation0 [shape = 'u32[]', space=smem, size = 0x4, offset = 0x4, fixed_abs, tag = 'smem constant byte address 0x4 - core index']
  #allocation1 [shape = 'u32[144,128]{1,0:T(1,128)}', space=vmem, size = 0x12000, scoped, tag = 'internal scratch']
  #allocation2 [shape = 'bf16[18,34,3]{2,1,0:T(8,128)(2,1)}', space=vmem, size = 0x2d000, scoped, tag = 'scratch operand']
  %s0 = inlined_call_operand.vmem [shape: f32[2,32,32,3], index: 0, kind: input, shape index: {}]
  %s1 = inlined_call_operand.vmem [shape: bf16[27,8], index: 1, kind: input, shape index: {}]
  %s2 = inlined_call_operand.vmem [shape: f32[1,8], index: 2, kind: input, shape index: {}]
  %s3 = inlined_call_operand.vmem [shape: bf16[2,32,32,8], index: 3, kind: output, shape index: {}]
  %s4 = sld [smem:[#allocation0]]
  $region53: #{tpu_custom_call.1} parent=0
    _
  %s6 = ssub.s32 1, %s4
  %s7 = scalar_select 0, %s6, %s4
  loop: start=0, step=1, limit=6
  $region2: #{tpu_custom_call.1} parent=0 // loop_pre_header
    _
  $region3: #{tpu_custom_call.1} parent=0 // loop_header
    %s9 = sphi 0, %s13
    %p10 = scmp.ge.s32.totalorder %s9, 6
    %s16 = sphi 0, %s28
    %s17 = sphi 0, %s24
    %s18 = sphi 0, %s16
    %s19 = sphi 0, %s17
    %s20 = sphi 0, %s18
    %s21 = sphi 0, %s19
    %s31 = sphi 0, %s33
    %s34 = sphi 0, %s31
    %s35 = sphi 0, %s34
    %s51 = sphi 0, %s35
    %s55 = sphi 0, %s55
    %s57 = sphi 0, %s55
    %s58 = sphi 0, %s57
    %s72 = sphi 0, %s58
    %s76 = sphi 0, %s76
    %s78 = sphi 0, %s76
    %s79 = sphi 0, %s78
    %s93 = sphi 0, %s79
    %s101 = sphi 0, %s103
    %s104 = sphi 0, %s101
    %s105 = sphi 0, %s104
    %s121 = sphi 0, %s105
  $region4: #{tpu_custom_call.1} parent=0 // loop_header_branch
    %12 = sbr.rel (%p10) target = $region8
  $region5: #{tpu_custom_call.1} parent=0 // loop_body
    %s14 = ssub.s32 %s9, 1
    %s15 = ssub.s32 %s9, 2
    %s22 = sadd.s32 1, %s17
    %p23 = scmp.ge.s32.totalorder %s22, 2
    %s24 = scalar_select %p23, 0, %s22
    %s25 = sadd.s32 1, %s16
    %s26 = scalar_select %p23, %s25, %s16
    %p27 = scmp.ge.s32.totalorder %s26, 2
    %s28 = scalar_select %p27, 0, %s26
    %s29 = ssub.s32 %s16, %s28
    %p30 = scmp.eq.s32.totalorder %s29, 0
    %s32 = sadd.s32 %s31, 1
    %s33 = scalar_select %p30, %s31, %s32
    %p36 = pneg %p30
    %p37 = scmp.eq.s32.totalorder %s9, 3
    %p38 = por %p36, %p37
    %p39 = scmp.ne.s32.totalorder %s31, %s34
    %p40 = scmp.eq.s32.totalorder %s9, 0
    %p41 = por %p39, %p40
    %p42 = scmp.ne.s32.totalorder %s31, %s34
    %p43 = scmp.eq.s32.totalorder %s14, 3
    %p44 = por %p42, %p43
    %p45 = scmp.ne.s32.totalorder %s34, %s35
    %p46 = scmp.eq.s32.totalorder %s14, 0
    %p47 = por %p45, %p46
    %p48 = scmp.ne.s32.totalorder %s34, %s35
    %p49 = scmp.eq.s32.totalorder %s15, 3
    %p50 = por %p48, %p49
    %p52 = scmp.ne.s32.totalorder %s35, %s51
    %p53 = scmp.eq.s32.totalorder %s15, 0
    %p54 = por %p52, %p53
    %s56 = sadd.s32 %s55, 1
    %p59 = scmp.eq.s32.totalorder %s9, 3
    %p60 = scmp.ne.s32.totalorder %s55, %s57
    %p61 = scmp.eq.s32.totalorder %s9, 0
    %p62 = por %p60, %p61
    %p63 = scmp.ne.s32.totalorder %s55, %s57
    %p64 = scmp.eq.s32.totalorder %s14, 3
    %p65 = por %p63, %p64
    %p66 = scmp.ne.s32.totalorder %s57, %s58
    %p67 = scmp.eq.s32.totalorder %s14, 0
    %p68 = por %p66, %p67
    %p69 = scmp.ne.s32.totalorder %s57, %s58
    %p70 = scmp.eq.s32.totalorder %s15, 3
    %p71 = por %p69, %p70
    %p73 = scmp.ne.s32.totalorder %s58, %s72
    %p74 = scmp.eq.s32.totalorder %s15, 0
    %p75 = por %p73, %p74
    %s77 = sadd.s32 %s76, 1
    %p80 = scmp.eq.s32.totalorder %s9, 3
    %p81 = scmp.ne.s32.totalorder %s76, %s78
    %p82 = scmp.eq.s32.totalorder %s9, 0
    %p83 = por %p81, %p82
    %p84 = scmp.ne.s32.totalorder %s76, %s78
    %p85 = scmp.eq.s32.totalorder %s14, 3
    %p86 = por %p84, %p85
    %p87 = scmp.ne.s32.totalorder %s78, %s79
    %p88 = scmp.eq.s32.totalorder %s14, 0
    %p89 = por %p87, %p88
    %p90 = scmp.ne.s32.totalorder %s78, %s79
    %p91 = scmp.eq.s32.totalorder %s15, 3
    %p92 = por %p90, %p91
    %p94 = scmp.ne.s32.totalorder %s79, %s93
    %p95 = scmp.eq.s32.totalorder %s15, 0
    %p96 = por %p94, %p95
    %s97 = ssub.s32 %s16, %s28
    %s98 = ssub.s32 %s17, %s24
    %s99 = sor.u32 %s97, %s98
    %p100 = scmp.eq.s32.totalorder %s99, 0
    %s102 = sadd.s32 %s101, 1
    %s103 = scalar_select %p100, %s101, %s102
    %p106 = pneg %p100
    %p107 = scmp.eq.s32.totalorder %s9, 3
    %p108 = por %p106, %p107
    %p109 = scmp.ne.s32.totalorder %s101, %s104
    %p110 = scmp.eq.s32.totalorder %s9, 0
    %p111 = por %p109, %p110
    %p112 = scmp.ne.s32.totalorder %s101, %s104
    %p113 = scmp.eq.s32.totalorder %s14, 3
    %p114 = por %p112, %p113
    %p115 = scmp.ne.s32.totalorder %s104, %s105
    %p116 = scmp.eq.s32.totalorder %s14, 0
    %p117 = por %p115, %p116
    %p118 = scmp.ne.s32.totalorder %s104, %s105
    %p119 = scmp.eq.s32.totalorder %s15, 3
    %p120 = por %p118, %p119
    %p122 = scmp.ne.s32.totalorder %s105, %s121
    %p123 = scmp.eq.s32.totalorder %s15, 0
    %p124 = por %p122, %p123
    %p125 = scmp.le.s32.totalorder 1, %s9
    %p126 = scmp.lt.s32.totalorder %s9, 5
    %p127 = pnand %p125, %p126
    %p128 = pneg %p127
    // Predicated region
    $region9: #{tpu_custom_call.1} parent=5 // pred_check
      _
    $region10: #{tpu_custom_call.1} parent=5 // pred_check_branch
      %130 = sbr.rel (%p127) target = $region12
    $region11: #{tpu_custom_call.1} parent=5 // pred_region
      %s131 = ssub.s32 %s9, 1
      // Predicated region
      $region13: #{tpu_custom_call.1} parent=11 // pred_check
        %p132 = pneg %p68
      $region14: #{tpu_custom_call.1} parent=11 // pred_check_branch
        %134 = sbr.rel (%p132) target = $region16
      $region15: #{tpu_custom_call.1} parent=11 // pred_region
        _
      $region16: #{tpu_custom_call.1} parent=11 // pred_fallthru
        _
      // Predicated region
      $region17: #{tpu_custom_call.1} parent=11 // pred_check
        %p135 = pneg %p89
      $region18: #{tpu_custom_call.1} parent=11 // pred_check_branch
        %137 = sbr.rel (%p135) target = $region20
      $region19: #{tpu_custom_call.1} parent=11 // pred_region
        _
      $region20: #{tpu_custom_call.1} parent=11 // pred_fallthru
        _
    $region12: #{tpu_custom_call.1} parent=5 // pred_fallthru
      _
    %p138 = scmp.lt.s32.totalorder %s9, 4
    // Predicated region
    $region21: #{tpu_custom_call.1} parent=5 // pred_check
      %p139 = pneg %p138
    $region22: #{tpu_custom_call.1} parent=5 // pred_check_branch
      %141 = sbr.rel (%p139) target = $region24
    $region23: #{tpu_custom_call.1} parent=5 // pred_region
      // Predicated region
      $region25: #{tpu_custom_call.1} parent=23 // pred_check
        %p142 = pneg %p41
      $region26: #{tpu_custom_call.1} parent=23 // pred_check_branch
        %144 = sbr.rel (%p142) target = $region28
      $region27: #{tpu_custom_call.1} parent=23 // pred_region
        %p145 = scmp.lt.s32.totalorder %s16, 1
        %s146 = scalar_select %p145, %s16, 1
        %s147 = smul.addr %s146, 128
        %s148 = smul.addr %s147, 8
        %s149 = scalar_lea.vmem %s0, %s148
      $region28: #{tpu_custom_call.1} parent=23 // pred_fallthru
        _
    $region24: #{tpu_custom_call.1} parent=5 // pred_fallthru
      _
    %p150 = scmp.le.s32.totalorder 1, %s9
    %p151 = scmp.lt.s32.totalorder %s9, 5
    %p152 = pnand %p150, %p151
    %p153 = pneg %p152
    // Predicated region
    $region29: #{tpu_custom_call.1} parent=5 // pred_check
      _
    $region30: #{tpu_custom_call.1} parent=5 // pred_check_branch
      %155 = sbr.rel (%p152) target = $region32
    $region31: #{tpu_custom_call.1} parent=5 // pred_region
      %s156 = ssub.s32 %s9, 1
      %p157 = scmp.lt.s32.totalorder %s18, 1
      %s158 = scalar_select %p157, %s18, 1
      %s159 = smul.addr %s158, 128
      %s160 = smul.addr %s159, 8
      %s161 = scalar_lea.vmem %s0, %s160
      %p162 = pneg %p47
      %p163 = pneg %p44
      %p164 = pneg %p68
      %p165 = pneg %p65
      %p166 = pneg %p89
      %p167 = pneg %p86
      %p168 = pneg %p117
      %p169 = pneg %p114
      %s170 = smul.u32 16, %s19
      %p171 = scmp.lt.s32.totalorder %s18, 1
      %s172 = scalar_select %p171, %s18, 1
      %p173 = scmp.lt.s32.totalorder %s170, 31
      %s174 = scalar_select %p173, %s170, 31
      %s175 = smul.addr %s174, 4
      %s176 = smul.addr %s172, 128
      %s177 = sadd.s32 %s175, %s176
      %s178 = smul.addr %s177, 4
      %s179 = scalar_lea.vmem %s3, %s178
      %p180 = scmp.lt.s32.totalorder %s18, 1
      %s181 = scalar_select %p180, %s18, 1
      %s182 = smul.addr %s181, 128
      %s183 = smul.addr %s182, 8
      %s184 = scalar_lea.vmem %s0, %s183
      %s185 = smul.u32 16, %s19
      %p186 = scmp.lt.s32.totalorder %s18, 1
      %s187 = scalar_select %p186, %s18, 1
      %p188 = scmp.lt.s32.totalorder %s185, 31
      %s189 = scalar_select %p188, %s185, 31
      %s190 = smul.addr %s189, 4
      %s191 = smul.addr %s187, 128
      %s192 = sadd.s32 %s190, %s191
      %s193 = smul.addr %s192, 4
      %s194 = scalar_lea.vmem %s3, %s193
      %s195 = smul.u32 16, %s19
      %s197 = smul.u32 %s19, 16
      %vm198 = vcmask 19456
      %199 = vst.msk [vmem:[#allocation2] sm:$0xf] %vm198, 0
      %200 = vst.msk [vmem:[#allocation2 + $0x4] sm:$0xf] %vm198, 0
      %201 = vst.msk [vmem:[#allocation2 + $0x8] sm:$0xf] %vm198, 0
      %202 = vst.msk [vmem:[#allocation2 + $0xc] sm:$0xf] %vm198, 0
      %vm203 = vcmask 16384
      %204 = vst.msk [vmem:[#allocation2 + $0x10] sm:$0x1] %vm203, 0
      %s205 = scalar_lea.vmem [#allocation2], 340
      %206 = vst.msk [vmem:[%s205] sm:$0xf] %vm198, 0
      %207 = vst.msk [vmem:[%s205 + $0x4] sm:$0xf] %vm198, 0
      %208 = vst.msk [vmem:[%s205 + $0x8] sm:$0xf] %vm198, 0
      %209 = vst.msk [vmem:[%s205 + $0xc] sm:$0xf] %vm198, 0
      %210 = vst.msk [vmem:[%s205 + $0x10] sm:$0x1] %vm203, 0
      %s211 = scalar_lea.vmem [#allocation2], 20
      %vm212 = vcmask 16384
      %vm213 = vsmask.f32 256
      %vm214 = vmand %vm212, %vm213
      %v215 = vld [vmem:[%s211] sm:$0x1]
      %v216 = vsel %vm214, 0, %v215
      %217 = vst [vmem:[%s211] sm:$0x1] %v216
      %v218 = vld [vmem:[%s211 + $0x14] sm:$0x1]
      %v219 = vsel %vm214, 0, %v218
      %220 = vst [vmem:[%s211 + $0x14] sm:$0x1] %v219
      %v221 = vld [vmem:[%s211 + $0x28] sm:$0x1]
      %v222 = vsel %vm214, 0, %v221
      %223 = vst [vmem:[%s211 + $0x28] sm:$0x1] %v222
      %v224 = vld [vmem:[%s211 + $0x3c] sm:$0x1]
      %v225 = vsel %vm214, 0, %v224
      %226 = vst [vmem:[%s211 + $0x3c] sm:$0x1] %v225
      %v227 = vld [vmem:[%s211 + $0x50] sm:$0x1]
      %v228 = vsel %vm214, 0, %v227
      %229 = vst [vmem:[%s211 + $0x50] sm:$0x1] %v228
      %v230 = vld [vmem:[%s211 + $0x64] sm:$0x1]
      %v231 = vsel %vm214, 0, %v230
      %232 = vst [vmem:[%s211 + $0x64] sm:$0x1] %v231
      %v233 = vld [vmem:[%s211 + $0x78] sm:$0x1]
      %v234 = vsel %vm214, 0, %v233
      %235 = vst [vmem:[%s211 + $0x78] sm:$0x1] %v234
      %v236 = vld [vmem:[%s211 + $0x8c] sm:$0x1]
      %v237 = vsel %vm214, 0, %v236
      %238 = vst [vmem:[%s211 + $0x8c] sm:$0x1] %v237
      %v239 = vld [vmem:[%s211 + $0xa0] sm:$0x1]
      %v240 = vsel %vm214, 0, %v239
      %241 = vst [vmem:[%s211 + $0xa0] sm:$0x1] %v240
      %v242 = vld [vmem:[%s211 + $0xb4] sm:$0x1]
      %v243 = vsel %vm214, 0, %v242
      %244 = vst [vmem:[%s211 + $0xb4] sm:$0x1] %v243
      %v245 = vld [vmem:[%s211 + $0xc8] sm:$0x1]
      %v246 = vsel %vm214, 0, %v245
      %247 = vst [vmem:[%s211 + $0xc8] sm:$0x1] %v246
      %v248 = vld [vmem:[%s211 + $0xdc] sm:$0x1]
      %v249 = vsel %vm214, 0, %v248
      %250 = vst [vmem:[%s211 + $0xdc] sm:$0x1] %v249
      %v251 = vld [vmem:[%s211 + $0xf0] sm:$0x1]
      %v252 = vsel %vm214, 0, %v251
      %253 = vst [vmem:[%s211 + $0xf0] sm:$0x1] %v252
      %v254 = vld [vmem:[%s211 + $0x104] sm:$0x1]
      %v255 = vsel %vm214, 0, %v254
      %256 = vst [vmem:[%s211 + $0x104] sm:$0x1] %v255
      %v257 = vld [vmem:[%s211 + $0x118] sm:$0x1]
      %v258 = vsel %vm214, 0, %v257
      %259 = vst [vmem:[%s211 + $0x118] sm:$0x1] %v258
      %v260 = vld [vmem:[%s211 + $0x12c] sm:$0x1]
      %v261 = vsel %vm214, 0, %v260
      %262 = vst [vmem:[%s211 + $0x12c] sm:$0x1] %v261
      %vm263 = vsmask.f32 7938
      %vm264 = vmand %vm212, %vm263
      %v265 = vld [vmem:[%s211 + $0x10] sm:$0x1]
      %v266 = vsel %vm264, 0, %v265
      %267 = vst [vmem:[%s211 + $0x10] sm:$0x1] %v266
      %v268 = vld [vmem:[%s211 + $0x24] sm:$0x1]
      %v269 = vsel %vm264, 0, %v268
      %270 = vst [vmem:[%s211 + $0x24] sm:$0x1] %v269
      %v271 = vld [vmem:[%s211 + $0x38] sm:$0x1]
      %v272 = vsel %vm264, 0, %v271
      %273 = vst [vmem:[%s211 + $0x38] sm:$0x1] %v272
      %v274 = vld [vmem:[%s211 + $0x4c] sm:$0x1]
      %v275 = vsel %vm264, 0, %v274
      %276 = vst [vmem:[%s211 + $0x4c] sm:$0x1] %v275
      %v277 = vld [vmem:[%s211 + $0x60] sm:$0x1]
      %v278 = vsel %vm264, 0, %v277
      %279 = vst [vmem:[%s211 + $0x60] sm:$0x1] %v278
      %v280 = vld [vmem:[%s211 + $0x74] sm:$0x1]
      %v281 = vsel %vm264, 0, %v280
      %282 = vst [vmem:[%s211 + $0x74] sm:$0x1] %v281
      %v283 = vld [vmem:[%s211 + $0x88] sm:$0x1]
      %v284 = vsel %vm264, 0, %v283
      %285 = vst [vmem:[%s211 + $0x88] sm:$0x1] %v284
      %v286 = vld [vmem:[%s211 + $0x9c] sm:$0x1]
      %v287 = vsel %vm264, 0, %v286
      %288 = vst [vmem:[%s211 + $0x9c] sm:$0x1] %v287
      %v289 = vld [vmem:[%s211 + $0xb0] sm:$0x1]
      %v290 = vsel %vm264, 0, %v289
      %291 = vst [vmem:[%s211 + $0xb0] sm:$0x1] %v290
      %v292 = vld [vmem:[%s211 + $0xc4] sm:$0x1]
      %v293 = vsel %vm264, 0, %v292
      %294 = vst [vmem:[%s211 + $0xc4] sm:$0x1] %v293
      %v295 = vld [vmem:[%s211 + $0xd8] sm:$0x1]
      %v296 = vsel %vm264, 0, %v295
      %297 = vst [vmem:[%s211 + $0xd8] sm:$0x1] %v296
      %v298 = vld [vmem:[%s211 + $0xec] sm:$0x1]
      %v299 = vsel %vm264, 0, %v298
      %300 = vst [vmem:[%s211 + $0xec] sm:$0x1] %v299
      %v301 = vld [vmem:[%s211 + $0x100] sm:$0x1]
      %v302 = vsel %vm264, 0, %v301
      %303 = vst [vmem:[%s211 + $0x100] sm:$0x1] %v302
      %v304 = vld [vmem:[%s211 + $0x114] sm:$0x1]
      %v305 = vsel %vm264, 0, %v304
      %306 = vst [vmem:[%s211 + $0x114] sm:$0x1] %v305
      %v307 = vld [vmem:[%s211 + $0x128] sm:$0x1]
      %v308 = vsel %vm264, 0, %v307
      %309 = vst [vmem:[%s211 + $0x128] sm:$0x1] %v308
      %v310 = vld [vmem:[%s211 + $0x13c] sm:$0x1]
      %v311 = vsel %vm264, 0, %v310
      %312 = vst [vmem:[%s211 + $0x13c] sm:$0x1] %v311
      %s313 = smul.u32 %s197, 32
      %s314 = scalar_lea.vmem %s184, %s313
      %v315 = vld [vmem:[%s314] sm:$0xff]
      %v316 = vld [vmem:[%s314 + $0x8] sm:$0xff]
      %v317 = vld [vmem:[%s314 + $0x10] sm:$0xff]
      %v318 = vld [vmem:[%s314 + $0x18] sm:$0xff]
      %v319 = vld [vmem:[%s314 + $0x20] sm:$0xff]
      %v320 = vld [vmem:[%s314 + $0x28] sm:$0xff]
      %v321 = vld [vmem:[%s314 + $0x30] sm:$0xff]
      %v322 = vld [vmem:[%s314 + $0x38] sm:$0xff]
      %v323 = vld [vmem:[%s314 + $0x40] sm:$0xff]
      %v324 = vld [vmem:[%s314 + $0x48] sm:$0xff]
      %v325 = vld [vmem:[%s314 + $0x50] sm:$0xff]
      %v326 = vld [vmem:[%s314 + $0x58] sm:$0xff]
      %v327 = vld [vmem:[%s314 + $0x60] sm:$0xff]
      %v328 = vld [vmem:[%s314 + $0x68] sm:$0xff]
      %v329 = vld [vmem:[%s314 + $0x70] sm:$0xff]
      %v330 = vld [vmem:[%s314 + $0x78] sm:$0xff]
      %v331 = vld [vmem:[%s314 + $0x80] sm:$0xff]
      %v332 = vld [vmem:[%s314 + $0x88] sm:$0xff]
      %v333 = vld [vmem:[%s314 + $0x90] sm:$0xff]
      %v334 = vld [vmem:[%s314 + $0x98] sm:$0xff]
      %v335 = vld [vmem:[%s314 + $0xa0] sm:$0xff]
      %v336 = vld [vmem:[%s314 + $0xa8] sm:$0xff]
      %v337 = vld [vmem:[%s314 + $0xb0] sm:$0xff]
      %v338 = vld [vmem:[%s314 + $0xb8] sm:$0xff]
      %v339 = vld [vmem:[%s314 + $0xc0] sm:$0xff]
      %v340 = vld [vmem:[%s314 + $0xc8] sm:$0xff]
      %v341 = vld [vmem:[%s314 + $0xd0] sm:$0xff]
      %v342 = vld [vmem:[%s314 + $0xd8] sm:$0xff]
      %v343 = vld [vmem:[%s314 + $0xe0] sm:$0xff]
      %v344 = vld [vmem:[%s314 + $0xe8] sm:$0xff]
      %v345 = vld [vmem:[%s314 + $0xf0] sm:$0xff]
      %v346 = vld [vmem:[%s314 + $0xf8] sm:$0xff]
      %v347 = vld [vmem:[%s314 + $0x100] sm:$0xff]
      %v348 = vld [vmem:[%s314 + $0x108] sm:$0xff]
      %v349 = vld [vmem:[%s314 + $0x110] sm:$0xff]
      %v350 = vld [vmem:[%s314 + $0x118] sm:$0xff]
      %v351 = vld [vmem:[%s314 + $0x120] sm:$0xff]
      %v352 = vld [vmem:[%s314 + $0x128] sm:$0xff]
      %v353 = vld [vmem:[%s314 + $0x130] sm:$0xff]
      %v354 = vld [vmem:[%s314 + $0x138] sm:$0xff]
      %v355 = vld [vmem:[%s314 + $0x140] sm:$0xff]
      %v356 = vld [vmem:[%s314 + $0x148] sm:$0xff]
      %v357 = vld [vmem:[%s314 + $0x150] sm:$0xff]
      %v358 = vld [vmem:[%s314 + $0x158] sm:$0xff]
      %v359 = vld [vmem:[%s314 + $0x160] sm:$0xff]
      %v360 = vld [vmem:[%s314 + $0x168] sm:$0xff]
      %v361 = vld [vmem:[%s314 + $0x170] sm:$0xff]
      %v362 = vld [vmem:[%s314 + $0x178] sm:$0xff]
      %v363 = vld [vmem:[%s314 + $0x180] sm:$0xff]
      %v364 = vld [vmem:[%s314 + $0x188] sm:$0xff]
      %v365 = vld [vmem:[%s314 + $0x190] sm:$0xff]
      %v366 = vld [vmem:[%s314 + $0x198] sm:$0xff]
      %v367 = vld [vmem:[%s314 + $0x1a0] sm:$0xff]
      %v368 = vld [vmem:[%s314 + $0x1a8] sm:$0xff]
      %v369 = vld [vmem:[%s314 + $0x1b0] sm:$0xff]
      %v370 = vld [vmem:[%s314 + $0x1b8] sm:$0xff]
      %v371 = vld [vmem:[%s314 + $0x1c0] sm:$0xff]
      %v372 = vld [vmem:[%s314 + $0x1c8] sm:$0xff]
      %v373 = vld [vmem:[%s314 + $0x1d0] sm:$0xff]
      %v374 = vld [vmem:[%s314 + $0x1d8] sm:$0xff]
      %v375 = vld [vmem:[%s314 + $0x1e0] sm:$0xff]
      %v376 = vld [vmem:[%s314 + $0x1e8] sm:$0xff]
      %v377 = vld [vmem:[%s314 + $0x1f0] sm:$0xff]
      %v378 = vld [vmem:[%s314 + $0x1f8] sm:$0xff]
      %v379 = vpack.c.bf16 %v316, %v315
      %v380 = vpack.c.bf16 %v318, %v317
      %v381 = vpack.c.bf16 %v320, %v319
      %v382 = vpack.c.bf16 %v322, %v321
      %v383 = vpack.c.bf16 %v324, %v323
      %v384 = vpack.c.bf16 %v326, %v325
      %v385 = vpack.c.bf16 %v328, %v327
      %v386 = vpack.c.bf16 %v330, %v329
      %v387 = vpack.c.bf16 %v332, %v331
      %v388 = vpack.c.bf16 %v334, %v333
      %v389 = vpack.c.bf16 %v336, %v335
      %v390 = vpack.c.bf16 %v338, %v337
      %v391 = vpack.c.bf16 %v340, %v339
      %v392 = vpack.c.bf16 %v342, %v341
      %v393 = vpack.c.bf16 %v344, %v343
      %v394 = vpack.c.bf16 %v346, %v345
      %v395 = vpack.c.bf16 %v348, %v347
      %v396 = vpack.c.bf16 %v350, %v349
      %v397 = vpack.c.bf16 %v352, %v351
      %v398 = vpack.c.bf16 %v354, %v353
      %v399 = vpack.c.bf16 %v356, %v355
      %v400 = vpack.c.bf16 %v358, %v357
      %v401 = vpack.c.bf16 %v360, %v359
      %v402 = vpack.c.bf16 %v362, %v361
      %v403 = vpack.c.bf16 %v364, %v363
      %v404 = vpack.c.bf16 %v366, %v365
      %v405 = vpack.c.bf16 %v368, %v367
      %v406 = vpack.c.bf16 %v370, %v369
      %v407 = vpack.c.bf16 %v372, %v371
      %v408 = vpack.c.bf16 %v374, %v373
      %v409 = vpack.c.bf16 %v376, %v375
      %v410 = vpack.c.bf16 %v378, %v377
      %v443 = vunpack.c.l.b16 %v379
      %v444 = vunpack.c.h.b16 %v379
      %v445 = vunpack.c.l.b16 %v380
      %v446 = vunpack.c.h.b16 %v380
      %v447 = vunpack.c.l.b16 %v381
      %v448 = vunpack.c.h.b16 %v381
      %v449 = vunpack.c.l.b16 %v382
      %v450 = vunpack.c.h.b16 %v382
      %v451 = vunpack.c.l.b16 %v383
      %v452 = vunpack.c.h.b16 %v383
      %v453 = vunpack.c.l.b16 %v384
      %v454 = vunpack.c.h.b16 %v384
      %v455 = vunpack.c.l.b16 %v385
      %v456 = vunpack.c.h.b16 %v385
      %v457 = vunpack.c.l.b16 %v386
      %v458 = vunpack.c.h.b16 %v386
      %v459 = vunpack.c.l.b16 %v387
      %v460 = vunpack.c.h.b16 %v387
      %v461 = vunpack.c.l.b16 %v388
      %v462 = vunpack.c.h.b16 %v388
      %v463 = vunpack.c.l.b16 %v389
      %v464 = vunpack.c.h.b16 %v389
      %v465 = vunpack.c.l.b16 %v390
      %v466 = vunpack.c.h.b16 %v390
      %v467 = vunpack.c.l.b16 %v391
      %v468 = vunpack.c.h.b16 %v391
      %v469 = vunpack.c.l.b16 %v392
      %v470 = vunpack.c.h.b16 %v392
      %v471 = vunpack.c.l.b16 %v393
      %v472 = vunpack.c.h.b16 %v393
      %v473 = vunpack.c.l.b16 %v394
      %v474 = vunpack.c.h.b16 %v394
      %v475 = vunpack.c.l.b16 %v395
      %v476 = vunpack.c.h.b16 %v395
      %v477 = vunpack.c.l.b16 %v396
      %v478 = vunpack.c.h.b16 %v396
      %v479 = vunpack.c.l.b16 %v397
      %v480 = vunpack.c.h.b16 %v397
      %v481 = vunpack.c.l.b16 %v398
      %v482 = vunpack.c.h.b16 %v398
      %v483 = vunpack.c.l.b16 %v399
      %v484 = vunpack.c.h.b16 %v399
      %v485 = vunpack.c.l.b16 %v400
      %v486 = vunpack.c.h.b16 %v400
      %v487 = vunpack.c.l.b16 %v401
      %v488 = vunpack.c.h.b16 %v401
      %v489 = vunpack.c.l.b16 %v402
      %v490 = vunpack.c.h.b16 %v402
      %v491 = vunpack.c.l.b16 %v403
      %v492 = vunpack.c.h.b16 %v403
      %v493 = vunpack.c.l.b16 %v404
      %v494 = vunpack.c.h.b16 %v404
      %v495 = vunpack.c.l.b16 %v405
      %v496 = vunpack.c.h.b16 %v405
      %v497 = vunpack.c.l.b16 %v406
      %v498 = vunpack.c.h.b16 %v406
      %v499 = vunpack.c.l.b16 %v407
      %v500 = vunpack.c.h.b16 %v407
      %v501 = vunpack.c.l.b16 %v408
      %v502 = vunpack.c.h.b16 %v408
      %v503 = vunpack.c.l.b16 %v409
      %v504 = vunpack.c.h.b16 %v409
      %v505 = vunpack.c.l.b16 %v410
      %v506 = vunpack.c.h.b16 %v410
      %v507 = vpack.c.b16 %v443, %v443
      %v508 = vpack.c.b16 %v444, %v444
      %v509 = vpack.c.b16 %v445, %v445
      %v510 = vpack.c.b16 %v446, %v446
      %v511 = vpack.c.b16 %v447, %v447
      %v512 = vpack.c.b16 %v448, %v448
      %v513 = vpack.c.b16 %v449, %v449
      %v514 = vpack.c.b16 %v450, %v450
      %v515 = vpack.c.b16 %v451, %v451
      %v516 = vpack.c.b16 %v452, %v452
      %v517 = vpack.c.b16 %v453, %v453
      %v518 = vpack.c.b16 %v454, %v454
      %v519 = vpack.c.b16 %v455, %v455
      %v520 = vpack.c.b16 %v456, %v456
      %v521 = vpack.c.b16 %v457, %v457
      %v522 = vpack.c.b16 %v458, %v458
      %v523 = vpack.c.b16 %v459, %v459
      %v524 = vpack.c.b16 %v460, %v460
      %v525 = vpack.c.b16 %v461, %v461
      %v526 = vpack.c.b16 %v462, %v462
      %v527 = vpack.c.b16 %v463, %v463
      %v528 = vpack.c.b16 %v464, %v464
      %v529 = vpack.c.b16 %v465, %v465
      %v530 = vpack.c.b16 %v466, %v466
      %v531 = vpack.c.b16 %v467, %v467
      %v532 = vpack.c.b16 %v468, %v468
      %v533 = vpack.c.b16 %v469, %v469
      %v534 = vpack.c.b16 %v470, %v470
      %v535 = vpack.c.b16 %v471, %v471
      %v536 = vpack.c.b16 %v472, %v472
      %v537 = vpack.c.b16 %v473, %v473
      %v538 = vpack.c.b16 %v474, %v474
      %v539 = vpack.c.b16 %v475, %v475
      %v540 = vpack.c.b16 %v476, %v476
      %v541 = vpack.c.b16 %v477, %v477
      %v542 = vpack.c.b16 %v478, %v478
      %v543 = vpack.c.b16 %v479, %v479
      %v544 = vpack.c.b16 %v480, %v480
      %v545 = vpack.c.b16 %v481, %v481
      %v546 = vpack.c.b16 %v482, %v482
      %v547 = vpack.c.b16 %v483, %v483
      %v548 = vpack.c.b16 %v484, %v484
      %v549 = vpack.c.b16 %v485, %v485
      %v550 = vpack.c.b16 %v486, %v486
      %v551 = vpack.c.b16 %v487, %v487
      %v552 = vpack.c.b16 %v488, %v488
      %v553 = vpack.c.b16 %v489, %v489
      %v554 = vpack.c.b16 %v490, %v490
      %v555 = vpack.c.b16 %v491, %v491
      %v556 = vpack.c.b16 %v492, %v492
      %v557 = vpack.c.b16 %v493, %v493
      %v558 = vpack.c.b16 %v494, %v494
      %v559 = vpack.c.b16 %v495, %v495
      %v560 = vpack.c.b16 %v496, %v496
      %v561 = vpack.c.b16 %v497, %v497
      %v562 = vpack.c.b16 %v498, %v498
      %v563 = vpack.c.b16 %v499, %v499
      %v564 = vpack.c.b16 %v500, %v500
      %v565 = vpack.c.b16 %v501, %v501
      %v566 = vpack.c.b16 %v502, %v502
      %v567 = vpack.c.b16 %v503, %v503
      %v568 = vpack.c.b16 %v504, %v504
      %v569 = vpack.c.b16 %v505, %v505
      %v570 = vpack.c.b16 %v506, %v506
      %vm571 = vsmask.f32 4368
      %vm572 = vmor %vm213, %vm571
      %v574 = vshrl.u32 %v507, 16
      %v576 = vrot.slane %v574, 7
      %v577 = vshll.u32 %v507, 16
      %v579 = vor.u32 %v576, %v577
      %v580 = vrot.slane %v576, 4
      %v582 = vshrl.u32 %v508, 16
      %v584 = vrot.slane %v582, 7
      %v585 = vshll.u32 %v508, 16
      %v587 = vor.u32 %v584, %v585
      %v588 = vsel %vm572, %v580, %v587
      %v589 = vrot.slane %v584, 4
      %v591 = vshrl.u32 %v509, 16
      %v593 = vrot.slane %v591, 7
      %v594 = vshll.u32 %v509, 16
      %v596 = vor.u32 %v593, %v594
      %v597 = vsel %vm572, %v589, %v596
      %v598 = vrot.slane %v593, 4
      %v600 = vshrl.u32 %v510, 16
      %v602 = vrot.slane %v600, 7
      %v603 = vshll.u32 %v510, 16
      %v605 = vor.u32 %v602, %v603
      %v606 = vsel %vm572, %v598, %v605
      %v607 = vrot.slane %v602, 4
      %v609 = vshrl.u32 %v511, 16
      %v611 = vrot.slane %v609, 7
      %v612 = vshll.u32 %v511, 16
      %v614 = vor.u32 %v611, %v612
      %v615 = vrot.slane %v611, 4
      %v617 = vshrl.u32 %v512, 16
      %v619 = vrot.slane %v617, 7
      %v620 = vshll.u32 %v512, 16
      %v622 = vor.u32 %v619, %v620
      %v623 = vsel %vm572, %v615, %v622
      %v624 = vrot.slane %v619, 4
      %v626 = vshrl.u32 %v513, 16
      %v628 = vrot.slane %v626, 7
      %v629 = vshll.u32 %v513, 16
      %v631 = vor.u32 %v628, %v629
      %v632 = vsel %vm572, %v624, %v631
      %v633 = vrot.slane %v628, 4
      %v635 = vshrl.u32 %v514, 16
      %v637 = vrot.slane %v635, 7
      %v638 = vshll.u32 %v514, 16
      %v640 = vor.u32 %v637, %v638
      %v641 = vsel %vm572, %v633, %v640
      %v642 = vrot.slane %v637, 4
      %v644 = vshrl.u32 %v515, 16
      %v646 = vrot.slane %v644, 7
      %v647 = vshll.u32 %v515, 16
      %v649 = vor.u32 %v646, %v647
      %v650 = vrot.slane %v646, 4
      %v652 = vshrl.u32 %v516, 16
      %v654 = vrot.slane %v652, 7
      %v655 = vshll.u32 %v516, 16
      %v657 = vor.u32 %v654, %v655
      %v658 = vsel %vm572, %v650, %v657
      %v659 = vrot.slane %v654, 4
      %v661 = vshrl.u32 %v517, 16
      %v663 = vrot.slane %v661, 7
      %v664 = vshll.u32 %v517, 16
      %v666 = vor.u32 %v663, %v664
      %v667 = vsel %vm572, %v659, %v666
      %v668 = vrot.slane %v663, 4
      %v670 = vshrl.u32 %v518, 16
      %v672 = vrot.slane %v670, 7
      %v673 = vshll.u32 %v518, 16
      %v675 = vor.u32 %v672, %v673
      %v676 = vsel %vm572, %v668, %v675
      %v677 = vrot.slane %v672, 4
      %v679 = vshrl.u32 %v519, 16
      %v681 = vrot.slane %v679, 7
      %v682 = vshll.u32 %v519, 16
      %v684 = vor.u32 %v681, %v682
      %v685 = vrot.slane %v681, 4
      %v687 = vshrl.u32 %v520, 16
      %v689 = vrot.slane %v687, 7
      %v690 = vshll.u32 %v520, 16
      %v692 = vor.u32 %v689, %v690
      %v693 = vsel %vm572, %v685, %v692
      %v694 = vrot.slane %v689, 4
      %v696 = vshrl.u32 %v521, 16
      %v698 = vrot.slane %v696, 7
      %v699 = vshll.u32 %v521, 16
      %v701 = vor.u32 %v698, %v699
      %v702 = vsel %vm572, %v694, %v701
      %v703 = vrot.slane %v698, 4
      %v705 = vshrl.u32 %v522, 16
      %v707 = vrot.slane %v705, 7
      %v708 = vshll.u32 %v522, 16
      %v710 = vor.u32 %v707, %v708
      %v711 = vsel %vm572, %v703, %v710
      %v712 = vrot.slane %v707, 4
      %v714 = vshrl.u32 %v523, 16
      %v716 = vrot.slane %v714, 7
      %v717 = vshll.u32 %v523, 16
      %v719 = vor.u32 %v716, %v717
      %v720 = vrot.slane %v716, 4
      %v722 = vshrl.u32 %v524, 16
      %v724 = vrot.slane %v722, 7
      %v725 = vshll.u32 %v524, 16
      %v727 = vor.u32 %v724, %v725
      %v728 = vsel %vm572, %v720, %v727
      %v729 = vrot.slane %v724, 4
      %v731 = vshrl.u32 %v525, 16
      %v733 = vrot.slane %v731, 7
      %v734 = vshll.u32 %v525, 16
      %v736 = vor.u32 %v733, %v734
      %v737 = vsel %vm572, %v729, %v736
      %v738 = vrot.slane %v733, 4
      %v740 = vshrl.u32 %v526, 16
      %v742 = vrot.slane %v740, 7
      %v743 = vshll.u32 %v526, 16
      %v745 = vor.u32 %v742, %v743
      %v746 = vsel %vm572, %v738, %v745
      %v747 = vrot.slane %v742, 4
      %v749 = vshrl.u32 %v527, 16
      %v751 = vrot.slane %v749, 7
      %v752 = vshll.u32 %v527, 16
      %v754 = vor.u32 %v751, %v752
      %v755 = vrot.slane %v751, 4
      %v757 = vshrl.u32 %v528, 16
      %v759 = vrot.slane %v757, 7
      %v760 = vshll.u32 %v528, 16
      %v762 = vor.u32 %v759, %v760
      %v763 = vsel %vm572, %v755, %v762
      %v764 = vrot.slane %v759, 4
      %v766 = vshrl.u32 %v529, 16
      %v768 = vrot.slane %v766, 7
      %v769 = vshll.u32 %v529, 16
      %v771 = vor.u32 %v768, %v769
      %v772 = vsel %vm572, %v764, %v771
      %v773 = vrot.slane %v768, 4
      %v775 = vshrl.u32 %v530, 16
      %v777 = vrot.slane %v775, 7
      %v778 = vshll.u32 %v530, 16
      %v780 = vor.u32 %v777, %v778
      %v781 = vsel %vm572, %v773, %v780
      %v782 = vrot.slane %v777, 4
      %v784 = vshrl.u32 %v531, 16
      %v786 = vrot.slane %v784, 7
      %v787 = vshll.u32 %v531, 16
      %v789 = vor.u32 %v786, %v787
      %v790 = vrot.slane %v786, 4
      %v792 = vshrl.u32 %v532, 16
      %v794 = vrot.slane %v792, 7
      %v795 = vshll.u32 %v532, 16
      %v797 = vor.u32 %v794, %v795
      %v798 = vsel %vm572, %v790, %v797
      %v799 = vrot.slane %v794, 4
      %v801 = vshrl.u32 %v533, 16
      %v803 = vrot.slane %v801, 7
      %v804 = vshll.u32 %v533, 16
      %v806 = vor.u32 %v803, %v804
      %v807 = vsel %vm572, %v799, %v806
      %v808 = vrot.slane %v803, 4
      %v810 = vshrl.u32 %v534, 16
      %v812 = vrot.slane %v810, 7
      %v813 = vshll.u32 %v534, 16
      %v815 = vor.u32 %v812, %v813
      %v816 = vsel %vm572, %v808, %v815
      %v817 = vrot.slane %v812, 4
      %v819 = vshrl.u32 %v535, 16
      %v821 = vrot.slane %v819, 7
      %v822 = vshll.u32 %v535, 16
      %v824 = vor.u32 %v821, %v822
      %v825 = vrot.slane %v821, 4
      %v827 = vshrl.u32 %v536, 16
      %v829 = vrot.slane %v827, 7
      %v830 = vshll.u32 %v536, 16
      %v832 = vor.u32 %v829, %v830
      %v833 = vsel %vm572, %v825, %v832
      %v834 = vrot.slane %v829, 4
      %v836 = vshrl.u32 %v537, 16
      %v838 = vrot.slane %v836, 7
      %v839 = vshll.u32 %v537, 16
      %v841 = vor.u32 %v838, %v839
      %v842 = vsel %vm572, %v834, %v841
      %v843 = vrot.slane %v838, 4
      %v845 = vshrl.u32 %v538, 16
      %v847 = vrot.slane %v845, 7
      %v848 = vshll.u32 %v538, 16
      %v850 = vor.u32 %v847, %v848
      %v851 = vsel %vm572, %v843, %v850
      %v852 = vrot.slane %v847, 4
      %v854 = vshrl.u32 %v539, 16
      %v856 = vrot.slane %v854, 7
      %v857 = vshll.u32 %v539, 16
      %v859 = vor.u32 %v856, %v857
      %v860 = vrot.slane %v856, 4
      %v862 = vshrl.u32 %v540, 16
      %v864 = vrot.slane %v862, 7
      %v865 = vshll.u32 %v540, 16
      %v867 = vor.u32 %v864, %v865
      %v868 = vsel %vm572, %v860, %v867
      %v869 = vrot.slane %v864, 4
      %v871 = vshrl.u32 %v541, 16
      %v873 = vrot.slane %v871, 7
      %v874 = vshll.u32 %v541, 16
      %v876 = vor.u32 %v873, %v874
      %v877 = vsel %vm572, %v869, %v876
      %v878 = vrot.slane %v873, 4
      %v880 = vshrl.u32 %v542, 16
      %v882 = vrot.slane %v880, 7
      %v883 = vshll.u32 %v542, 16
      %v885 = vor.u32 %v882, %v883
      %v886 = vsel %vm572, %v878, %v885
      %v887 = vrot.slane %v882, 4
      %v889 = vshrl.u32 %v543, 16
      %v891 = vrot.slane %v889, 7
      %v892 = vshll.u32 %v543, 16
      %v894 = vor.u32 %v891, %v892
      %v895 = vrot.slane %v891, 4
      %v897 = vshrl.u32 %v544, 16
      %v899 = vrot.slane %v897, 7
      %v900 = vshll.u32 %v544, 16
      %v902 = vor.u32 %v899, %v900
      %v903 = vsel %vm572, %v895, %v902
      %v904 = vrot.slane %v899, 4
      %v906 = vshrl.u32 %v545, 16
      %v908 = vrot.slane %v906, 7
      %v909 = vshll.u32 %v545, 16
      %v911 = vor.u32 %v908, %v909
      %v912 = vsel %vm572, %v904, %v911
      %v913 = vrot.slane %v908, 4
      %v915 = vshrl.u32 %v546, 16
      %v917 = vrot.slane %v915, 7
      %v918 = vshll.u32 %v546, 16
      %v920 = vor.u32 %v917, %v918
      %v921 = vsel %vm572, %v913, %v920
      %v922 = vrot.slane %v917, 4
      %v924 = vshrl.u32 %v547, 16
      %v926 = vrot.slane %v924, 7
      %v927 = vshll.u32 %v547, 16
      %v929 = vor.u32 %v926, %v927
      %v930 = vrot.slane %v926, 4
      %v932 = vshrl.u32 %v548, 16
      %v934 = vrot.slane %v932, 7
      %v935 = vshll.u32 %v548, 16
      %v937 = vor.u32 %v934, %v935
      %v938 = vsel %vm572, %v930, %v937
      %v939 = vrot.slane %v934, 4
      %v941 = vshrl.u32 %v549, 16
      %v943 = vrot.slane %v941, 7
      %v944 = vshll.u32 %v549, 16
      %v946 = vor.u32 %v943, %v944
      %v947 = vsel %vm572, %v939, %v946
      %v948 = vrot.slane %v943, 4
      %v950 = vshrl.u32 %v550, 16
      %v952 = vrot.slane %v950, 7
      %v953 = vshll.u32 %v550, 16
      %v955 = vor.u32 %v952, %v953
      %v956 = vsel %vm572, %v948, %v955
      %v957 = vrot.slane %v952, 4
      %v959 = vshrl.u32 %v551, 16
      %v961 = vrot.slane %v959, 7
      %v962 = vshll.u32 %v551, 16
      %v964 = vor.u32 %v961, %v962
      %v965 = vrot.slane %v961, 4
      %v967 = vshrl.u32 %v552, 16
      %v969 = vrot.slane %v967, 7
      %v970 = vshll.u32 %v552, 16
      %v972 = vor.u32 %v969, %v970
      %v973 = vsel %vm572, %v965, %v972
      %v974 = vrot.slane %v969, 4
      %v976 = vshrl.u32 %v553, 16
      %v978 = vrot.slane %v976, 7
      %v979 = vshll.u32 %v553, 16
      %v981 = vor.u32 %v978, %v979
      %v982 = vsel %vm572, %v974, %v981
      %v983 = vrot.slane %v978, 4
      %v985 = vshrl.u32 %v554, 16
      %v987 = vrot.slane %v985, 7
      %v988 = vshll.u32 %v554, 16
      %v990 = vor.u32 %v987, %v988
      %v991 = vsel %vm572, %v983, %v990
      %v992 = vrot.slane %v987, 4
      %v994 = vshrl.u32 %v555, 16
      %v996 = vrot.slane %v994, 7
      %v997 = vshll.u32 %v555, 16
      %v999 = vor.u32 %v996, %v997
      %v1000 = vrot.slane %v996, 4
      %v1002 = vshrl.u32 %v556, 16
      %v1004 = vrot.slane %v1002, 7
      %v1005 = vshll.u32 %v556, 16
      %v1007 = vor.u32 %v1004, %v1005
      %v1008 = vsel %vm572, %v1000, %v1007
      %v1009 = vrot.slane %v1004, 4
      %v1011 = vshrl.u32 %v557, 16
      %v1013 = vrot.slane %v1011, 7
      %v1014 = vshll.u32 %v557, 16
      %v1016 = vor.u32 %v1013, %v1014
      %v1017 = vsel %vm572, %v1009, %v1016
      %v1018 = vrot.slane %v1013, 4
      %v1020 = vshrl.u32 %v558, 16
      %v1022 = vrot.slane %v1020, 7
      %v1023 = vshll.u32 %v558, 16
      %v1025 = vor.u32 %v1022, %v1023
      %v1026 = vsel %vm572, %v1018, %v1025
      %v1027 = vrot.slane %v1022, 4
      %v1029 = vshrl.u32 %v559, 16
      %v1031 = vrot.slane %v1029, 7
      %v1032 = vshll.u32 %v559, 16
      %v1034 = vor.u32 %v1031, %v1032
      %v1035 = vrot.slane %v1031, 4
      %v1037 = vshrl.u32 %v560, 16
      %v1039 = vrot.slane %v1037, 7
      %v1040 = vshll.u32 %v560, 16
      %v1042 = vor.u32 %v1039, %v1040
      %v1043 = vsel %vm572, %v1035, %v1042
      %v1044 = vrot.slane %v1039, 4
      %v1046 = vshrl.u32 %v561, 16
      %v1048 = vrot.slane %v1046, 7
      %v1049 = vshll.u32 %v561, 16
      %v1051 = vor.u32 %v1048, %v1049
      %v1052 = vsel %vm572, %v1044, %v1051
      %v1053 = vrot.slane %v1048, 4
      %v1055 = vshrl.u32 %v562, 16
      %v1057 = vrot.slane %v1055, 7
      %v1058 = vshll.u32 %v562, 16
      %v1060 = vor.u32 %v1057, %v1058
      %v1061 = vsel %vm572, %v1053, %v1060
      %v1062 = vrot.slane %v1057, 4
      %v1064 = vshrl.u32 %v563, 16
      %v1066 = vrot.slane %v1064, 7
      %v1067 = vshll.u32 %v563, 16
      %v1069 = vor.u32 %v1066, %v1067
      %v1070 = vrot.slane %v1066, 4
      %v1072 = vshrl.u32 %v564, 16
      %v1074 = vrot.slane %v1072, 7
      %v1075 = vshll.u32 %v564, 16
      %v1077 = vor.u32 %v1074, %v1075
      %v1078 = vsel %vm572, %v1070, %v1077
      %v1079 = vrot.slane %v1074, 4
      %v1081 = vshrl.u32 %v565, 16
      %v1083 = vrot.slane %v1081, 7
      %v1084 = vshll.u32 %v565, 16
      %v1086 = vor.u32 %v1083, %v1084
      %v1087 = vsel %vm572, %v1079, %v1086
      %v1088 = vrot.slane %v1083, 4
      %v1090 = vshrl.u32 %v566, 16
      %v1092 = vrot.slane %v1090, 7
      %v1093 = vshll.u32 %v566, 16
      %v1095 = vor.u32 %v1092, %v1093
      %v1096 = vsel %vm572, %v1088, %v1095
      %v1097 = vrot.slane %v1092, 4
      %v1099 = vshrl.u32 %v567, 16
      %v1101 = vrot.slane %v1099, 7
      %v1102 = vshll.u32 %v567, 16
      %v1104 = vor.u32 %v1101, %v1102
      %v1105 = vrot.slane %v1101, 4
      %v1107 = vshrl.u32 %v568, 16
      %v1109 = vrot.slane %v1107, 7
      %v1110 = vshll.u32 %v568, 16
      %v1112 = vor.u32 %v1109, %v1110
      %v1113 = vsel %vm572, %v1105, %v1112
      %v1114 = vrot.slane %v1109, 4
      %v1116 = vshrl.u32 %v569, 16
      %v1118 = vrot.slane %v1116, 7
      %v1119 = vshll.u32 %v569, 16
      %v1121 = vor.u32 %v1118, %v1119
      %v1122 = vsel %vm572, %v1114, %v1121
      %v1123 = vrot.slane %v1118, 4
      %v1125 = vshrl.u32 %v570, 16
      %v1127 = vrot.slane %v1125, 7
      %v1128 = vshll.u32 %v570, 16
      %v1130 = vor.u32 %v1127, %v1128
      %v1131 = vsel %vm572, %v1123, %v1130
      %v1132 = vrot.slane %v1127, 4
      %vm1213 = vcmask 19456
      %vm1214 = vmand %vm1213, %vm263
      %v1215 = vld [vmem:[%s211] sm:$0xf]
      %v1216 = vsel %vm1214, %v579, %v1215
      %1217 = vst [vmem:[%s211] sm:$0xf] %v1216
      %1218 = vst.msk [vmem:[%s211 + $0x4] sm:$0xf] %vm198, %v588
      %1219 = vst.msk [vmem:[%s211 + $0x8] sm:$0xf] %vm198, %v597
      %1220 = vst.msk [vmem:[%s211 + $0xc] sm:$0xf] %vm198, %v606
      %v1221 = vld [vmem:[%s211 + $0x10] sm:$0x1]
      %v1222 = vsel %vm214, %v607, %v1221
      %1223 = vst [vmem:[%s211 + $0x10] sm:$0x1] %v1222
      %v1224 = vld [vmem:[%s211 + $0x14] sm:$0xf]
      %v1225 = vsel %vm1214, %v614, %v1224
      %1226 = vst [vmem:[%s211 + $0x14] sm:$0xf] %v1225
      %1227 = vst.msk [vmem:[%s211 + $0x18] sm:$0xf] %vm198, %v623
      %1228 = vst.msk [vmem:[%s211 + $0x1c] sm:$0xf] %vm198, %v632
      %1229 = vst.msk [vmem:[%s211 + $0x20] sm:$0xf] %vm198, %v641
      %v1230 = vld [vmem:[%s211 + $0x24] sm:$0x1]
      %v1231 = vsel %vm214, %v642, %v1230
      %1232 = vst [vmem:[%s211 + $0x24] sm:$0x1] %v1231
      %v1233 = vld [vmem:[%s211 + $0x28] sm:$0xf]
      %v1234 = vsel %vm1214, %v649, %v1233
      %1235 = vst [vmem:[%s211 + $0x28] sm:$0xf] %v1234
      %1236 = vst.msk [vmem:[%s211 + $0x2c] sm:$0xf] %vm198, %v658
      %1237 = vst.msk [vmem:[%s211 + $0x30] sm:$0xf] %vm198, %v667
      %1238 = vst.msk [vmem:[%s211 + $0x34] sm:$0xf] %vm198, %v676
      %v1239 = vld [vmem:[%s211 + $0x38] sm:$0x1]
      %v1240 = vsel %vm214, %v677, %v1239
      %1241 = vst [vmem:[%s211 + $0x38] sm:$0x1] %v1240
      %v1242 = vld [vmem:[%s211 + $0x3c] sm:$0xf]
      %v1243 = vsel %vm1214, %v684, %v1242
      %1244 = vst [vmem:[%s211 + $0x3c] sm:$0xf] %v1243
      %1245 = vst.msk [vmem:[%s211 + $0x40] sm:$0xf] %vm198, %v693
      %1246 = vst.msk [vmem:[%s211 + $0x44] sm:$0xf] %vm198, %v702
      %1247 = vst.msk [vmem:[%s211 + $0x48] sm:$0xf] %vm198, %v711
      %v1248 = vld [vmem:[%s211 + $0x4c] sm:$0x1]
      %v1249 = vsel %vm214, %v712, %v1248
      %1250 = vst [vmem:[%s211 + $0x4c] sm:$0x1] %v1249
      %v1251 = vld [vmem:[%s211 + $0x50] sm:$0xf]
      %v1252 = vsel %vm1214, %v719, %v1251
      %1253 = vst [vmem:[%s211 + $0x50] sm:$0xf] %v1252
      %1254 = vst.msk [vmem:[%s211 + $0x54] sm:$0xf] %vm198, %v728
      %1255 = vst.msk [vmem:[%s211 + $0x58] sm:$0xf] %vm198, %v737
      %1256 = vst.msk [vmem:[%s211 + $0x5c] sm:$0xf] %vm198, %v746
      %v1257 = vld [vmem:[%s211 + $0x60] sm:$0x1]
      %v1258 = vsel %vm214, %v747, %v1257
      %1259 = vst [vmem:[%s211 + $0x60] sm:$0x1] %v1258
      %v1260 = vld [vmem:[%s211 + $0x64] sm:$0xf]
      %v1261 = vsel %vm1214, %v754, %v1260
      %1262 = vst [vmem:[%s211 + $0x64] sm:$0xf] %v1261
      %1263 = vst.msk [vmem:[%s211 + $0x68] sm:$0xf] %vm198, %v763
      %1264 = vst.msk [vmem:[%s211 + $0x6c] sm:$0xf] %vm198, %v772
      %1265 = vst.msk [vmem:[%s211 + $0x70] sm:$0xf] %vm198, %v781
      %v1266 = vld [vmem:[%s211 + $0x74] sm:$0x1]
      %v1267 = vsel %vm214, %v782, %v1266
      %1268 = vst [vmem:[%s211 + $0x74] sm:$0x1] %v1267
      %v1269 = vld [vmem:[%s211 + $0x78] sm:$0xf]
      %v1270 = vsel %vm1214, %v789, %v1269
      %1271 = vst [vmem:[%s211 + $0x78] sm:$0xf] %v1270
      %1272 = vst.msk [vmem:[%s211 + $0x7c] sm:$0xf] %vm198, %v798
      %1273 = vst.msk [vmem:[%s211 + $0x80] sm:$0xf] %vm198, %v807
      %1274 = vst.msk [vmem:[%s211 + $0x84] sm:$0xf] %vm198, %v816
      %v1275 = vld [vmem:[%s211 + $0x88] sm:$0x1]
      %v1276 = vsel %vm214, %v817, %v1275
      %1277 = vst [vmem:[%s211 + $0x88] sm:$0x1] %v1276
      %v1278 = vld [vmem:[%s211 + $0x8c] sm:$0xf]
      %v1279 = vsel %vm1214, %v824, %v1278
      %1280 = vst [vmem:[%s211 + $0x8c] sm:$0xf] %v1279
      %1281 = vst.msk [vmem:[%s211 + $0x90] sm:$0xf] %vm198, %v833
      %1282 = vst.msk [vmem:[%s211 + $0x94] sm:$0xf] %vm198, %v842
      %1283 = vst.msk [vmem:[%s211 + $0x98] sm:$0xf] %vm198, %v851
      %v1284 = vld [vmem:[%s211 + $0x9c] sm:$0x1]
      %v1285 = vsel %vm214, %v852, %v1284
      %1286 = vst [vmem:[%s211 + $0x9c] sm:$0x1] %v1285
      %v1287 = vld [vmem:[%s211 + $0xa0] sm:$0xf]
      %v1288 = vsel %vm1214, %v859, %v1287
      %1289 = vst [vmem:[%s211 + $0xa0] sm:$0xf] %v1288
      %1290 = vst.msk [vmem:[%s211 + $0xa4] sm:$0xf] %vm198, %v868
      %1291 = vst.msk [vmem:[%s211 + $0xa8] sm:$0xf] %vm198, %v877
      %1292 = vst.msk [vmem:[%s211 + $0xac] sm:$0xf] %vm198, %v886
      %v1293 = vld [vmem:[%s211 + $0xb0] sm:$0x1]
      %v1294 = vsel %vm214, %v887, %v1293
      %1295 = vst [vmem:[%s211 + $0xb0] sm:$0x1] %v1294
      %v1296 = vld [vmem:[%s211 + $0xb4] sm:$0xf]
      %v1297 = vsel %vm1214, %v894, %v1296
      %1298 = vst [vmem:[%s211 + $0xb4] sm:$0xf] %v1297
      %1299 = vst.msk [vmem:[%s211 + $0xb8] sm:$0xf] %vm198, %v903
      %1300 = vst.msk [vmem:[%s211 + $0xbc] sm:$0xf] %vm198, %v912
      %1301 = vst.msk [vmem:[%s211 + $0xc0] sm:$0xf] %vm198, %v921
      %v1302 = vld [vmem:[%s211 + $0xc4] sm:$0x1]
      %v1303 = vsel %vm214, %v922, %v1302
      %1304 = vst [vmem:[%s211 + $0xc4] sm:$0x1] %v1303
      %v1305 = vld [vmem:[%s211 + $0xc8] sm:$0xf]
      %v1306 = vsel %vm1214, %v929, %v1305
      %1307 = vst [vmem:[%s211 + $0xc8] sm:$0xf] %v1306
      %1308 = vst.msk [vmem:[%s211 + $0xcc] sm:$0xf] %vm198, %v938
      %1309 = vst.msk [vmem:[%s211 + $0xd0] sm:$0xf] %vm198, %v947
      %1310 = vst.msk [vmem:[%s211 + $0xd4] sm:$0xf] %vm198, %v956
      %v1311 = vld [vmem:[%s211 + $0xd8] sm:$0x1]
      %v1312 = vsel %vm214, %v957, %v1311
      %1313 = vst [vmem:[%s211 + $0xd8] sm:$0x1] %v1312
      %v1314 = vld [vmem:[%s211 + $0xdc] sm:$0xf]
      %v1315 = vsel %vm1214, %v964, %v1314
      %1316 = vst [vmem:[%s211 + $0xdc] sm:$0xf] %v1315
      %1317 = vst.msk [vmem:[%s211 + $0xe0] sm:$0xf] %vm198, %v973
      %1318 = vst.msk [vmem:[%s211 + $0xe4] sm:$0xf] %vm198, %v982
      %1319 = vst.msk [vmem:[%s211 + $0xe8] sm:$0xf] %vm198, %v991
      %v1320 = vld [vmem:[%s211 + $0xec] sm:$0x1]
      %v1321 = vsel %vm214, %v992, %v1320
      %1322 = vst [vmem:[%s211 + $0xec] sm:$0x1] %v1321
      %v1323 = vld [vmem:[%s211 + $0xf0] sm:$0xf]
      %v1324 = vsel %vm1214, %v999, %v1323
      %1325 = vst [vmem:[%s211 + $0xf0] sm:$0xf] %v1324
      %1326 = vst.msk [vmem:[%s211 + $0xf4] sm:$0xf] %vm198, %v1008
      %1327 = vst.msk [vmem:[%s211 + $0xf8] sm:$0xf] %vm198, %v1017
      %1328 = vst.msk [vmem:[%s211 + $0xfc] sm:$0xf] %vm198, %v1026
      %v1329 = vld [vmem:[%s211 + $0x100] sm:$0x1]
      %v1330 = vsel %vm214, %v1027, %v1329
      %1331 = vst [vmem:[%s211 + $0x100] sm:$0x1] %v1330
      %v1332 = vld [vmem:[%s211 + $0x104] sm:$0xf]
      %v1333 = vsel %vm1214, %v1034, %v1332
      %1334 = vst [vmem:[%s211 + $0x104] sm:$0xf] %v1333
      %1335 = vst.msk [vmem:[%s211 + $0x108] sm:$0xf] %vm198, %v1043
      %1336 = vst.msk [vmem:[%s211 + $0x10c] sm:$0xf] %vm198, %v1052
      %1337 = vst.msk [vmem:[%s211 + $0x110] sm:$0xf] %vm198, %v1061
      %v1338 = vld [vmem:[%s211 + $0x114] sm:$0x1]
      %v1339 = vsel %vm214, %v1062, %v1338
      %1340 = vst [vmem:[%s211 + $0x114] sm:$0x1] %v1339
      %v1341 = vld [vmem:[%s211 + $0x118] sm:$0xf]
      %v1342 = vsel %vm1214, %v1069, %v1341
      %1343 = vst [vmem:[%s211 + $0x118] sm:$0xf] %v1342
      %1344 = vst.msk [vmem:[%s211 + $0x11c] sm:$0xf] %vm198, %v1078
      %1345 = vst.msk [vmem:[%s211 + $0x120] sm:$0xf] %vm198, %v1087
      %1346 = vst.msk [vmem:[%s211 + $0x124] sm:$0xf] %vm198, %v1096
      %v1347 = vld [vmem:[%s211 + $0x128] sm:$0x1]
      %v1348 = vsel %vm214, %v1097, %v1347
      %1349 = vst [vmem:[%s211 + $0x128] sm:$0x1] %v1348
      %v1350 = vld [vmem:[%s211 + $0x12c] sm:$0xf]
      %v1351 = vsel %vm1214, %v1104, %v1350
      %1352 = vst [vmem:[%s211 + $0x12c] sm:$0xf] %v1351
      %1353 = vst.msk [vmem:[%s211 + $0x130] sm:$0xf] %vm198, %v1113
      %1354 = vst.msk [vmem:[%s211 + $0x134] sm:$0xf] %vm198, %v1122
      %1355 = vst.msk [vmem:[%s211 + $0x138] sm:$0xf] %vm198, %v1131
      %v1356 = vld [vmem:[%s211 + $0x13c] sm:$0x1]
      %v1357 = vsel %vm214, %v1132, %v1356
      %1358 = vst [vmem:[%s211 + $0x13c] sm:$0x1] %v1357
      %p1359 = scmp.gt.s32.totalorder %s19, 0
      // Predicated region
      $region33: #{tpu_custom_call.1} parent=31 // pred_check
        %p1360 = pneg %p1359
      $region34: #{tpu_custom_call.1} parent=31 // pred_check_branch
        %1362 = sbr.rel (%p1360) target = $region36
      $region35: #{tpu_custom_call.1} parent=31 // pred_region
        %s1363 = ssub.s32 %s197, 1
        %s1364 = smul.u32 %s1363, 32
        %s1365 = scalar_lea.vmem %s184, %s1364
        %v1366 = vld [vmem:[%s1365] sm:$0xff]
        %v1367 = vld [vmem:[%s1365 + $0x8] sm:$0xff]
        %v1368 = vld [vmem:[%s1365 + $0x10] sm:$0xff]
        %v1369 = vld [vmem:[%s1365 + $0x18] sm:$0xff]
        %v1370 = vpack.c.bf16 %v1367, %v1366
        %v1371 = vpack.c.bf16 %v1369, %v1368
        %v1374 = vunpack.c.l.b16 %v1370
        %v1375 = vunpack.c.h.b16 %v1370
        %v1376 = vunpack.c.l.b16 %v1371
        %v1377 = vunpack.c.h.b16 %v1371
        %v1378 = vpack.c.b16 %v1374, %v1374
        %v1379 = vpack.c.b16 %v1375, %v1375
        %v1380 = vpack.c.b16 %v1376, %v1376
        %v1381 = vpack.c.b16 %v1377, %v1377
        %v1383 = vshrl.u32 %v1378, 16
        %v1385 = vrot.slane %v1383, 7
        %v1386 = vshll.u32 %v1378, 16
        %v1388 = vor.u32 %v1385, %v1386
        %v1389 = vrot.slane %v1385, 4
        %v1391 = vshrl.u32 %v1379, 16
        %v1393 = vrot.slane %v1391, 7
        %v1394 = vshll.u32 %v1379, 16
        %v1396 = vor.u32 %v1393, %v1394
        %v1397 = vsel %vm572, %v1389, %v1396
        %v1398 = vrot.slane %v1393, 4
        %v1400 = vshrl.u32 %v1380, 16
        %v1402 = vrot.slane %v1400, 7
        %v1403 = vshll.u32 %v1380, 16
        %v1405 = vor.u32 %v1402, %v1403
        %v1406 = vsel %vm572, %v1398, %v1405
        %v1407 = vrot.slane %v1402, 4
        %v1409 = vshrl.u32 %v1381, 16
        %v1411 = vrot.slane %v1409, 7
        %v1412 = vshll.u32 %v1381, 16
        %v1414 = vor.u32 %v1411, %v1412
        %v1415 = vsel %vm572, %v1407, %v1414
        %v1416 = vrot.slane %v1411, 4
        %v1422 = vld [vmem:[#allocation2] sm:$0xf]
        %v1423 = vsel %vm1214, %v1388, %v1422
        %1424 = vst [vmem:[#allocation2] sm:$0xf] %v1423
        %1425 = vst.msk [vmem:[#allocation2 + $0x4] sm:$0xf] %vm198, %v1397
        %1426 = vst.msk [vmem:[#allocation2 + $0x8] sm:$0xf] %vm198, %v1406
        %1427 = vst.msk [vmem:[#allocation2 + $0xc] sm:$0xf] %vm198, %v1415
        %v1428 = vld [vmem:[#allocation2 + $0x10] sm:$0x1]
        %v1429 = vsel %vm214, %v1416, %v1428
        %1430 = vst [vmem:[#allocation2 + $0x10] sm:$0x1] %v1429
      $region36: #{tpu_custom_call.1} parent=31 // pred_fallthru
        _
      %p1431 = scmp.lt.s32.totalorder %s19, 1
      // Predicated region
      $region37: #{tpu_custom_call.1} parent=31 // pred_check
        %p1432 = pneg %p1431
      $region38: #{tpu_custom_call.1} parent=31 // pred_check_branch
        %1434 = sbr.rel (%p1432) target = $region40
      $region39: #{tpu_custom_call.1} parent=31 // pred_region
        %s1435 = sadd.s32 %s197, 16
        %s1436 = smul.u32 %s1435, 32
        %s1437 = scalar_lea.vmem %s184, %s1436
        %v1438 = vld [vmem:[%s1437] sm:$0xff]
        %v1439 = vld [vmem:[%s1437 + $0x8] sm:$0xff]
        %v1440 = vld [vmem:[%s1437 + $0x10] sm:$0xff]
        %v1441 = vld [vmem:[%s1437 + $0x18] sm:$0xff]
        %v1442 = vpack.c.bf16 %v1439, %v1438
        %v1443 = vpack.c.bf16 %v1441, %v1440
        %v1446 = vunpack.c.l.b16 %v1442
        %v1447 = vunpack.c.h.b16 %v1442
        %v1448 = vunpack.c.l.b16 %v1443
        %v1449 = vunpack.c.h.b16 %v1443
        %v1450 = vpack.c.b16 %v1446, %v1446
        %v1451 = vpack.c.b16 %v1447, %v1447
        %v1452 = vpack.c.b16 %v1448, %v1448
        %v1453 = vpack.c.b16 %v1449, %v1449
        %v1455 = vshrl.u32 %v1450, 16
        %v1457 = vrot.slane %v1455, 7
        %v1458 = vshll.u32 %v1450, 16
        %v1460 = vor.u32 %v1457, %v1458
        %v1461 = vrot.slane %v1457, 4
        %v1463 = vshrl.u32 %v1451, 16
        %v1465 = vrot.slane %v1463, 7
        %v1466 = vshll.u32 %v1451, 16
        %v1468 = vor.u32 %v1465, %v1466
        %v1469 = vsel %vm572, %v1461, %v1468
        %v1470 = vrot.slane %v1465, 4
        %v1472 = vshrl.u32 %v1452, 16
        %v1474 = vrot.slane %v1472, 7
        %v1475 = vshll.u32 %v1452, 16
        %v1477 = vor.u32 %v1474, %v1475
        %v1478 = vsel %vm572, %v1470, %v1477
        %v1479 = vrot.slane %v1474, 4
        %v1481 = vshrl.u32 %v1453, 16
        %v1483 = vrot.slane %v1481, 7
        %v1484 = vshll.u32 %v1453, 16
        %v1486 = vor.u32 %v1483, %v1484
        %v1487 = vsel %vm572, %v1479, %v1486
        %v1488 = vrot.slane %v1483, 4
        %v1494 = vld [vmem:[%s205] sm:$0xf]
        %v1495 = vsel %vm1214, %v1460, %v1494
        %1496 = vst [vmem:[%s205] sm:$0xf] %v1495
        %1497 = vst.msk [vmem:[%s205 + $0x4] sm:$0xf] %vm198, %v1469
        %1498 = vst.msk [vmem:[%s205 + $0x8] sm:$0xf] %vm198, %v1478
        %1499 = vst.msk [vmem:[%s205 + $0xc] sm:$0xf] %vm198, %v1487
        %v1500 = vld [vmem:[%s205 + $0x10] sm:$0x1]
        %v1501 = vsel %vm214, %v1488, %v1500
        %1502 = vst [vmem:[%s205 + $0x10] sm:$0x1] %v1501
      $region40: #{tpu_custom_call.1} parent=31 // pred_fallthru
        _
      %v1503 = vld [vmem:[#allocation2] sm:$0xf]
      %v1504 = vld [vmem:[#allocation2 + $0x4] sm:$0xf]
      %v1505 = vld [vmem:[#allocation2 + $0x8] sm:$0xf]
      %v1506 = vld [vmem:[#allocation2 + $0xc] sm:$0xf]
      %v1507 = vld [vmem:[#allocation2 + $0x14] sm:$0xf]
      %v1508 = vld [vmem:[#allocation2 + $0x18] sm:$0xf]
      %v1509 = vld [vmem:[#allocation2 + $0x1c] sm:$0xf]
      %v1510 = vld [vmem:[#allocation2 + $0x20] sm:$0xf]
      %v1511 = vld [vmem:[#allocation2 + $0x28] sm:$0xf]
      %v1512 = vld [vmem:[#allocation2 + $0x2c] sm:$0xf]
      %v1513 = vld [vmem:[#allocation2 + $0x30] sm:$0xf]
      %v1514 = vld [vmem:[#allocation2 + $0x34] sm:$0xf]
      %v1515 = vld [vmem:[#allocation2 + $0x3c] sm:$0xf]
      %v1516 = vld [vmem:[#allocation2 + $0x40] sm:$0xf]
      %v1517 = vld [vmem:[#allocation2 + $0x44] sm:$0xf]
      %v1518 = vld [vmem:[#allocation2 + $0x48] sm:$0xf]
      %v1519 = vld [vmem:[#allocation2 + $0x50] sm:$0xf]
      %v1520 = vld [vmem:[#allocation2 + $0x54] sm:$0xf]
      %v1521 = vld [vmem:[#allocation2 + $0x58] sm:$0xf]
      %v1522 = vld [vmem:[#allocation2 + $0x5c] sm:$0xf]
      %v1523 = vld [vmem:[#allocation2 + $0x64] sm:$0xf]
      %v1524 = vld [vmem:[#allocation2 + $0x68] sm:$0xf]
      %v1525 = vld [vmem:[#allocation2 + $0x6c] sm:$0xf]
      %v1526 = vld [vmem:[#allocation2 + $0x70] sm:$0xf]
      %v1527 = vld [vmem:[#allocation2 + $0x78] sm:$0xf]
      %v1528 = vld [vmem:[#allocation2 + $0x7c] sm:$0xf]
      %v1529 = vld [vmem:[#allocation2 + $0x80] sm:$0xf]
      %v1530 = vld [vmem:[#allocation2 + $0x84] sm:$0xf]
      %v1531 = vld [vmem:[#allocation2 + $0x8c] sm:$0xf]
      %v1532 = vld [vmem:[#allocation2 + $0x90] sm:$0xf]
      %v1533 = vld [vmem:[#allocation2 + $0x94] sm:$0xf]
      %v1534 = vld [vmem:[#allocation2 + $0x98] sm:$0xf]
      %v1535 = vld [vmem:[#allocation2 + $0xa0] sm:$0xf]
      %v1536 = vld [vmem:[#allocation2 + $0xa4] sm:$0xf]
      %v1537 = vld [vmem:[#allocation2 + $0xa8] sm:$0xf]
      %v1538 = vld [vmem:[#allocation2 + $0xac] sm:$0xf]
      %v1539 = vld [vmem:[#allocation2 + $0xb4] sm:$0xf]
      %v1540 = vld [vmem:[#allocation2 + $0xb8] sm:$0xf]
      %v1541 = vld [vmem:[#allocation2 + $0xbc] sm:$0xf]
      %v1542 = vld [vmem:[#allocation2 + $0xc0] sm:$0xf]
      %v1543 = vld [vmem:[#allocation2 + $0xc8] sm:$0xf]
      %v1544 = vld [vmem:[#allocation2 + $0xcc] sm:$0xf]
      %v1545 = vld [vmem:[#allocation2 + $0xd0] sm:$0xf]
      %v1546 = vld [vmem:[#allocation2 + $0xd4] sm:$0xf]
      %v1547 = vld [vmem:[#allocation2 + $0xdc] sm:$0xf]
      %v1548 = vld [vmem:[#allocation2 + $0xe0] sm:$0xf]
      %v1549 = vld [vmem:[#allocation2 + $0xe4] sm:$0xf]
      %v1550 = vld [vmem:[#allocation2 + $0xe8] sm:$0xf]
      %v1551 = vld [vmem:[#allocation2 + $0xf0] sm:$0xf]
      %v1552 = vld [vmem:[#allocation2 + $0xf4] sm:$0xf]
      %v1553 = vld [vmem:[#allocation2 + $0xf8] sm:$0xf]
      %v1554 = vld [vmem:[#allocation2 + $0xfc] sm:$0xf]
      %v1555 = vld [vmem:[#allocation2 + $0x104] sm:$0xf]
      %v1556 = vld [vmem:[#allocation2 + $0x108] sm:$0xf]
      %v1557 = vld [vmem:[#allocation2 + $0x10c] sm:$0xf]
      %v1558 = vld [vmem:[#allocation2 + $0x110] sm:$0xf]
      %v1559 = vld [vmem:[#allocation2 + $0x118] sm:$0xf]
      %v1560 = vld [vmem:[#allocation2 + $0x11c] sm:$0xf]
      %v1561 = vld [vmem:[#allocation2 + $0x120] sm:$0xf]
      %v1562 = vld [vmem:[#allocation2 + $0x124] sm:$0xf]
      %v1563 = vld [vmem:[#allocation2 + $0x12c] sm:$0xf]
      %v1564 = vld [vmem:[#allocation2 + $0x130] sm:$0xf]
      %v1565 = vld [vmem:[#allocation2 + $0x134] sm:$0xf]
      %v1566 = vld [vmem:[#allocation2 + $0x138] sm:$0xf]
      %v1567 = vld [vmem:[#allocation2 + $0x10] sm:$0x1]
      %v1568 = vld [vmem:[#allocation2 + $0x24] sm:$0x1]
      %v1569 = vld [vmem:[#allocation2 + $0x38] sm:$0x1]
      %v1570 = vld [vmem:[#allocation2 + $0x4c] sm:$0x1]
      %v1571 = vld [vmem:[#allocation2 + $0x60] sm:$0x1]
      %v1572 = vld [vmem:[#allocation2 + $0x74] sm:$0x1]
      %v1573 = vld [vmem:[#allocation2 + $0x88] sm:$0x1]
      %v1574 = vld [vmem:[#allocation2 + $0x9c] sm:$0x1]
      %v1575 = vld [vmem:[#allocation2 + $0xb0] sm:$0x1]
      %v1576 = vld [vmem:[#allocation2 + $0xc4] sm:$0x1]
      %v1577 = vld [vmem:[#allocation2 + $0xd8] sm:$0x1]
      %v1578 = vld [vmem:[#allocation2 + $0xec] sm:$0x1]
      %v1579 = vld [vmem:[#allocation2 + $0x100] sm:$0x1]
      %v1580 = vld [vmem:[#allocation2 + $0x114] sm:$0x1]
      %v1581 = vld [vmem:[#allocation2 + $0x128] sm:$0x1]
      %v1582 = vld [vmem:[#allocation2 + $0x13c] sm:$0x1]
      %v1583 = vld [vmem:[#allocation2] sm:$0xe]
      %v1584 = vld [vmem:[#allocation2 + $0x14] sm:$0xe]
      %v1585 = vld [vmem:[#allocation2 + $0x28] sm:$0xe]
      %v1586 = vld [vmem:[#allocation2 + $0x3c] sm:$0xe]
      %v1587 = vld [vmem:[#allocation2 + $0x50] sm:$0xe]
      %v1588 = vld [vmem:[#allocation2 + $0x64] sm:$0xe]
      %v1589 = vld [vmem:[#allocation2 + $0x78] sm:$0xe]
      %v1590 = vld [vmem:[#allocation2 + $0x8c] sm:$0xe]
      %v1591 = vld [vmem:[#allocation2 + $0xa0] sm:$0xe]
      %v1592 = vld [vmem:[#allocation2 + $0xb4] sm:$0xe]
      %v1593 = vld [vmem:[#allocation2 + $0xc8] sm:$0xe]
      %v1594 = vld [vmem:[#allocation2 + $0xdc] sm:$0xe]
      %v1595 = vld [vmem:[#allocation2 + $0xf0] sm:$0xe]
      %v1596 = vld [vmem:[#allocation2 + $0x104] sm:$0xe]
      %v1597 = vld [vmem:[#allocation2 + $0x118] sm:$0xe]
      %v1598 = vld [vmem:[#allocation2 + $0x12c] sm:$0xe]
      %v1599 = vld [vmem:[%s211] sm:$0xf]
      %v1600 = vld [vmem:[%s211 + $0x4] sm:$0xf]
      %v1601 = vld [vmem:[%s211 + $0x8] sm:$0xf]
      %v1602 = vld [vmem:[%s211 + $0xc] sm:$0xf]
      %v1603 = vld [vmem:[%s211 + $0x14] sm:$0xf]
      %v1604 = vld [vmem:[%s211 + $0x18] sm:$0xf]
      %v1605 = vld [vmem:[%s211 + $0x1c] sm:$0xf]
      %v1606 = vld [vmem:[%s211 + $0x20] sm:$0xf]
      %v1607 = vld [vmem:[%s211 + $0x28] sm:$0xf]
      %v1608 = vld [vmem:[%s211 + $0x2c] sm:$0xf]
      %v1609 = vld [vmem:[%s211 + $0x30] sm:$0xf]
      %v1610 = vld [vmem:[%s211 + $0x34] sm:$0xf]
      %v1611 = vld [vmem:[%s211 + $0x3c] sm:$0xf]
      %v1612 = vld [vmem:[%s211 + $0x40] sm:$0xf]
      %v1613 = vld [vmem:[%s211 + $0x44] sm:$0xf]
      %v1614 = vld [vmem:[%s211 + $0x48] sm:$0xf]
      %v1615 = vld [vmem:[%s211 + $0x50] sm:$0xf]
      %v1616 = vld [vmem:[%s211 + $0x54] sm:$0xf]
      %v1617 = vld [vmem:[%s211 + $0x58] sm:$0xf]
      %v1618 = vld [vmem:[%s211 + $0x5c] sm:$0xf]
      %v1619 = vld [vmem:[%s211 + $0x64] sm:$0xf]
      %v1620 = vld [vmem:[%s211 + $0x68] sm:$0xf]
      %v1621 = vld [vmem:[%s211 + $0x6c] sm:$0xf]
      %v1622 = vld [vmem:[%s211 + $0x70] sm:$0xf]
      %v1623 = vld [vmem:[%s211 + $0x78] sm:$0xf]
      %v1624 = vld [vmem:[%s211 + $0x7c] sm:$0xf]
      %v1625 = vld [vmem:[%s211 + $0x80] sm:$0xf]
      %v1626 = vld [vmem:[%s211 + $0x84] sm:$0xf]
      %v1627 = vld [vmem:[%s211 + $0x8c] sm:$0xf]
      %v1628 = vld [vmem:[%s211 + $0x90] sm:$0xf]
      %v1629 = vld [vmem:[%s211 + $0x94] sm:$0xf]
      %v1630 = vld [vmem:[%s211 + $0x98] sm:$0xf]
      %v1631 = vld [vmem:[%s211 + $0xa0] sm:$0xf]
      %v1632 = vld [vmem:[%s211 + $0xa4] sm:$0xf]
      %v1633 = vld [vmem:[%s211 + $0xa8] sm:$0xf]
      %v1634 = vld [vmem:[%s211 + $0xac] sm:$0xf]
      %v1635 = vld [vmem:[%s211 + $0xb4] sm:$0xf]
      %v1636 = vld [vmem:[%s211 + $0xb8] sm:$0xf]
      %v1637 = vld [vmem:[%s211 + $0xbc] sm:$0xf]
      %v1638 = vld [vmem:[%s211 + $0xc0] sm:$0xf]
      %v1639 = vld [vmem:[%s211 + $0xc8] sm:$0xf]
      %v1640 = vld [vmem:[%s211 + $0xcc] sm:$0xf]
      %v1641 = vld [vmem:[%s211 + $0xd0] sm:$0xf]
      %v1642 = vld [vmem:[%s211 + $0xd4] sm:$0xf]
      %v1643 = vld [vmem:[%s211 + $0xdc] sm:$0xf]
      %v1644 = vld [vmem:[%s211 + $0xe0] sm:$0xf]
      %v1645 = vld [vmem:[%s211 + $0xe4] sm:$0xf]
      %v1646 = vld [vmem:[%s211 + $0xe8] sm:$0xf]
      %v1647 = vld [vmem:[%s211 + $0xf0] sm:$0xf]
      %v1648 = vld [vmem:[%s211 + $0xf4] sm:$0xf]
      %v1649 = vld [vmem:[%s211 + $0xf8] sm:$0xf]
      %v1650 = vld [vmem:[%s211 + $0xfc] sm:$0xf]
      %v1651 = vld [vmem:[%s211 + $0x104] sm:$0xf]
      %v1652 = vld [vmem:[%s211 + $0x108] sm:$0xf]
      %v1653 = vld [vmem:[%s211 + $0x10c] sm:$0xf]
      %v1654 = vld [vmem:[%s211 + $0x110] sm:$0xf]
      %v1655 = vld [vmem:[%s211 + $0x118] sm:$0xf]
      %v1656 = vld [vmem:[%s211 + $0x11c] sm:$0xf]
      %v1657 = vld [vmem:[%s211 + $0x120] sm:$0xf]
      %v1658 = vld [vmem:[%s211 + $0x124] sm:$0xf]
      %v1659 = vld [vmem:[%s211 + $0x12c] sm:$0xf]
      %v1660 = vld [vmem:[%s211 + $0x130] sm:$0xf]
      %v1661 = vld [vmem:[%s211 + $0x134] sm:$0xf]
      %v1662 = vld [vmem:[%s211 + $0x138] sm:$0xf]
      %v1663 = vld [vmem:[%s211 + $0x10] sm:$0x1]
      %v1664 = vld [vmem:[%s211 + $0x24] sm:$0x1]
      %v1665 = vld [vmem:[%s211 + $0x38] sm:$0x1]
      %v1666 = vld [vmem:[%s211 + $0x4c] sm:$0x1]
      %v1667 = vld [vmem:[%s211 + $0x60] sm:$0x1]
      %v1668 = vld [vmem:[%s211 + $0x74] sm:$0x1]
      %v1669 = vld [vmem:[%s211 + $0x88] sm:$0x1]
      %v1670 = vld [vmem:[%s211 + $0x9c] sm:$0x1]
      %v1671 = vld [vmem:[%s211 + $0xb0] sm:$0x1]
      %v1672 = vld [vmem:[%s211 + $0xc4] sm:$0x1]
      %v1673 = vld [vmem:[%s211 + $0xd8] sm:$0x1]
      %v1674 = vld [vmem:[%s211 + $0xec] sm:$0x1]
      %v1675 = vld [vmem:[%s211 + $0x100] sm:$0x1]
      %v1676 = vld [vmem:[%s211 + $0x114] sm:$0x1]
      %v1677 = vld [vmem:[%s211 + $0x128] sm:$0x1]
      %v1678 = vld [vmem:[%s211 + $0x13c] sm:$0x1]
      %v1679 = vld [vmem:[%s211] sm:$0xe]
      %v1680 = vld [vmem:[%s211 + $0x14] sm:$0xe]
      %v1681 = vld [vmem:[%s211 + $0x28] sm:$0xe]
      %v1682 = vld [vmem:[%s211 + $0x3c] sm:$0xe]
      %v1683 = vld [vmem:[%s211 + $0x50] sm:$0xe]
      %v1684 = vld [vmem:[%s211 + $0x64] sm:$0xe]
      %v1685 = vld [vmem:[%s211 + $0x78] sm:$0xe]
      %v1686 = vld [vmem:[%s211 + $0x8c] sm:$0xe]
      %v1687 = vld [vmem:[%s211 + $0xa0] sm:$0xe]
      %v1688 = vld [vmem:[%s211 + $0xb4] sm:$0xe]
      %v1689 = vld [vmem:[%s211 + $0xc8] sm:$0xe]
      %v1690 = vld [vmem:[%s211 + $0xdc] sm:$0xe]
      %v1691 = vld [vmem:[%s211 + $0xf0] sm:$0xe]
      %v1692 = vld [vmem:[%s211 + $0x104] sm:$0xe]
      %v1693 = vld [vmem:[%s211 + $0x118] sm:$0xe]
      %v1694 = vld [vmem:[%s211 + $0x12c] sm:$0xe]
      %s1695 = scalar_lea.vmem [#allocation2], 40
      %v1696 = vld [vmem:[%s1695] sm:$0xf]
      %v1697 = vld [vmem:[%s1695 + $0x4] sm:$0xf]
      %v1698 = vld [vmem:[%s1695 + $0x8] sm:$0xf]
      %v1699 = vld [vmem:[%s1695 + $0xc] sm:$0xf]
      %v1700 = vld [vmem:[%s1695 + $0x14] sm:$0xf]
      %v1701 = vld [vmem:[%s1695 + $0x18] sm:$0xf]
      %v1702 = vld [vmem:[%s1695 + $0x1c] sm:$0xf]
      %v1703 = vld [vmem:[%s1695 + $0x20] sm:$0xf]
      %v1704 = vld [vmem:[%s1695 + $0x28] sm:$0xf]
      %v1705 = vld [vmem:[%s1695 + $0x2c] sm:$0xf]
      %v1706 = vld [vmem:[%s1695 + $0x30] sm:$0xf]
      %v1707 = vld [vmem:[%s1695 + $0x34] sm:$0xf]
      %v1708 = vld [vmem:[%s1695 + $0x3c] sm:$0xf]
      %v1709 = vld [vmem:[%s1695 + $0x40] sm:$0xf]
      %v1710 = vld [vmem:[%s1695 + $0x44] sm:$0xf]
      %v1711 = vld [vmem:[%s1695 + $0x48] sm:$0xf]
      %v1712 = vld [vmem:[%s1695 + $0x50] sm:$0xf]
      %v1713 = vld [vmem:[%s1695 + $0x54] sm:$0xf]
      %v1714 = vld [vmem:[%s1695 + $0x58] sm:$0xf]
      %v1715 = vld [vmem:[%s1695 + $0x5c] sm:$0xf]
      %v1716 = vld [vmem:[%s1695 + $0x64] sm:$0xf]
      %v1717 = vld [vmem:[%s1695 + $0x68] sm:$0xf]
      %v1718 = vld [vmem:[%s1695 + $0x6c] sm:$0xf]
      %v1719 = vld [vmem:[%s1695 + $0x70] sm:$0xf]
      %v1720 = vld [vmem:[%s1695 + $0x78] sm:$0xf]
      %v1721 = vld [vmem:[%s1695 + $0x7c] sm:$0xf]
      %v1722 = vld [vmem:[%s1695 + $0x80] sm:$0xf]
      %v1723 = vld [vmem:[%s1695 + $0x84] sm:$0xf]
      %v1724 = vld [vmem:[%s1695 + $0x8c] sm:$0xf]
      %v1725 = vld [vmem:[%s1695 + $0x90] sm:$0xf]
      %v1726 = vld [vmem:[%s1695 + $0x94] sm:$0xf]
      %v1727 = vld [vmem:[%s1695 + $0x98] sm:$0xf]
      %v1728 = vld [vmem:[%s1695 + $0xa0] sm:$0xf]
      %v1729 = vld [vmem:[%s1695 + $0xa4] sm:$0xf]
      %v1730 = vld [vmem:[%s1695 + $0xa8] sm:$0xf]
      %v1731 = vld [vmem:[%s1695 + $0xac] sm:$0xf]
      %v1732 = vld [vmem:[%s1695 + $0xb4] sm:$0xf]
      %v1733 = vld [vmem:[%s1695 + $0xb8] sm:$0xf]
      %v1734 = vld [vmem:[%s1695 + $0xbc] sm:$0xf]
      %v1735 = vld [vmem:[%s1695 + $0xc0] sm:$0xf]
      %v1736 = vld [vmem:[%s1695 + $0xc8] sm:$0xf]
      %v1737 = vld [vmem:[%s1695 + $0xcc] sm:$0xf]
      %v1738 = vld [vmem:[%s1695 + $0xd0] sm:$0xf]
      %v1739 = vld [vmem:[%s1695 + $0xd4] sm:$0xf]
      %v1740 = vld [vmem:[%s1695 + $0xdc] sm:$0xf]
      %v1741 = vld [vmem:[%s1695 + $0xe0] sm:$0xf]
      %v1742 = vld [vmem:[%s1695 + $0xe4] sm:$0xf]
      %v1743 = vld [vmem:[%s1695 + $0xe8] sm:$0xf]
      %v1744 = vld [vmem:[%s1695 + $0xf0] sm:$0xf]
      %v1745 = vld [vmem:[%s1695 + $0xf4] sm:$0xf]
      %v1746 = vld [vmem:[%s1695 + $0xf8] sm:$0xf]
      %v1747 = vld [vmem:[%s1695 + $0xfc] sm:$0xf]
      %v1748 = vld [vmem:[%s1695 + $0x104] sm:$0xf]
      %v1749 = vld [vmem:[%s1695 + $0x108] sm:$0xf]
      %v1750 = vld [vmem:[%s1695 + $0x10c] sm:$0xf]
      %v1751 = vld [vmem:[%s1695 + $0x110] sm:$0xf]
      %v1752 = vld [vmem:[%s1695 + $0x118] sm:$0xf]
      %v1753 = vld [vmem:[%s1695 + $0x11c] sm:$0xf]
      %v1754 = vld [vmem:[%s1695 + $0x120] sm:$0xf]
      %v1755 = vld [vmem:[%s1695 + $0x124] sm:$0xf]
      %v1756 = vld [vmem:[%s1695 + $0x12c] sm:$0xf]
      %v1757 = vld [vmem:[%s1695 + $0x130] sm:$0xf]
      %v1758 = vld [vmem:[%s1695 + $0x134] sm:$0xf]
      %v1759 = vld [vmem:[%s1695 + $0x138] sm:$0xf]
      %v1760 = vld [vmem:[%s1695 + $0x10] sm:$0x1]
      %v1761 = vld [vmem:[%s1695 + $0x24] sm:$0x1]
      %v1762 = vld [vmem:[%s1695 + $0x38] sm:$0x1]
      %v1763 = vld [vmem:[%s1695 + $0x4c] sm:$0x1]
      %v1764 = vld [vmem:[%s1695 + $0x60] sm:$0x1]
      %v1765 = vld [vmem:[%s1695 + $0x74] sm:$0x1]
      %v1766 = vld [vmem:[%s1695 + $0x88] sm:$0x1]
      %v1767 = vld [vmem:[%s1695 + $0x9c] sm:$0x1]
      %v1768 = vld [vmem:[%s1695 + $0xb0] sm:$0x1]
      %v1769 = vld [vmem:[%s1695 + $0xc4] sm:$0x1]
      %v1770 = vld [vmem:[%s1695 + $0xd8] sm:$0x1]
      %v1771 = vld [vmem:[%s1695 + $0xec] sm:$0x1]
      %v1772 = vld [vmem:[%s1695 + $0x100] sm:$0x1]
      %v1773 = vld [vmem:[%s1695 + $0x114] sm:$0x1]
      %v1774 = vld [vmem:[%s1695 + $0x128] sm:$0x1]
      %v1775 = vld [vmem:[%s1695 + $0x13c] sm:$0x1]
      %v1776 = vld [vmem:[%s1695] sm:$0xe]
      %v1777 = vld [vmem:[%s1695 + $0x14] sm:$0xe]
      %v1778 = vld [vmem:[%s1695 + $0x28] sm:$0xe]
      %v1779 = vld [vmem:[%s1695 + $0x3c] sm:$0xe]
      %v1780 = vld [vmem:[%s1695 + $0x50] sm:$0xe]
      %v1781 = vld [vmem:[%s1695 + $0x64] sm:$0xe]
      %v1782 = vld [vmem:[%s1695 + $0x78] sm:$0xe]
      %v1783 = vld [vmem:[%s1695 + $0x8c] sm:$0xe]
      %v1784 = vld [vmem:[%s1695 + $0xa0] sm:$0xe]
      %v1785 = vld [vmem:[%s1695 + $0xb4] sm:$0xe]
      %v1786 = vld [vmem:[%s1695 + $0xc8] sm:$0xe]
      %v1787 = vld [vmem:[%s1695 + $0xdc] sm:$0xe]
      %v1788 = vld [vmem:[%s1695 + $0xf0] sm:$0xe]
      %v1789 = vld [vmem:[%s1695 + $0x104] sm:$0xe]
      %v1790 = vld [vmem:[%s1695 + $0x118] sm:$0xe]
      %v1791 = vld [vmem:[%s1695 + $0x12c] sm:$0xe]
      %v1856 = vunpack.c.l.b16 %v1503
      %v1857 = vunpack.c.l.b16 %v1504
      %v1858 = vunpack.c.l.b16 %v1505
      %v1859 = vunpack.c.l.b16 %v1506
      %v1860 = vunpack.c.l.b16 %v1507
      %v1861 = vunpack.c.l.b16 %v1508
      %v1862 = vunpack.c.l.b16 %v1509
      %v1863 = vunpack.c.l.b16 %v1510
      %v1864 = vunpack.c.l.b16 %v1511
      %v1865 = vunpack.c.l.b16 %v1512
      %v1866 = vunpack.c.l.b16 %v1513
      %v1867 = vunpack.c.l.b16 %v1514
      %v1868 = vunpack.c.l.b16 %v1515
      %v1869 = vunpack.c.l.b16 %v1516
      %v1870 = vunpack.c.l.b16 %v1517
      %v1871 = vunpack.c.l.b16 %v1518
      %v1872 = vunpack.c.l.b16 %v1519
      %v1873 = vunpack.c.l.b16 %v1520
      %v1874 = vunpack.c.l.b16 %v1521
      %v1875 = vunpack.c.l.b16 %v1522
      %v1876 = vunpack.c.l.b16 %v1523
      %v1877 = vunpack.c.l.b16 %v1524
      %v1878 = vunpack.c.l.b16 %v1525
      %v1879 = vunpack.c.l.b16 %v1526
      %v1880 = vunpack.c.l.b16 %v1527
      %v1881 = vunpack.c.l.b16 %v1528
      %v1882 = vunpack.c.l.b16 %v1529
      %v1883 = vunpack.c.l.b16 %v1530
      %v1884 = vunpack.c.l.b16 %v1531
      %v1885 = vunpack.c.l.b16 %v1532
      %v1886 = vunpack.c.l.b16 %v1533
      %v1887 = vunpack.c.l.b16 %v1534
      %v1888 = vunpack.c.l.b16 %v1535
      %v1889 = vunpack.c.l.b16 %v1536
      %v1890 = vunpack.c.l.b16 %v1537
      %v1891 = vunpack.c.l.b16 %v1538
      %v1892 = vunpack.c.l.b16 %v1539
      %v1893 = vunpack.c.l.b16 %v1540
      %v1894 = vunpack.c.l.b16 %v1541
      %v1895 = vunpack.c.l.b16 %v1542
      %v1896 = vunpack.c.l.b16 %v1543
      %v1897 = vunpack.c.l.b16 %v1544
      %v1898 = vunpack.c.l.b16 %v1545
      %v1899 = vunpack.c.l.b16 %v1546
      %v1900 = vunpack.c.l.b16 %v1547
      %v1901 = vunpack.c.l.b16 %v1548
      %v1902 = vunpack.c.l.b16 %v1549
      %v1903 = vunpack.c.l.b16 %v1550
      %v1904 = vunpack.c.l.b16 %v1551
      %v1905 = vunpack.c.l.b16 %v1552
      %v1906 = vunpack.c.l.b16 %v1553
      %v1907 = vunpack.c.l.b16 %v1554
      %v1908 = vunpack.c.l.b16 %v1555
      %v1909 = vunpack.c.l.b16 %v1556
      %v1910 = vunpack.c.l.b16 %v1557
      %v1911 = vunpack.c.l.b16 %v1558
      %v1912 = vunpack.c.l.b16 %v1559
      %v1913 = vunpack.c.l.b16 %v1560
      %v1914 = vunpack.c.l.b16 %v1561
      %v1915 = vunpack.c.l.b16 %v1562
      %v1916 = vunpack.c.l.b16 %v1563
      %v1917 = vunpack.c.l.b16 %v1564
      %v1918 = vunpack.c.l.b16 %v1565
      %v1919 = vunpack.c.l.b16 %v1566
      %v1920 = vpack.c.b16 %v1857, %v1856
      %v1921 = vpack.c.b16 %v1859, %v1858
      %v1922 = vpack.c.b16 %v1861, %v1860
      %v1923 = vpack.c.b16 %v1863, %v1862
      %v1924 = vpack.c.b16 %v1865, %v1864
      %v1925 = vpack.c.b16 %v1867, %v1866
      %v1926 = vpack.c.b16 %v1869, %v1868
      %v1927 = vpack.c.b16 %v1871, %v1870
      %v1928 = vpack.c.b16 %v1873, %v1872
      %v1929 = vpack.c.b16 %v1875, %v1874
      %v1930 = vpack.c.b16 %v1877, %v1876
      %v1931 = vpack.c.b16 %v1879, %v1878
      %v1932 = vpack.c.b16 %v1881, %v1880
      %v1933 = vpack.c.b16 %v1883, %v1882
      %v1934 = vpack.c.b16 %v1885, %v1884
      %v1935 = vpack.c.b16 %v1887, %v1886
      %v1936 = vpack.c.b16 %v1889, %v1888
      %v1937 = vpack.c.b16 %v1891, %v1890
      %v1938 = vpack.c.b16 %v1893, %v1892
      %v1939 = vpack.c.b16 %v1895, %v1894
      %v1940 = vpack.c.b16 %v1897, %v1896
      %v1941 = vpack.c.b16 %v1899, %v1898
      %v1942 = vpack.c.b16 %v1901, %v1900
      %v1943 = vpack.c.b16 %v1903, %v1902
      %v1944 = vpack.c.b16 %v1905, %v1904
      %v1945 = vpack.c.b16 %v1907, %v1906
      %v1946 = vpack.c.b16 %v1909, %v1908
      %v1947 = vpack.c.b16 %v1911, %v1910
      %v1948 = vpack.c.b16 %v1913, %v1912
      %v1949 = vpack.c.b16 %v1915, %v1914
      %v1950 = vpack.c.b16 %v1917, %v1916
      %v1951 = vpack.c.b16 %v1919, %v1918
      %v1968 = vunpack.c.l.b16 %v1567
      %v1969 = vunpack.c.l.b16 %v1568
      %v1970 = vunpack.c.l.b16 %v1569
      %v1971 = vunpack.c.l.b16 %v1570
      %v1972 = vunpack.c.l.b16 %v1571
      %v1973 = vunpack.c.l.b16 %v1572
      %v1974 = vunpack.c.l.b16 %v1573
      %v1975 = vunpack.c.l.b16 %v1574
      %v1976 = vunpack.c.l.b16 %v1575
      %v1977 = vunpack.c.l.b16 %v1576
      %v1978 = vunpack.c.l.b16 %v1577
      %v1979 = vunpack.c.l.b16 %v1578
      %v1980 = vunpack.c.l.b16 %v1579
      %v1981 = vunpack.c.l.b16 %v1580
      %v1982 = vunpack.c.l.b16 %v1581
      %v1983 = vunpack.c.l.b16 %v1582
      %v1984 = vpack.c.b16 %v1968, %v1968
      %v1985 = vpack.c.b16 %v1969, %v1969
      %v1986 = vpack.c.b16 %v1970, %v1970
      %v1987 = vpack.c.b16 %v1971, %v1971
      %v1988 = vpack.c.b16 %v1972, %v1972
      %v1989 = vpack.c.b16 %v1973, %v1973
      %v1990 = vpack.c.b16 %v1974, %v1974
      %v1991 = vpack.c.b16 %v1975, %v1975
      %v1992 = vpack.c.b16 %v1976, %v1976
      %v1993 = vpack.c.b16 %v1977, %v1977
      %v1994 = vpack.c.b16 %v1978, %v1978
      %v1995 = vpack.c.b16 %v1979, %v1979
      %v1996 = vpack.c.b16 %v1980, %v1980
      %v1997 = vpack.c.b16 %v1981, %v1981
      %v1998 = vpack.c.b16 %v1982, %v1982
      %v1999 = vpack.c.b16 %v1983, %v1983
      %vm2000 = vsmask.f32 7424
      %v2002 = vshrl.u32 %v1920, 16
      %v2004 = vshll.u32 %v1920, 16
      %v2006 = vrot.slane %v2004, 1
      %v2007 = vor.u32 %v2002, %v2006
      %v2009 = vshll.u32 %v1921, 16
      %v2011 = vrot.slane %v2009, 1
      %v2012 = vsel %vm2000, %v2007, %v2011
      %v2013 = vshrl.u32 %v1921, 16
      %v2015 = vor.u32 %v2013, %v2011
      %v2017 = vshll.u32 %v1984, 16
      %v2019 = vrot.slane %v2017, 1
      %v2020 = vsel %vm2000, %v2015, %v2019
      %v2022 = vshrl.u32 %v1922, 16
      %v2024 = vshll.u32 %v1922, 16
      %v2026 = vrot.slane %v2024, 1
      %v2027 = vor.u32 %v2022, %v2026
      %v2029 = vshll.u32 %v1923, 16
      %v2031 = vrot.slane %v2029, 1
      %v2032 = vsel %vm2000, %v2027, %v2031
      %v2033 = vshrl.u32 %v1923, 16
      %v2035 = vor.u32 %v2033, %v2031
      %v2037 = vshll.u32 %v1985, 16
      %v2039 = vrot.slane %v2037, 1
      %v2040 = vsel %vm2000, %v2035, %v2039
      %v2042 = vshrl.u32 %v1924, 16
      %v2044 = vshll.u32 %v1924, 16
      %v2046 = vrot.slane %v2044, 1
      %v2047 = vor.u32 %v2042, %v2046
      %v2049 = vshll.u32 %v1925, 16
      %v2051 = vrot.slane %v2049, 1
      %v2052 = vsel %vm2000, %v2047, %v2051
      %v2053 = vshrl.u32 %v1925, 16
      %v2055 = vor.u32 %v2053, %v2051
      %v2057 = vshll.u32 %v1986, 16
      %v2059 = vrot.slane %v2057, 1
      %v2060 = vsel %vm2000, %v2055, %v2059
      %v2062 = vshrl.u32 %v1926, 16
      %v2064 = vshll.u32 %v1926, 16
      %v2066 = vrot.slane %v2064, 1
      %v2067 = vor.u32 %v2062, %v2066
      %v2069 = vshll.u32 %v1927, 16
      %v2071 = vrot.slane %v2069, 1
      %v2072 = vsel %vm2000, %v2067, %v2071
      %v2073 = vshrl.u32 %v1927, 16
      %v2075 = vor.u32 %v2073, %v2071
      %v2077 = vshll.u32 %v1987, 16
      %v2079 = vrot.slane %v2077, 1
      %v2080 = vsel %vm2000, %v2075, %v2079
      %v2082 = vshrl.u32 %v1928, 16
      %v2084 = vshll.u32 %v1928, 16
      %v2086 = vrot.slane %v2084, 1
      %v2087 = vor.u32 %v2082, %v2086
      %v2089 = vshll.u32 %v1929, 16
      %v2091 = vrot.slane %v2089, 1
      %v2092 = vsel %vm2000, %v2087, %v2091
      %v2093 = vshrl.u32 %v1929, 16
      %v2095 = vor.u32 %v2093, %v2091
      %v2097 = vshll.u32 %v1988, 16
      %v2099 = vrot.slane %v2097, 1
      %v2100 = vsel %vm2000, %v2095, %v2099
      %v2102 = vshrl.u32 %v1930, 16
      %v2104 = vshll.u32 %v1930, 16
      %v2106 = vrot.slane %v2104, 1
      %v2107 = vor.u32 %v2102, %v2106
      %v2109 = vshll.u32 %v1931, 16
      %v2111 = vrot.slane %v2109, 1
      %v2112 = vsel %vm2000, %v2107, %v2111
      %v2113 = vshrl.u32 %v1931, 16
      %v2115 = vor.u32 %v2113, %v2111
      %v2117 = vshll.u32 %v1989, 16
      %v2119 = vrot.slane %v2117, 1
      %v2120 = vsel %vm2000, %v2115, %v2119
      %v2122 = vshrl.u32 %v1932, 16
      %v2124 = vshll.u32 %v1932, 16
      %v2126 = vrot.slane %v2124, 1
      %v2127 = vor.u32 %v2122, %v2126
      %v2129 = vshll.u32 %v1933, 16
      %v2131 = vrot.slane %v2129, 1
      %v2132 = vsel %vm2000, %v2127, %v2131
      %v2133 = vshrl.u32 %v1933, 16
      %v2135 = vor.u32 %v2133, %v2131
      %v2137 = vshll.u32 %v1990, 16
      %v2139 = vrot.slane %v2137, 1
      %v2140 = vsel %vm2000, %v2135, %v2139
      %v2142 = vshrl.u32 %v1934, 16
      %v2144 = vshll.u32 %v1934, 16
      %v2146 = vrot.slane %v2144, 1
      %v2147 = vor.u32 %v2142, %v2146
      %v2149 = vshll.u32 %v1935, 16
      %v2151 = vrot.slane %v2149, 1
      %v2152 = vsel %vm2000, %v2147, %v2151
      %v2153 = vshrl.u32 %v1935, 16
      %v2155 = vor.u32 %v2153, %v2151
      %v2157 = vshll.u32 %v1991, 16
      %v2159 = vrot.slane %v2157, 1
      %v2160 = vsel %vm2000, %v2155, %v2159
      %v2162 = vshrl.u32 %v1936, 16
      %v2164 = vshll.u32 %v1936, 16
      %v2166 = vrot.slane %v2164, 1
      %v2167 = vor.u32 %v2162, %v2166
      %v2169 = vshll.u32 %v1937, 16
      %v2171 = vrot.slane %v2169, 1
      %v2172 = vsel %vm2000, %v2167, %v2171
      %v2173 = vshrl.u32 %v1937, 16
      %v2175 = vor.u32 %v2173, %v2171
      %v2177 = vshll.u32 %v1992, 16
      %v2179 = vrot.slane %v2177, 1
      %v2180 = vsel %vm2000, %v2175, %v2179
      %v2182 = vshrl.u32 %v1938, 16
      %v2184 = vshll.u32 %v1938, 16
      %v2186 = vrot.slane %v2184, 1
      %v2187 = vor.u32 %v2182, %v2186
      %v2189 = vshll.u32 %v1939, 16
      %v2191 = vrot.slane %v2189, 1
      %v2192 = vsel %vm2000, %v2187, %v2191
      %v2193 = vshrl.u32 %v1939, 16
      %v2195 = vor.u32 %v2193, %v2191
      %v2197 = vshll.u32 %v1993, 16
      %v2199 = vrot.slane %v2197, 1
      %v2200 = vsel %vm2000, %v2195, %v2199
      %v2202 = vshrl.u32 %v1940, 16
      %v2204 = vshll.u32 %v1940, 16
      %v2206 = vrot.slane %v2204, 1
      %v2207 = vor.u32 %v2202, %v2206
      %v2209 = vshll.u32 %v1941, 16
      %v2211 = vrot.slane %v2209, 1
      %v2212 = vsel %vm2000, %v2207, %v2211
      %v2213 = vshrl.u32 %v1941, 16
      %v2215 = vor.u32 %v2213, %v2211
      %v2217 = vshll.u32 %v1994, 16
      %v2219 = vrot.slane %v2217, 1
      %v2220 = vsel %vm2000, %v2215, %v2219
      %v2222 = vshrl.u32 %v1942, 16
      %v2224 = vshll.u32 %v1942, 16
      %v2226 = vrot.slane %v2224, 1
      %v2227 = vor.u32 %v2222, %v2226
      %v2229 = vshll.u32 %v1943, 16
      %v2231 = vrot.slane %v2229, 1
      %v2232 = vsel %vm2000, %v2227, %v2231
      %v2233 = vshrl.u32 %v1943, 16
      %v2235 = vor.u32 %v2233, %v2231
      %v2237 = vshll.u32 %v1995, 16
      %v2239 = vrot.slane %v2237, 1
      %v2240 = vsel %vm2000, %v2235, %v2239
      %v2242 = vshrl.u32 %v1944, 16
      %v2244 = vshll.u32 %v1944, 16
      %v2246 = vrot.slane %v2244, 1
      %v2247 = vor.u32 %v2242, %v2246
      %v2249 = vshll.u32 %v1945, 16
      %v2251 = vrot.slane %v2249, 1
      %v2252 = vsel %vm2000, %v2247, %v2251
      %v2253 = vshrl.u32 %v1945, 16
      %v2255 = vor.u32 %v2253, %v2251
      %v2257 = vshll.u32 %v1996, 16
      %v2259 = vrot.slane %v2257, 1
      %v2260 = vsel %vm2000, %v2255, %v2259
      %v2262 = vshrl.u32 %v1946, 16
      %v2264 = vshll.u32 %v1946, 16
      %v2266 = vrot.slane %v2264, 1
      %v2267 = vor.u32 %v2262, %v2266
      %v2269 = vshll.u32 %v1947, 16
      %v2271 = vrot.slane %v2269, 1
      %v2272 = vsel %vm2000, %v2267, %v2271
      %v2273 = vshrl.u32 %v1947, 16
      %v2275 = vor.u32 %v2273, %v2271
      %v2277 = vshll.u32 %v1997, 16
      %v2279 = vrot.slane %v2277, 1
      %v2280 = vsel %vm2000, %v2275, %v2279
      %v2282 = vshrl.u32 %v1948, 16
      %v2284 = vshll.u32 %v1948, 16
      %v2286 = vrot.slane %v2284, 1
      %v2287 = vor.u32 %v2282, %v2286
      %v2289 = vshll.u32 %v1949, 16
      %v2291 = vrot.slane %v2289, 1
      %v2292 = vsel %vm2000, %v2287, %v2291
      %v2293 = vshrl.u32 %v1949, 16
      %v2295 = vor.u32 %v2293, %v2291
      %v2297 = vshll.u32 %v1998, 16
      %v2299 = vrot.slane %v2297, 1
      %v2300 = vsel %vm2000, %v2295, %v2299
      %v2302 = vshrl.u32 %v1950, 16
      %v2304 = vshll.u32 %v1950, 16
      %v2306 = vrot.slane %v2304, 1
      %v2307 = vor.u32 %v2302, %v2306
      %v2309 = vshll.u32 %v1951, 16
      %v2311 = vrot.slane %v2309, 1
      %v2312 = vsel %vm2000, %v2307, %v2311
      %v2313 = vshrl.u32 %v1951, 16
      %v2315 = vor.u32 %v2313, %v2311
      %v2317 = vshll.u32 %v1999, 16
      %v2319 = vrot.slane %v2317, 1
      %v2320 = vsel %vm2000, %v2315, %v2319
      %2321 = vrot.lane.b32.xlu0 %v2012, 3
      %v2322 = vpop.permute.xlu0 %2321
      %2323 = vrot.lane.b32.xlu0 %v2020, 3
      %v2324 = vpop.permute.xlu0 %2323
      %2325 = vrot.lane.b32.xlu0 %v2032, 3
      %v2326 = vpop.permute.xlu0 %2325
      %2327 = vrot.lane.b32.xlu0 %v2040, 3
      %v2328 = vpop.permute.xlu0 %2327
      %2329 = vrot.lane.b32.xlu0 %v2052, 3
      %v2330 = vpop.permute.xlu0 %2329
      %2331 = vrot.lane.b32.xlu0 %v2060, 3
      %v2332 = vpop.permute.xlu0 %2331
      %2333 = vrot.lane.b32.xlu0 %v2072, 3
      %v2334 = vpop.permute.xlu0 %2333
      %2335 = vrot.lane.b32.xlu0 %v2080, 3
      %v2336 = vpop.permute.xlu0 %2335
      %2337 = vrot.lane.b32.xlu0 %v2092, 3
      %v2338 = vpop.permute.xlu0 %2337
      %2339 = vrot.lane.b32.xlu0 %v2100, 3
      %v2340 = vpop.permute.xlu0 %2339
      %2341 = vrot.lane.b32.xlu0 %v2112, 3
      %v2342 = vpop.permute.xlu0 %2341
      %2343 = vrot.lane.b32.xlu0 %v2120, 3
      %v2344 = vpop.permute.xlu0 %2343
      %2345 = vrot.lane.b32.xlu0 %v2132, 3
      %v2346 = vpop.permute.xlu0 %2345
      %2347 = vrot.lane.b32.xlu0 %v2140, 3
      %v2348 = vpop.permute.xlu0 %2347
      %2349 = vrot.lane.b32.xlu0 %v2152, 3
      %v2350 = vpop.permute.xlu0 %2349
      %2351 = vrot.lane.b32.xlu0 %v2160, 3
      %v2352 = vpop.permute.xlu0 %2351
      %2353 = vrot.lane.b32.xlu0 %v2172, 3
      %v2354 = vpop.permute.xlu0 %2353
      %2355 = vrot.lane.b32.xlu0 %v2180, 3
      %v2356 = vpop.permute.xlu0 %2355
      %2357 = vrot.lane.b32.xlu0 %v2192, 3
      %v2358 = vpop.permute.xlu0 %2357
      %2359 = vrot.lane.b32.xlu0 %v2200, 3
      %v2360 = vpop.permute.xlu0 %2359
      %2361 = vrot.lane.b32.xlu0 %v2212, 3
      %v2362 = vpop.permute.xlu0 %2361
      %2363 = vrot.lane.b32.xlu0 %v2220, 3
      %v2364 = vpop.permute.xlu0 %2363
      %2365 = vrot.lane.b32.xlu0 %v2232, 3
      %v2366 = vpop.permute.xlu0 %2365
      %2367 = vrot.lane.b32.xlu0 %v2240, 3
      %v2368 = vpop.permute.xlu0 %2367
      %2369 = vrot.lane.b32.xlu0 %v2252, 3
      %v2370 = vpop.permute.xlu0 %2369
      %2371 = vrot.lane.b32.xlu0 %v2260, 3
      %v2372 = vpop.permute.xlu0 %2371
      %2373 = vrot.lane.b32.xlu0 %v2272, 3
      %v2374 = vpop.permute.xlu0 %2373
      %2375 = vrot.lane.b32.xlu0 %v2280, 3
      %v2376 = vpop.permute.xlu0 %2375
      %2377 = vrot.lane.b32.xlu0 %v2292, 3
      %v2378 = vpop.permute.xlu0 %2377
      %2379 = vrot.lane.b32.xlu0 %v2300, 3
      %v2380 = vpop.permute.xlu0 %2379
      %2381 = vrot.lane.b32.xlu0 %v2312, 3
      %v2382 = vpop.permute.xlu0 %2381
      %2383 = vrot.lane.b32.xlu0 %v2320, 3
      %v2384 = vpop.permute.xlu0 %2383
      %v2401 = vunpack.c.l.b16 %v1583
      %v2402 = vunpack.c.l.b16 %v1584
      %v2403 = vunpack.c.l.b16 %v1585
      %v2404 = vunpack.c.l.b16 %v1586
      %v2405 = vunpack.c.l.b16 %v1587
      %v2406 = vunpack.c.l.b16 %v1588
      %v2407 = vunpack.c.l.b16 %v1589
      %v2408 = vunpack.c.l.b16 %v1590
      %v2409 = vunpack.c.l.b16 %v1591
      %v2410 = vunpack.c.l.b16 %v1592
      %v2411 = vunpack.c.l.b16 %v1593
      %v2412 = vunpack.c.l.b16 %v1594
      %v2413 = vunpack.c.l.b16 %v1595
      %v2414 = vunpack.c.l.b16 %v1596
      %v2415 = vunpack.c.l.b16 %v1597
      %v2416 = vunpack.c.l.b16 %v1598
      %v2417 = vpack.c.b16 %v1857, %v2401
      %v2418 = vpack.c.b16 %v1861, %v2402
      %v2419 = vpack.c.b16 %v1865, %v2403
      %v2420 = vpack.c.b16 %v1869, %v2404
      %v2421 = vpack.c.b16 %v1873, %v2405
      %v2422 = vpack.c.b16 %v1877, %v2406
      %v2423 = vpack.c.b16 %v1881, %v2407
      %v2424 = vpack.c.b16 %v1885, %v2408
      %v2425 = vpack.c.b16 %v1889, %v2409
      %v2426 = vpack.c.b16 %v1893, %v2410
      %v2427 = vpack.c.b16 %v1897, %v2411
      %v2428 = vpack.c.b16 %v1901, %v2412
      %v2429 = vpack.c.b16 %v1905, %v2413
      %v2430 = vpack.c.b16 %v1909, %v2414
      %v2431 = vpack.c.b16 %v1913, %v2415
      %v2432 = vpack.c.b16 %v1917, %v2416
      %vm2433 = vcmask 1046528
      %v2434 = vrot.slane %v2417, 1
      %v2435 = vrot.slane %v1921, 1
      %v2436 = vsel %vm2433, %v2434, %v2435
      %v2437 = vrot.slane %v1984, 1
      %v2438 = vsel %vm2433, %v2435, %v2437
      %v2439 = vrot.slane %v2418, 1
      %v2440 = vrot.slane %v1923, 1
      %v2441 = vsel %vm2433, %v2439, %v2440
      %v2442 = vrot.slane %v1985, 1
      %v2443 = vsel %vm2433, %v2440, %v2442
      %v2444 = vrot.slane %v2419, 1
      %v2445 = vrot.slane %v1925, 1
      %v2446 = vsel %vm2433, %v2444, %v2445
      %v2447 = vrot.slane %v1986, 1
      %v2448 = vsel %vm2433, %v2445, %v2447
      %v2449 = vrot.slane %v2420, 1
      %v2450 = vrot.slane %v1927, 1
      %v2451 = vsel %vm2433, %v2449, %v2450
      %v2452 = vrot.slane %v1987, 1
      %v2453 = vsel %vm2433, %v2450, %v2452
      %v2454 = vrot.slane %v2421, 1
      %v2455 = vrot.slane %v1929, 1
      %v2456 = vsel %vm2433, %v2454, %v2455
      %v2457 = vrot.slane %v1988, 1
      %v2458 = vsel %vm2433, %v2455, %v2457
      %v2459 = vrot.slane %v2422, 1
      %v2460 = vrot.slane %v1931, 1
      %v2461 = vsel %vm2433, %v2459, %v2460
      %v2462 = vrot.slane %v1989, 1
      %v2463 = vsel %vm2433, %v2460, %v2462
      %v2464 = vrot.slane %v2423, 1
      %v2465 = vrot.slane %v1933, 1
      %v2466 = vsel %vm2433, %v2464, %v2465
      %v2467 = vrot.slane %v1990, 1
      %v2468 = vsel %vm2433, %v2465, %v2467
      %v2469 = vrot.slane %v2424, 1
      %v2470 = vrot.slane %v1935, 1
      %v2471 = vsel %vm2433, %v2469, %v2470
      %v2472 = vrot.slane %v1991, 1
      %v2473 = vsel %vm2433, %v2470, %v2472
      %v2474 = vrot.slane %v2425, 1
      %v2475 = vrot.slane %v1937, 1
      %v2476 = vsel %vm2433, %v2474, %v2475
      %v2477 = vrot.slane %v1992, 1
      %v2478 = vsel %vm2433, %v2475, %v2477
      %v2479 = vrot.slane %v2426, 1
      %v2480 = vrot.slane %v1939, 1
      %v2481 = vsel %vm2433, %v2479, %v2480
      %v2482 = vrot.slane %v1993, 1
      %v2483 = vsel %vm2433, %v2480, %v2482
      %v2484 = vrot.slane %v2427, 1
      %v2485 = vrot.slane %v1941, 1
      %v2486 = vsel %vm2433, %v2484, %v2485
      %v2487 = vrot.slane %v1994, 1
      %v2488 = vsel %vm2433, %v2485, %v2487
      %v2489 = vrot.slane %v2428, 1
      %v2490 = vrot.slane %v1943, 1
      %v2491 = vsel %vm2433, %v2489, %v2490
      %v2492 = vrot.slane %v1995, 1
      %v2493 = vsel %vm2433, %v2490, %v2492
      %v2494 = vrot.slane %v2429, 1
      %v2495 = vrot.slane %v1945, 1
      %v2496 = vsel %vm2433, %v2494, %v2495
      %v2497 = vrot.slane %v1996, 1
      %v2498 = vsel %vm2433, %v2495, %v2497
      %v2499 = vrot.slane %v2430, 1
      %v2500 = vrot.slane %v1947, 1
      %v2501 = vsel %vm2433, %v2499, %v2500
      %v2502 = vrot.slane %v1997, 1
      %v2503 = vsel %vm2433, %v2500, %v2502
      %v2504 = vrot.slane %v2431, 1
      %v2505 = vrot.slane %v1949, 1
      %v2506 = vsel %vm2433, %v2504, %v2505
      %v2507 = vrot.slane %v1998, 1
      %v2508 = vsel %vm2433, %v2505, %v2507
      %v2509 = vrot.slane %v2432, 1
      %v2510 = vrot.slane %v1951, 1
      %v2511 = vsel %vm2433, %v2509, %v2510
      %v2512 = vrot.slane %v1999, 1
      %v2513 = vsel %vm2433, %v2510, %v2512
      %2514 = vrot.lane.b32.xlu0 %v2436, 6
      %v2515 = vpop.permute.xlu0 %2514
      %2516 = vrot.lane.b32.xlu0 %v2438, 6
      %v2517 = vpop.permute.xlu0 %2516
      %2518 = vrot.lane.b32.xlu0 %v2441, 6
      %v2519 = vpop.permute.xlu0 %2518
      %2520 = vrot.lane.b32.xlu0 %v2443, 6
      %v2521 = vpop.permute.xlu0 %2520
      %2522 = vrot.lane.b32.xlu0 %v2446, 6
      %v2523 = vpop.permute.xlu0 %2522
      %2524 = vrot.lane.b32.xlu0 %v2448, 6
      %v2525 = vpop.permute.xlu0 %2524
      %2526 = vrot.lane.b32.xlu0 %v2451, 6
      %v2527 = vpop.permute.xlu0 %2526
      %2528 = vrot.lane.b32.xlu0 %v2453, 6
      %v2529 = vpop.permute.xlu0 %2528
      %2530 = vrot.lane.b32.xlu0 %v2456, 6
      %v2531 = vpop.permute.xlu0 %2530
      %2532 = vrot.lane.b32.xlu0 %v2458, 6
      %v2533 = vpop.permute.xlu0 %2532
      %2534 = vrot.lane.b32.xlu0 %v2461, 6
      %v2535 = vpop.permute.xlu0 %2534
      %2536 = vrot.lane.b32.xlu0 %v2463, 6
      %v2537 = vpop.permute.xlu0 %2536
      %2538 = vrot.lane.b32.xlu0 %v2466, 6
      %v2539 = vpop.permute.xlu0 %2538
      %2540 = vrot.lane.b32.xlu0 %v2468, 6
      %v2541 = vpop.permute.xlu0 %2540
      %2542 = vrot.lane.b32.xlu0 %v2471, 6
      %v2543 = vpop.permute.xlu0 %2542
      %2544 = vrot.lane.b32.xlu0 %v2473, 6
      %v2545 = vpop.permute.xlu0 %2544
      %2546 = vrot.lane.b32.xlu0 %v2476, 6
      %v2547 = vpop.permute.xlu0 %2546
      %2548 = vrot.lane.b32.xlu0 %v2478, 6
      %v2549 = vpop.permute.xlu0 %2548
      %2550 = vrot.lane.b32.xlu0 %v2481, 6
      %v2551 = vpop.permute.xlu0 %2550
      %2552 = vrot.lane.b32.xlu0 %v2483, 6
      %v2553 = vpop.permute.xlu0 %2552
      %2554 = vrot.lane.b32.xlu0 %v2486, 6
      %v2555 = vpop.permute.xlu0 %2554
      %2556 = vrot.lane.b32.xlu0 %v2488, 6
      %v2557 = vpop.permute.xlu0 %2556
      %2558 = vrot.lane.b32.xlu0 %v2491, 6
      %v2559 = vpop.permute.xlu0 %2558
      %2560 = vrot.lane.b32.xlu0 %v2493, 6
      %v2561 = vpop.permute.xlu0 %2560
      %2562 = vrot.lane.b32.xlu0 %v2496, 6
      %v2563 = vpop.permute.xlu0 %2562
      %2564 = vrot.lane.b32.xlu0 %v2498, 6
      %v2565 = vpop.permute.xlu0 %2564
      %2566 = vrot.lane.b32.xlu0 %v2501, 6
      %v2567 = vpop.permute.xlu0 %2566
      %2568 = vrot.lane.b32.xlu0 %v2503, 6
      %v2569 = vpop.permute.xlu0 %2568
      %2570 = vrot.lane.b32.xlu0 %v2506, 6
      %v2571 = vpop.permute.xlu0 %2570
      %2572 = vrot.lane.b32.xlu0 %v2508, 6
      %v2573 = vpop.permute.xlu0 %2572
      %2574 = vrot.lane.b32.xlu0 %v2511, 6
      %v2575 = vpop.permute.xlu0 %2574
      %2576 = vrot.lane.b32.xlu0 %v2513, 6
      %v2577 = vpop.permute.xlu0 %2576
      %v2642 = vunpack.c.l.b16 %v1599
      %v2643 = vunpack.c.l.b16 %v1600
      %v2644 = vunpack.c.l.b16 %v1601
      %v2645 = vunpack.c.l.b16 %v1602
      %v2646 = vunpack.c.l.b16 %v1603
      %v2647 = vunpack.c.l.b16 %v1604
      %v2648 = vunpack.c.l.b16 %v1605
      %v2649 = vunpack.c.l.b16 %v1606
      %v2650 = vunpack.c.l.b16 %v1607
      %v2651 = vunpack.c.l.b16 %v1608
      %v2652 = vunpack.c.l.b16 %v1609
      %v2653 = vunpack.c.l.b16 %v1610
      %v2654 = vunpack.c.l.b16 %v1611
      %v2655 = vunpack.c.l.b16 %v1612
      %v2656 = vunpack.c.l.b16 %v1613
      %v2657 = vunpack.c.l.b16 %v1614
      %v2658 = vunpack.c.l.b16 %v1615
      %v2659 = vunpack.c.l.b16 %v1616
      %v2660 = vunpack.c.l.b16 %v1617
      %v2661 = vunpack.c.l.b16 %v1618
      %v2662 = vunpack.c.l.b16 %v1619
      %v2663 = vunpack.c.l.b16 %v1620
      %v2664 = vunpack.c.l.b16 %v1621
      %v2665 = vunpack.c.l.b16 %v1622
      %v2666 = vunpack.c.l.b16 %v1623
      %v2667 = vunpack.c.l.b16 %v1624
      %v2668 = vunpack.c.l.b16 %v1625
      %v2669 = vunpack.c.l.b16 %v1626
      %v2670 = vunpack.c.l.b16 %v1627
      %v2671 = vunpack.c.l.b16 %v1628
      %v2672 = vunpack.c.l.b16 %v1629
      %v2673 = vunpack.c.l.b16 %v1630
      %v2674 = vunpack.c.l.b16 %v1631
      %v2675 = vunpack.c.l.b16 %v1632
      %v2676 = vunpack.c.l.b16 %v1633
      %v2677 = vunpack.c.l.b16 %v1634
      %v2678 = vunpack.c.l.b16 %v1635
      %v2679 = vunpack.c.l.b16 %v1636
      %v2680 = vunpack.c.l.b16 %v1637
      %v2681 = vunpack.c.l.b16 %v1638
      %v2682 = vunpack.c.l.b16 %v1639
      %v2683 = vunpack.c.l.b16 %v1640
      %v2684 = vunpack.c.l.b16 %v1641
      %v2685 = vunpack.c.l.b16 %v1642
      %v2686 = vunpack.c.l.b16 %v1643
      %v2687 = vunpack.c.l.b16 %v1644
      %v2688 = vunpack.c.l.b16 %v1645
      %v2689 = vunpack.c.l.b16 %v1646
      %v2690 = vunpack.c.l.b16 %v1647
      %v2691 = vunpack.c.l.b16 %v1648
      %v2692 = vunpack.c.l.b16 %v1649
      %v2693 = vunpack.c.l.b16 %v1650
      %v2694 = vunpack.c.l.b16 %v1651
      %v2695 = vunpack.c.l.b16 %v1652
      %v2696 = vunpack.c.l.b16 %v1653
      %v2697 = vunpack.c.l.b16 %v1654
      %v2698 = vunpack.c.l.b16 %v1655
      %v2699 = vunpack.c.l.b16 %v1656
      %v2700 = vunpack.c.l.b16 %v1657
      %v2701 = vunpack.c.l.b16 %v1658
      %v2702 = vunpack.c.l.b16 %v1659
      %v2703 = vunpack.c.l.b16 %v1660
      %v2704 = vunpack.c.l.b16 %v1661
      %v2705 = vunpack.c.l.b16 %v1662
      %v2706 = vpack.c.b16 %v2643, %v2642
      %v2707 = vpack.c.b16 %v2645, %v2644
      %v2708 = vpack.c.b16 %v2647, %v2646
      %v2709 = vpack.c.b16 %v2649, %v2648
      %v2710 = vpack.c.b16 %v2651, %v2650
      %v2711 = vpack.c.b16 %v2653, %v2652
      %v2712 = vpack.c.b16 %v2655, %v2654
      %v2713 = vpack.c.b16 %v2657, %v2656
      %v2714 = vpack.c.b16 %v2659, %v2658
      %v2715 = vpack.c.b16 %v2661, %v2660
      %v2716 = vpack.c.b16 %v2663, %v2662
      %v2717 = vpack.c.b16 %v2665, %v2664
      %v2718 = vpack.c.b16 %v2667, %v2666
      %v2719 = vpack.c.b16 %v2669, %v2668
      %v2720 = vpack.c.b16 %v2671, %v2670
      %v2721 = vpack.c.b16 %v2673, %v2672
      %v2722 = vpack.c.b16 %v2675, %v2674
      %v2723 = vpack.c.b16 %v2677, %v2676
      %v2724 = vpack.c.b16 %v2679, %v2678
      %v2725 = vpack.c.b16 %v2681, %v2680
      %v2726 = vpack.c.b16 %v2683, %v2682
      %v2727 = vpack.c.b16 %v2685, %v2684
      %v2728 = vpack.c.b16 %v2687, %v2686
      %v2729 = vpack.c.b16 %v2689, %v2688
      %v2730 = vpack.c.b16 %v2691, %v2690
      %v2731 = vpack.c.b16 %v2693, %v2692
      %v2732 = vpack.c.b16 %v2695, %v2694
      %v2733 = vpack.c.b16 %v2697, %v2696
      %v2734 = vpack.c.b16 %v2699, %v2698
      %v2735 = vpack.c.b16 %v2701, %v2700
      %v2736 = vpack.c.b16 %v2703, %v2702
      %v2737 = vpack.c.b16 %v2705, %v2704
      %2738 = vrot.lane.b32.xlu0 %v2706, 9
      %v2739 = vpop.permute.xlu0 %2738
      %2740 = vrot.lane.b32.xlu0 %v2707, 9
      %v2741 = vpop.permute.xlu0 %2740
      %2742 = vrot.lane.b32.xlu0 %v2708, 9
      %v2743 = vpop.permute.xlu0 %2742
      %2744 = vrot.lane.b32.xlu0 %v2709, 9
      %v2745 = vpop.permute.xlu0 %2744
      %2746 = vrot.lane.b32.xlu0 %v2710, 9
      %v2747 = vpop.permute.xlu0 %2746
      %2748 = vrot.lane.b32.xlu0 %v2711, 9
      %v2749 = vpop.permute.xlu0 %2748
      %2750 = vrot.lane.b32.xlu0 %v2712, 9
      %v2751 = vpop.permute.xlu0 %2750
      %2752 = vrot.lane.b32.xlu0 %v2713, 9
      %v2753 = vpop.permute.xlu0 %2752
      %2754 = vrot.lane.b32.xlu0 %v2714, 9
      %v2755 = vpop.permute.xlu0 %2754
      %2756 = vrot.lane.b32.xlu0 %v2715, 9
      %v2757 = vpop.permute.xlu0 %2756
      %2758 = vrot.lane.b32.xlu0 %v2716, 9
      %v2759 = vpop.permute.xlu0 %2758
      %2760 = vrot.lane.b32.xlu0 %v2717, 9
      %v2761 = vpop.permute.xlu0 %2760
      %2762 = vrot.lane.b32.xlu0 %v2718, 9
      %v2763 = vpop.permute.xlu0 %2762
      %2764 = vrot.lane.b32.xlu0 %v2719, 9
      %v2765 = vpop.permute.xlu0 %2764
      %2766 = vrot.lane.b32.xlu0 %v2720, 9
      %v2767 = vpop.permute.xlu0 %2766
      %2768 = vrot.lane.b32.xlu0 %v2721, 9
      %v2769 = vpop.permute.xlu0 %2768
      %2770 = vrot.lane.b32.xlu0 %v2722, 9
      %v2771 = vpop.permute.xlu0 %2770
      %2772 = vrot.lane.b32.xlu0 %v2723, 9
      %v2773 = vpop.permute.xlu0 %2772
      %2774 = vrot.lane.b32.xlu0 %v2724, 9
      %v2775 = vpop.permute.xlu0 %2774
      %2776 = vrot.lane.b32.xlu0 %v2725, 9
      %v2777 = vpop.permute.xlu0 %2776
      %2778 = vrot.lane.b32.xlu0 %v2726, 9
      %v2779 = vpop.permute.xlu0 %2778
      %2780 = vrot.lane.b32.xlu0 %v2727, 9
      %v2781 = vpop.permute.xlu0 %2780
      %2782 = vrot.lane.b32.xlu0 %v2728, 9
      %v2783 = vpop.permute.xlu0 %2782
      %2784 = vrot.lane.b32.xlu0 %v2729, 9
      %v2785 = vpop.permute.xlu0 %2784
      %2786 = vrot.lane.b32.xlu0 %v2730, 9
      %v2787 = vpop.permute.xlu0 %2786
      %2788 = vrot.lane.b32.xlu0 %v2731, 9
      %v2789 = vpop.permute.xlu0 %2788
      %2790 = vrot.lane.b32.xlu0 %v2732, 9
      %v2791 = vpop.permute.xlu0 %2790
      %2792 = vrot.lane.b32.xlu0 %v2733, 9
      %v2793 = vpop.permute.xlu0 %2792
      %2794 = vrot.lane.b32.xlu0 %v2734, 9
      %v2795 = vpop.permute.xlu0 %2794
      %2796 = vrot.lane.b32.xlu0 %v2735, 9
      %v2797 = vpop.permute.xlu0 %2796
      %2798 = vrot.lane.b32.xlu0 %v2736, 9
      %v2799 = vpop.permute.xlu0 %2798
      %2800 = vrot.lane.b32.xlu0 %v2737, 9
      %v2801 = vpop.permute.xlu0 %2800
      %v2818 = vunpack.c.l.b16 %v1663
      %v2819 = vunpack.c.l.b16 %v1664
      %v2820 = vunpack.c.l.b16 %v1665
      %v2821 = vunpack.c.l.b16 %v1666
      %v2822 = vunpack.c.l.b16 %v1667
      %v2823 = vunpack.c.l.b16 %v1668
      %v2824 = vunpack.c.l.b16 %v1669
      %v2825 = vunpack.c.l.b16 %v1670
      %v2826 = vunpack.c.l.b16 %v1671
      %v2827 = vunpack.c.l.b16 %v1672
      %v2828 = vunpack.c.l.b16 %v1673
      %v2829 = vunpack.c.l.b16 %v1674
      %v2830 = vunpack.c.l.b16 %v1675
      %v2831 = vunpack.c.l.b16 %v1676
      %v2832 = vunpack.c.l.b16 %v1677
      %v2833 = vunpack.c.l.b16 %v1678
      %v2834 = vpack.c.b16 %v2818, %v2818
      %v2835 = vpack.c.b16 %v2819, %v2819
      %v2836 = vpack.c.b16 %v2820, %v2820
      %v2837 = vpack.c.b16 %v2821, %v2821
      %v2838 = vpack.c.b16 %v2822, %v2822
      %v2839 = vpack.c.b16 %v2823, %v2823
      %v2840 = vpack.c.b16 %v2824, %v2824
      %v2841 = vpack.c.b16 %v2825, %v2825
      %v2842 = vpack.c.b16 %v2826, %v2826
      %v2843 = vpack.c.b16 %v2827, %v2827
      %v2844 = vpack.c.b16 %v2828, %v2828
      %v2845 = vpack.c.b16 %v2829, %v2829
      %v2846 = vpack.c.b16 %v2830, %v2830
      %v2847 = vpack.c.b16 %v2831, %v2831
      %v2848 = vpack.c.b16 %v2832, %v2832
      %v2849 = vpack.c.b16 %v2833, %v2833
      %v2851 = vshrl.u32 %v2706, 16
      %v2853 = vshll.u32 %v2706, 16
      %v2855 = vrot.slane %v2853, 1
      %v2856 = vor.u32 %v2851, %v2855
      %v2858 = vshll.u32 %v2707, 16
      %v2860 = vrot.slane %v2858, 1
      %v2861 = vsel %vm2000, %v2856, %v2860
      %v2862 = vshrl.u32 %v2707, 16
      %v2864 = vor.u32 %v2862, %v2860
      %v2866 = vshll.u32 %v2834, 16
      %v2868 = vrot.slane %v2866, 1
      %v2869 = vsel %vm2000, %v2864, %v2868
      %v2871 = vshrl.u32 %v2708, 16
      %v2873 = vshll.u32 %v2708, 16
      %v2875 = vrot.slane %v2873, 1
      %v2876 = vor.u32 %v2871, %v2875
      %v2878 = vshll.u32 %v2709, 16
      %v2880 = vrot.slane %v2878, 1
      %v2881 = vsel %vm2000, %v2876, %v2880
      %v2882 = vshrl.u32 %v2709, 16
      %v2884 = vor.u32 %v2882, %v2880
      %v2886 = vshll.u32 %v2835, 16
      %v2888 = vrot.slane %v2886, 1
      %v2889 = vsel %vm2000, %v2884, %v2888
      %v2891 = vshrl.u32 %v2710, 16
      %v2893 = vshll.u32 %v2710, 16
      %v2895 = vrot.slane %v2893, 1
      %v2896 = vor.u32 %v2891, %v2895
      %v2898 = vshll.u32 %v2711, 16
      %v2900 = vrot.slane %v2898, 1
      %v2901 = vsel %vm2000, %v2896, %v2900
      %v2902 = vshrl.u32 %v2711, 16
      %v2904 = vor.u32 %v2902, %v2900
      %v2906 = vshll.u32 %v2836, 16
      %v2908 = vrot.slane %v2906, 1
      %v2909 = vsel %vm2000, %v2904, %v2908
      %v2911 = vshrl.u32 %v2712, 16
      %v2913 = vshll.u32 %v2712, 16
      %v2915 = vrot.slane %v2913, 1
      %v2916 = vor.u32 %v2911, %v2915
      %v2918 = vshll.u32 %v2713, 16
      %v2920 = vrot.slane %v2918, 1
      %v2921 = vsel %vm2000, %v2916, %v2920
      %v2922 = vshrl.u32 %v2713, 16
      %v2924 = vor.u32 %v2922, %v2920
      %v2926 = vshll.u32 %v2837, 16
      %v2928 = vrot.slane %v2926, 1
      %v2929 = vsel %vm2000, %v2924, %v2928
      %v2931 = vshrl.u32 %v2714, 16
      %v2933 = vshll.u32 %v2714, 16
      %v2935 = vrot.slane %v2933, 1
      %v2936 = vor.u32 %v2931, %v2935
      %v2938 = vshll.u32 %v2715, 16
      %v2940 = vrot.slane %v2938, 1
      %v2941 = vsel %vm2000, %v2936, %v2940
      %v2942 = vshrl.u32 %v2715, 16
      %v2944 = vor.u32 %v2942, %v2940
      %v2946 = vshll.u32 %v2838, 16
      %v2948 = vrot.slane %v2946, 1
      %v2949 = vsel %vm2000, %v2944, %v2948
      %v2951 = vshrl.u32 %v2716, 16
      %v2953 = vshll.u32 %v2716, 16
      %v2955 = vrot.slane %v2953, 1
      %v2956 = vor.u32 %v2951, %v2955
      %v2958 = vshll.u32 %v2717, 16
      %v2960 = vrot.slane %v2958, 1
      %v2961 = vsel %vm2000, %v2956, %v2960
      %v2962 = vshrl.u32 %v2717, 16
      %v2964 = vor.u32 %v2962, %v2960
      %v2966 = vshll.u32 %v2839, 16
      %v2968 = vrot.slane %v2966, 1
      %v2969 = vsel %vm2000, %v2964, %v2968
      %v2971 = vshrl.u32 %v2718, 16
      %v2973 = vshll.u32 %v2718, 16
      %v2975 = vrot.slane %v2973, 1
      %v2976 = vor.u32 %v2971, %v2975
      %v2978 = vshll.u32 %v2719, 16
      %v2980 = vrot.slane %v2978, 1
      %v2981 = vsel %vm2000, %v2976, %v2980
      %v2982 = vshrl.u32 %v2719, 16
      %v2984 = vor.u32 %v2982, %v2980
      %v2986 = vshll.u32 %v2840, 16
      %v2988 = vrot.slane %v2986, 1
      %v2989 = vsel %vm2000, %v2984, %v2988
      %v2991 = vshrl.u32 %v2720, 16
      %v2993 = vshll.u32 %v2720, 16
      %v2995 = vrot.slane %v2993, 1
      %v2996 = vor.u32 %v2991, %v2995
      %v2998 = vshll.u32 %v2721, 16
      %v3000 = vrot.slane %v2998, 1
      %v3001 = vsel %vm2000, %v2996, %v3000
      %v3002 = vshrl.u32 %v2721, 16
      %v3004 = vor.u32 %v3002, %v3000
      %v3006 = vshll.u32 %v2841, 16
      %v3008 = vrot.slane %v3006, 1
      %v3009 = vsel %vm2000, %v3004, %v3008
      %v3011 = vshrl.u32 %v2722, 16
      %v3013 = vshll.u32 %v2722, 16
      %v3015 = vrot.slane %v3013, 1
      %v3016 = vor.u32 %v3011, %v3015
      %v3018 = vshll.u32 %v2723, 16
      %v3020 = vrot.slane %v3018, 1
      %v3021 = vsel %vm2000, %v3016, %v3020
      %v3022 = vshrl.u32 %v2723, 16
      %v3024 = vor.u32 %v3022, %v3020
      %v3026 = vshll.u32 %v2842, 16
      %v3028 = vrot.slane %v3026, 1
      %v3029 = vsel %vm2000, %v3024, %v3028
      %v3031 = vshrl.u32 %v2724, 16
      %v3033 = vshll.u32 %v2724, 16
      %v3035 = vrot.slane %v3033, 1
      %v3036 = vor.u32 %v3031, %v3035
      %v3038 = vshll.u32 %v2725, 16
      %v3040 = vrot.slane %v3038, 1
      %v3041 = vsel %vm2000, %v3036, %v3040
      %v3042 = vshrl.u32 %v2725, 16
      %v3044 = vor.u32 %v3042, %v3040
      %v3046 = vshll.u32 %v2843, 16
      %v3048 = vrot.slane %v3046, 1
      %v3049 = vsel %vm2000, %v3044, %v3048
      %v3051 = vshrl.u32 %v2726, 16
      %v3053 = vshll.u32 %v2726, 16
      %v3055 = vrot.slane %v3053, 1
      %v3056 = vor.u32 %v3051, %v3055
      %v3058 = vshll.u32 %v2727, 16
      %v3060 = vrot.slane %v3058, 1
      %v3061 = vsel %vm2000, %v3056, %v3060
      %v3062 = vshrl.u32 %v2727, 16
      %v3064 = vor.u32 %v3062, %v3060
      %v3066 = vshll.u32 %v2844, 16
      %v3068 = vrot.slane %v3066, 1
      %v3069 = vsel %vm2000, %v3064, %v3068
      %v3071 = vshrl.u32 %v2728, 16
      %v3073 = vshll.u32 %v2728, 16
      %v3075 = vrot.slane %v3073, 1
      %v3076 = vor.u32 %v3071, %v3075
      %v3078 = vshll.u32 %v2729, 16
      %v3080 = vrot.slane %v3078, 1
      %v3081 = vsel %vm2000, %v3076, %v3080
      %v3082 = vshrl.u32 %v2729, 16
      %v3084 = vor.u32 %v3082, %v3080
      %v3086 = vshll.u32 %v2845, 16
      %v3088 = vrot.slane %v3086, 1
      %v3089 = vsel %vm2000, %v3084, %v3088
      %v3091 = vshrl.u32 %v2730, 16
      %v3093 = vshll.u32 %v2730, 16
      %v3095 = vrot.slane %v3093, 1
      %v3096 = vor.u32 %v3091, %v3095
      %v3098 = vshll.u32 %v2731, 16
      %v3100 = vrot.slane %v3098, 1
      %v3101 = vsel %vm2000, %v3096, %v3100
      %v3102 = vshrl.u32 %v2731, 16
      %v3104 = vor.u32 %v3102, %v3100
      %v3106 = vshll.u32 %v2846, 16
      %v3108 = vrot.slane %v3106, 1
      %v3109 = vsel %vm2000, %v3104, %v3108
      %v3111 = vshrl.u32 %v2732, 16
      %v3113 = vshll.u32 %v2732, 16
      %v3115 = vrot.slane %v3113, 1
      %v3116 = vor.u32 %v3111, %v3115
      %v3118 = vshll.u32 %v2733, 16
      %v3120 = vrot.slane %v3118, 1
      %v3121 = vsel %vm2000, %v3116, %v3120
      %v3122 = vshrl.u32 %v2733, 16
      %v3124 = vor.u32 %v3122, %v3120
      %v3126 = vshll.u32 %v2847, 16
      %v3128 = vrot.slane %v3126, 1
      %v3129 = vsel %vm2000, %v3124, %v3128
      %v3131 = vshrl.u32 %v2734, 16
      %v3133 = vshll.u32 %v2734, 16
      %v3135 = vrot.slane %v3133, 1
      %v3136 = vor.u32 %v3131, %v3135
      %v3138 = vshll.u32 %v2735, 16
      %v3140 = vrot.slane %v3138, 1
      %v3141 = vsel %vm2000, %v3136, %v3140
      %v3142 = vshrl.u32 %v2735, 16
      %v3144 = vor.u32 %v3142, %v3140
      %v3146 = vshll.u32 %v2848, 16
      %v3148 = vrot.slane %v3146, 1
      %v3149 = vsel %vm2000, %v3144, %v3148
      %v3151 = vshrl.u32 %v2736, 16
      %v3153 = vshll.u32 %v2736, 16
      %v3155 = vrot.slane %v3153, 1
      %v3156 = vor.u32 %v3151, %v3155
      %v3158 = vshll.u32 %v2737, 16
      %v3160 = vrot.slane %v3158, 1
      %v3161 = vsel %vm2000, %v3156, %v3160
      %v3162 = vshrl.u32 %v2737, 16
      %v3164 = vor.u32 %v3162, %v3160
      %v3166 = vshll.u32 %v2849, 16
      %v3168 = vrot.slane %v3166, 1
      %v3169 = vsel %vm2000, %v3164, %v3168
      %3170 = vrot.lane.b32.xlu0 %v2861, 12
      %v3171 = vpop.permute.xlu0 %3170
      %3172 = vrot.lane.b32.xlu0 %v2869, 12
      %v3173 = vpop.permute.xlu0 %3172
      %3174 = vrot.lane.b32.xlu0 %v2881, 12
      %v3175 = vpop.permute.xlu0 %3174
      %3176 = vrot.lane.b32.xlu0 %v2889, 12
      %v3177 = vpop.permute.xlu0 %3176
      %3178 = vrot.lane.b32.xlu0 %v2901, 12
      %v3179 = vpop.permute.xlu0 %3178
      %3180 = vrot.lane.b32.xlu0 %v2909, 12
      %v3181 = vpop.permute.xlu0 %3180
      %3182 = vrot.lane.b32.xlu0 %v2921, 12
      %v3183 = vpop.permute.xlu0 %3182
      %3184 = vrot.lane.b32.xlu0 %v2929, 12
      %v3185 = vpop.permute.xlu0 %3184
      %3186 = vrot.lane.b32.xlu0 %v2941, 12
      %v3187 = vpop.permute.xlu0 %3186
      %3188 = vrot.lane.b32.xlu0 %v2949, 12
      %v3189 = vpop.permute.xlu0 %3188
      %3190 = vrot.lane.b32.xlu0 %v2961, 12
      %v3191 = vpop.permute.xlu0 %3190
      %3192 = vrot.lane.b32.xlu0 %v2969, 12
      %v3193 = vpop.permute.xlu0 %3192
      %3194 = vrot.lane.b32.xlu0 %v2981, 12
      %v3195 = vpop.permute.xlu0 %3194
      %3196 = vrot.lane.b32.xlu0 %v2989, 12
      %v3197 = vpop.permute.xlu0 %3196
      %3198 = vrot.lane.b32.xlu0 %v3001, 12
      %v3199 = vpop.permute.xlu0 %3198
      %3200 = vrot.lane.b32.xlu0 %v3009, 12
      %v3201 = vpop.permute.xlu0 %3200
      %3202 = vrot.lane.b32.xlu0 %v3021, 12
      %v3203 = vpop.permute.xlu0 %3202
      %3204 = vrot.lane.b32.xlu0 %v3029, 12
      %v3205 = vpop.permute.xlu0 %3204
      %3206 = vrot.lane.b32.xlu0 %v3041, 12
      %v3207 = vpop.permute.xlu0 %3206
      %3208 = vrot.lane.b32.xlu0 %v3049, 12
      %v3209 = vpop.permute.xlu0 %3208
      %3210 = vrot.lane.b32.xlu0 %v3061, 12
      %v3211 = vpop.permute.xlu0 %3210
      %3212 = vrot.lane.b32.xlu0 %v3069, 12
      %v3213 = vpop.permute.xlu0 %3212
      %3214 = vrot.lane.b32.xlu0 %v3081, 12
      %v3215 = vpop.permute.xlu0 %3214
      %3216 = vrot.lane.b32.xlu0 %v3089, 12
      %v3217 = vpop.permute.xlu0 %3216
      %3218 = vrot.lane.b32.xlu0 %v3101, 12
      %v3219 = vpop.permute.xlu0 %3218
      %3220 = vrot.lane.b32.xlu0 %v3109, 12
      %v3221 = vpop.permute.xlu0 %3220
      %3222 = vrot.lane.b32.xlu0 %v3121, 12
      %v3223 = vpop.permute.xlu0 %3222
      %3224 = vrot.lane.b32.xlu0 %v3129, 12
      %v3225 = vpop.permute.xlu0 %3224
      %3226 = vrot.lane.b32.xlu0 %v3141, 12
      %v3227 = vpop.permute.xlu0 %3226
      %3228 = vrot.lane.b32.xlu0 %v3149, 12
      %v3229 = vpop.permute.xlu0 %3228
      %3230 = vrot.lane.b32.xlu0 %v3161, 12
      %v3231 = vpop.permute.xlu0 %3230
      %3232 = vrot.lane.b32.xlu0 %v3169, 12
      %v3233 = vpop.permute.xlu0 %3232
      %v3250 = vunpack.c.l.b16 %v1679
      %v3251 = vunpack.c.l.b16 %v1680
      %v3252 = vunpack.c.l.b16 %v1681
      %v3253 = vunpack.c.l.b16 %v1682
      %v3254 = vunpack.c.l.b16 %v1683
      %v3255 = vunpack.c.l.b16 %v1684
      %v3256 = vunpack.c.l.b16 %v1685
      %v3257 = vunpack.c.l.b16 %v1686
      %v3258 = vunpack.c.l.b16 %v1687
      %v3259 = vunpack.c.l.b16 %v1688
      %v3260 = vunpack.c.l.b16 %v1689
      %v3261 = vunpack.c.l.b16 %v1690
      %v3262 = vunpack.c.l.b16 %v1691
      %v3263 = vunpack.c.l.b16 %v1692
      %v3264 = vunpack.c.l.b16 %v1693
      %v3265 = vunpack.c.l.b16 %v1694
      %v3266 = vpack.c.b16 %v2643, %v3250
      %v3267 = vpack.c.b16 %v2647, %v3251
      %v3268 = vpack.c.b16 %v2651, %v3252
      %v3269 = vpack.c.b16 %v2655, %v3253
      %v3270 = vpack.c.b16 %v2659, %v3254
      %v3271 = vpack.c.b16 %v2663, %v3255
      %v3272 = vpack.c.b16 %v2667, %v3256
      %v3273 = vpack.c.b16 %v2671, %v3257
      %v3274 = vpack.c.b16 %v2675, %v3258
      %v3275 = vpack.c.b16 %v2679, %v3259
      %v3276 = vpack.c.b16 %v2683, %v3260
      %v3277 = vpack.c.b16 %v2687, %v3261
      %v3278 = vpack.c.b16 %v2691, %v3262
      %v3279 = vpack.c.b16 %v2695, %v3263
      %v3280 = vpack.c.b16 %v2699, %v3264
      %v3281 = vpack.c.b16 %v2703, %v3265
      %v3282 = vrot.slane %v3266, 1
      %v3283 = vrot.slane %v2707, 1
      %v3284 = vsel %vm2433, %v3282, %v3283
      %v3285 = vrot.slane %v2834, 1
      %v3286 = vsel %vm2433, %v3283, %v3285
      %v3287 = vrot.slane %v3267, 1
      %v3288 = vrot.slane %v2709, 1
      %v3289 = vsel %vm2433, %v3287, %v3288
      %v3290 = vrot.slane %v2835, 1
      %v3291 = vsel %vm2433, %v3288, %v3290
      %v3292 = vrot.slane %v3268, 1
      %v3293 = vrot.slane %v2711, 1
      %v3294 = vsel %vm2433, %v3292, %v3293
      %v3295 = vrot.slane %v2836, 1
      %v3296 = vsel %vm2433, %v3293, %v3295
      %v3297 = vrot.slane %v3269, 1
      %v3298 = vrot.slane %v2713, 1
      %v3299 = vsel %vm2433, %v3297, %v3298
      %v3300 = vrot.slane %v2837, 1
      %v3301 = vsel %vm2433, %v3298, %v3300
      %v3302 = vrot.slane %v3270, 1
      %v3303 = vrot.slane %v2715, 1
      %v3304 = vsel %vm2433, %v3302, %v3303
      %v3305 = vrot.slane %v2838, 1
      %v3306 = vsel %vm2433, %v3303, %v3305
      %v3307 = vrot.slane %v3271, 1
      %v3308 = vrot.slane %v2717, 1
      %v3309 = vsel %vm2433, %v3307, %v3308
      %v3310 = vrot.slane %v2839, 1
      %v3311 = vsel %vm2433, %v3308, %v3310
      %v3312 = vrot.slane %v3272, 1
      %v3313 = vrot.slane %v2719, 1
      %v3314 = vsel %vm2433, %v3312, %v3313
      %v3315 = vrot.slane %v2840, 1
      %v3316 = vsel %vm2433, %v3313, %v3315
      %v3317 = vrot.slane %v3273, 1
      %v3318 = vrot.slane %v2721, 1
      %v3319 = vsel %vm2433, %v3317, %v3318
      %v3320 = vrot.slane %v2841, 1
      %v3321 = vsel %vm2433, %v3318, %v3320
      %v3322 = vrot.slane %v3274, 1
      %v3323 = vrot.slane %v2723, 1
      %v3324 = vsel %vm2433, %v3322, %v3323
      %v3325 = vrot.slane %v2842, 1
      %v3326 = vsel %vm2433, %v3323, %v3325
      %v3327 = vrot.slane %v3275, 1
      %v3328 = vrot.slane %v2725, 1
      %v3329 = vsel %vm2433, %v3327, %v3328
      %v3330 = vrot.slane %v2843, 1
      %v3331 = vsel %vm2433, %v3328, %v3330
      %v3332 = vrot.slane %v3276, 1
      %v3333 = vrot.slane %v2727, 1
      %v3334 = vsel %vm2433, %v3332, %v3333
      %v3335 = vrot.slane %v2844, 1
      %v3336 = vsel %vm2433, %v3333, %v3335
      %v3337 = vrot.slane %v3277, 1
      %v3338 = vrot.slane %v2729, 1
      %v3339 = vsel %vm2433, %v3337, %v3338
      %v3340 = vrot.slane %v2845, 1
      %v3341 = vsel %vm2433, %v3338, %v3340
      %v3342 = vrot.slane %v3278, 1
      %v3343 = vrot.slane %v2731, 1
      %v3344 = vsel %vm2433, %v3342, %v3343
      %v3345 = vrot.slane %v2846, 1
      %v3346 = vsel %vm2433, %v3343, %v3345
      %v3347 = vrot.slane %v3279, 1
      %v3348 = vrot.slane %v2733, 1
      %v3349 = vsel %vm2433, %v3347, %v3348
      %v3350 = vrot.slane %v2847, 1
      %v3351 = vsel %vm2433, %v3348, %v3350
      %v3352 = vrot.slane %v3280, 1
      %v3353 = vrot.slane %v2735, 1
      %v3354 = vsel %vm2433, %v3352, %v3353
      %v3355 = vrot.slane %v2848, 1
      %v3356 = vsel %vm2433, %v3353, %v3355
      %v3357 = vrot.slane %v3281, 1
      %v3358 = vrot.slane %v2737, 1
      %v3359 = vsel %vm2433, %v3357, %v3358
      %v3360 = vrot.slane %v2849, 1
      %v3361 = vsel %vm2433, %v3358, %v3360
      %3362 = vrot.lane.b32.xlu0 %v3284, 15
      %v3363 = vpop.permute.xlu0 %3362
      %3364 = vrot.lane.b32.xlu0 %v3286, 15
      %v3365 = vpop.permute.xlu0 %3364
      %3366 = vrot.lane.b32.xlu0 %v3289, 15
      %v3367 = vpop.permute.xlu0 %3366
      %3368 = vrot.lane.b32.xlu0 %v3291, 15
      %v3369 = vpop.permute.xlu0 %3368
      %3370 = vrot.lane.b32.xlu0 %v3294, 15
      %v3371 = vpop.permute.xlu0 %3370
      %3372 = vrot.lane.b32.xlu0 %v3296, 15
      %v3373 = vpop.permute.xlu0 %3372
      %3374 = vrot.lane.b32.xlu0 %v3299, 15
      %v3375 = vpop.permute.xlu0 %3374
      %3376 = vrot.lane.b32.xlu0 %v3301, 15
      %v3377 = vpop.permute.xlu0 %3376
      %3378 = vrot.lane.b32.xlu0 %v3304, 15
      %v3379 = vpop.permute.xlu0 %3378
      %3380 = vrot.lane.b32.xlu0 %v3306, 15
      %v3381 = vpop.permute.xlu0 %3380
      %3382 = vrot.lane.b32.xlu0 %v3309, 15
      %v3383 = vpop.permute.xlu0 %3382
      %3384 = vrot.lane.b32.xlu0 %v3311, 15
      %v3385 = vpop.permute.xlu0 %3384
      %3386 = vrot.lane.b32.xlu0 %v3314, 15
      %v3387 = vpop.permute.xlu0 %3386
      %3388 = vrot.lane.b32.xlu0 %v3316, 15
      %v3389 = vpop.permute.xlu0 %3388
      %3390 = vrot.lane.b32.xlu0 %v3319, 15
      %v3391 = vpop.permute.xlu0 %3390
      %3392 = vrot.lane.b32.xlu0 %v3321, 15
      %v3393 = vpop.permute.xlu0 %3392
      %3394 = vrot.lane.b32.xlu0 %v3324, 15
      %v3395 = vpop.permute.xlu0 %3394
      %3396 = vrot.lane.b32.xlu0 %v3326, 15
      %v3397 = vpop.permute.xlu0 %3396
      %3398 = vrot.lane.b32.xlu0 %v3329, 15
      %v3399 = vpop.permute.xlu0 %3398
      %3400 = vrot.lane.b32.xlu0 %v3331, 15
      %v3401 = vpop.permute.xlu0 %3400
      %3402 = vrot.lane.b32.xlu0 %v3334, 15
      %v3403 = vpop.permute.xlu0 %3402
      %3404 = vrot.lane.b32.xlu0 %v3336, 15
      %v3405 = vpop.permute.xlu0 %3404
      %3406 = vrot.lane.b32.xlu0 %v3339, 15
      %v3407 = vpop.permute.xlu0 %3406
      %3408 = vrot.lane.b32.xlu0 %v3341, 15
      %v3409 = vpop.permute.xlu0 %3408
      %3410 = vrot.lane.b32.xlu0 %v3344, 15
      %v3411 = vpop.permute.xlu0 %3410
      %3412 = vrot.lane.b32.xlu0 %v3346, 15
      %v3413 = vpop.permute.xlu0 %3412
      %3414 = vrot.lane.b32.xlu0 %v3349, 15
      %v3415 = vpop.permute.xlu0 %3414
      %3416 = vrot.lane.b32.xlu0 %v3351, 15
      %v3417 = vpop.permute.xlu0 %3416
      %3418 = vrot.lane.b32.xlu0 %v3354, 15
      %v3419 = vpop.permute.xlu0 %3418
      %3420 = vrot.lane.b32.xlu0 %v3356, 15
      %v3421 = vpop.permute.xlu0 %3420
      %3422 = vrot.lane.b32.xlu0 %v3359, 15
      %v3423 = vpop.permute.xlu0 %3422
      %3424 = vrot.lane.b32.xlu0 %v3361, 15
      %v3425 = vpop.permute.xlu0 %3424
      %v3490 = vunpack.c.l.b16 %v1696
      %v3491 = vunpack.c.l.b16 %v1697
      %v3492 = vunpack.c.l.b16 %v1698
      %v3493 = vunpack.c.l.b16 %v1699
      %v3494 = vunpack.c.l.b16 %v1700
      %v3495 = vunpack.c.l.b16 %v1701
      %v3496 = vunpack.c.l.b16 %v1702
      %v3497 = vunpack.c.l.b16 %v1703
      %v3498 = vunpack.c.l.b16 %v1704
      %v3499 = vunpack.c.l.b16 %v1705
      %v3500 = vunpack.c.l.b16 %v1706
      %v3501 = vunpack.c.l.b16 %v1707
      %v3502 = vunpack.c.l.b16 %v1708
      %v3503 = vunpack.c.l.b16 %v1709
      %v3504 = vunpack.c.l.b16 %v1710
      %v3505 = vunpack.c.l.b16 %v1711
      %v3506 = vunpack.c.l.b16 %v1712
      %v3507 = vunpack.c.l.b16 %v1713
      %v3508 = vunpack.c.l.b16 %v1714
      %v3509 = vunpack.c.l.b16 %v1715
      %v3510 = vunpack.c.l.b16 %v1716
      %v3511 = vunpack.c.l.b16 %v1717
      %v3512 = vunpack.c.l.b16 %v1718
      %v3513 = vunpack.c.l.b16 %v1719
      %v3514 = vunpack.c.l.b16 %v1720
      %v3515 = vunpack.c.l.b16 %v1721
      %v3516 = vunpack.c.l.b16 %v1722
      %v3517 = vunpack.c.l.b16 %v1723
      %v3518 = vunpack.c.l.b16 %v1724
      %v3519 = vunpack.c.l.b16 %v1725
      %v3520 = vunpack.c.l.b16 %v1726
      %v3521 = vunpack.c.l.b16 %v1727
      %v3522 = vunpack.c.l.b16 %v1728
      %v3523 = vunpack.c.l.b16 %v1729
      %v3524 = vunpack.c.l.b16 %v1730
      %v3525 = vunpack.c.l.b16 %v1731
      %v3526 = vunpack.c.l.b16 %v1732
      %v3527 = vunpack.c.l.b16 %v1733
      %v3528 = vunpack.c.l.b16 %v1734
      %v3529 = vunpack.c.l.b16 %v1735
      %v3530 = vunpack.c.l.b16 %v1736
      %v3531 = vunpack.c.l.b16 %v1737
      %v3532 = vunpack.c.l.b16 %v1738
      %v3533 = vunpack.c.l.b16 %v1739
      %v3534 = vunpack.c.l.b16 %v1740
      %v3535 = vunpack.c.l.b16 %v1741
      %v3536 = vunpack.c.l.b16 %v1742
      %v3537 = vunpack.c.l.b16 %v1743
      %v3538 = vunpack.c.l.b16 %v1744
      %v3539 = vunpack.c.l.b16 %v1745
      %v3540 = vunpack.c.l.b16 %v1746
      %v3541 = vunpack.c.l.b16 %v1747
      %v3542 = vunpack.c.l.b16 %v1748
      %v3543 = vunpack.c.l.b16 %v1749
      %v3544 = vunpack.c.l.b16 %v1750
      %v3545 = vunpack.c.l.b16 %v1751
      %v3546 = vunpack.c.l.b16 %v1752
      %v3547 = vunpack.c.l.b16 %v1753
      %v3548 = vunpack.c.l.b16 %v1754
      %v3549 = vunpack.c.l.b16 %v1755
      %v3550 = vunpack.c.l.b16 %v1756
      %v3551 = vunpack.c.l.b16 %v1757
      %v3552 = vunpack.c.l.b16 %v1758
      %v3553 = vunpack.c.l.b16 %v1759
      %v3554 = vpack.c.b16 %v3491, %v3490
      %v3555 = vpack.c.b16 %v3493, %v3492
      %v3556 = vpack.c.b16 %v3495, %v3494
      %v3557 = vpack.c.b16 %v3497, %v3496
      %v3558 = vpack.c.b16 %v3499, %v3498
      %v3559 = vpack.c.b16 %v3501, %v3500
      %v3560 = vpack.c.b16 %v3503, %v3502
      %v3561 = vpack.c.b16 %v3505, %v3504
      %v3562 = vpack.c.b16 %v3507, %v3506
      %v3563 = vpack.c.b16 %v3509, %v3508
      %v3564 = vpack.c.b16 %v3511, %v3510
      %v3565 = vpack.c.b16 %v3513, %v3512
      %v3566 = vpack.c.b16 %v3515, %v3514
      %v3567 = vpack.c.b16 %v3517, %v3516
      %v3568 = vpack.c.b16 %v3519, %v3518
      %v3569 = vpack.c.b16 %v3521, %v3520
      %v3570 = vpack.c.b16 %v3523, %v3522
      %v3571 = vpack.c.b16 %v3525, %v3524
      %v3572 = vpack.c.b16 %v3527, %v3526
      %v3573 = vpack.c.b16 %v3529, %v3528
      %v3574 = vpack.c.b16 %v3531, %v3530
      %v3575 = vpack.c.b16 %v3533, %v3532
      %v3576 = vpack.c.b16 %v3535, %v3534
      %v3577 = vpack.c.b16 %v3537, %v3536
      %v3578 = vpack.c.b16 %v3539, %v3538
      %v3579 = vpack.c.b16 %v3541, %v3540
      %v3580 = vpack.c.b16 %v3543, %v3542
      %v3581 = vpack.c.b16 %v3545, %v3544
      %v3582 = vpack.c.b16 %v3547, %v3546
      %v3583 = vpack.c.b16 %v3549, %v3548
      %v3584 = vpack.c.b16 %v3551, %v3550
      %v3585 = vpack.c.b16 %v3553, %v3552
      %3586 = vrot.lane.b32.xlu0 %v3554, 18
      %v3587 = vpop.permute.xlu0 %3586
      %3588 = vrot.lane.b32.xlu0 %v3555, 18
      %v3589 = vpop.permute.xlu0 %3588
      %3590 = vrot.lane.b32.xlu0 %v3556, 18
      %v3591 = vpop.permute.xlu0 %3590
      %3592 = vrot.lane.b32.xlu0 %v3557, 18
      %v3593 = vpop.permute.xlu0 %3592
      %3594 = vrot.lane.b32.xlu0 %v3558, 18
      %v3595 = vpop.permute.xlu0 %3594
      %3596 = vrot.lane.b32.xlu0 %v3559, 18
      %v3597 = vpop.permute.xlu0 %3596
      %3598 = vrot.lane.b32.xlu0 %v3560, 18
      %v3599 = vpop.permute.xlu0 %3598
      %3600 = vrot.lane.b32.xlu0 %v3561, 18
      %v3601 = vpop.permute.xlu0 %3600
      %3602 = vrot.lane.b32.xlu0 %v3562, 18
      %v3603 = vpop.permute.xlu0 %3602
      %3604 = vrot.lane.b32.xlu0 %v3563, 18
      %v3605 = vpop.permute.xlu0 %3604
      %3606 = vrot.lane.b32.xlu0 %v3564, 18
      %v3607 = vpop.permute.xlu0 %3606
      %3608 = vrot.lane.b32.xlu0 %v3565, 18
      %v3609 = vpop.permute.xlu0 %3608
      %3610 = vrot.lane.b32.xlu0 %v3566, 18
      %v3611 = vpop.permute.xlu0 %3610
      %3612 = vrot.lane.b32.xlu0 %v3567, 18
      %v3613 = vpop.permute.xlu0 %3612
      %3614 = vrot.lane.b32.xlu0 %v3568, 18
      %v3615 = vpop.permute.xlu0 %3614
      %3616 = vrot.lane.b32.xlu0 %v3569, 18
      %v3617 = vpop.permute.xlu0 %3616
      %3618 = vrot.lane.b32.xlu0 %v3570, 18
      %v3619 = vpop.permute.xlu0 %3618
      %3620 = vrot.lane.b32.xlu0 %v3571, 18
      %v3621 = vpop.permute.xlu0 %3620
      %3622 = vrot.lane.b32.xlu0 %v3572, 18
      %v3623 = vpop.permute.xlu0 %3622
      %3624 = vrot.lane.b32.xlu0 %v3573, 18
      %v3625 = vpop.permute.xlu0 %3624
      %3626 = vrot.lane.b32.xlu0 %v3574, 18
      %v3627 = vpop.permute.xlu0 %3626
      %3628 = vrot.lane.b32.xlu0 %v3575, 18
      %v3629 = vpop.permute.xlu0 %3628
      %3630 = vrot.lane.b32.xlu0 %v3576, 18
      %v3631 = vpop.permute.xlu0 %3630
      %3632 = vrot.lane.b32.xlu0 %v3577, 18
      %v3633 = vpop.permute.xlu0 %3632
      %3634 = vrot.lane.b32.xlu0 %v3578, 18
      %v3635 = vpop.permute.xlu0 %3634
      %3636 = vrot.lane.b32.xlu0 %v3579, 18
      %v3637 = vpop.permute.xlu0 %3636
      %3638 = vrot.lane.b32.xlu0 %v3580, 18
      %v3639 = vpop.permute.xlu0 %3638
      %3640 = vrot.lane.b32.xlu0 %v3581, 18
      %v3641 = vpop.permute.xlu0 %3640
      %3642 = vrot.lane.b32.xlu0 %v3582, 18
      %v3643 = vpop.permute.xlu0 %3642
      %3644 = vrot.lane.b32.xlu0 %v3583, 18
      %v3645 = vpop.permute.xlu0 %3644
      %3646 = vrot.lane.b32.xlu0 %v3584, 18
      %v3647 = vpop.permute.xlu0 %3646
      %3648 = vrot.lane.b32.xlu0 %v3585, 18
      %v3649 = vpop.permute.xlu0 %3648
      %v3666 = vunpack.c.l.b16 %v1760
      %v3667 = vunpack.c.l.b16 %v1761
      %v3668 = vunpack.c.l.b16 %v1762
      %v3669 = vunpack.c.l.b16 %v1763
      %v3670 = vunpack.c.l.b16 %v1764
      %v3671 = vunpack.c.l.b16 %v1765
      %v3672 = vunpack.c.l.b16 %v1766
      %v3673 = vunpack.c.l.b16 %v1767
      %v3674 = vunpack.c.l.b16 %v1768
      %v3675 = vunpack.c.l.b16 %v1769
      %v3676 = vunpack.c.l.b16 %v1770
      %v3677 = vunpack.c.l.b16 %v1771
      %v3678 = vunpack.c.l.b16 %v1772
      %v3679 = vunpack.c.l.b16 %v1773
      %v3680 = vunpack.c.l.b16 %v1774
      %v3681 = vunpack.c.l.b16 %v1775
      %v3682 = vpack.c.b16 %v3666, %v3666
      %v3683 = vpack.c.b16 %v3667, %v3667
      %v3684 = vpack.c.b16 %v3668, %v3668
      %v3685 = vpack.c.b16 %v3669, %v3669
      %v3686 = vpack.c.b16 %v3670, %v3670
      %v3687 = vpack.c.b16 %v3671, %v3671
      %v3688 = vpack.c.b16 %v3672, %v3672
      %v3689 = vpack.c.b16 %v3673, %v3673
      %v3690 = vpack.c.b16 %v3674, %v3674
      %v3691 = vpack.c.b16 %v3675, %v3675
      %v3692 = vpack.c.b16 %v3676, %v3676
      %v3693 = vpack.c.b16 %v3677, %v3677
      %v3694 = vpack.c.b16 %v3678, %v3678
      %v3695 = vpack.c.b16 %v3679, %v3679
      %v3696 = vpack.c.b16 %v3680, %v3680
      %v3697 = vpack.c.b16 %v3681, %v3681
      %v3699 = vshrl.u32 %v3554, 16
      %v3701 = vshll.u32 %v3554, 16
      %v3703 = vrot.slane %v3701, 1
      %v3704 = vor.u32 %v3699, %v3703
      %v3706 = vshll.u32 %v3555, 16
      %v3708 = vrot.slane %v3706, 1
      %v3709 = vsel %vm2000, %v3704, %v3708
      %v3710 = vshrl.u32 %v3555, 16
      %v3712 = vor.u32 %v3710, %v3708
      %v3714 = vshll.u32 %v3682, 16
      %v3716 = vrot.slane %v3714, 1
      %v3717 = vsel %vm2000, %v3712, %v3716
      %v3719 = vshrl.u32 %v3556, 16
      %v3721 = vshll.u32 %v3556, 16
      %v3723 = vrot.slane %v3721, 1
      %v3724 = vor.u32 %v3719, %v3723
      %v3726 = vshll.u32 %v3557, 16
      %v3728 = vrot.slane %v3726, 1
      %v3729 = vsel %vm2000, %v3724, %v3728
      %v3730 = vshrl.u32 %v3557, 16
      %v3732 = vor.u32 %v3730, %v3728
      %v3734 = vshll.u32 %v3683, 16
      %v3736 = vrot.slane %v3734, 1
      %v3737 = vsel %vm2000, %v3732, %v3736
      %v3739 = vshrl.u32 %v3558, 16
      %v3741 = vshll.u32 %v3558, 16
      %v3743 = vrot.slane %v3741, 1
      %v3744 = vor.u32 %v3739, %v3743
      %v3746 = vshll.u32 %v3559, 16
      %v3748 = vrot.slane %v3746, 1
      %v3749 = vsel %vm2000, %v3744, %v3748
      %v3750 = vshrl.u32 %v3559, 16
      %v3752 = vor.u32 %v3750, %v3748
      %v3754 = vshll.u32 %v3684, 16
      %v3756 = vrot.slane %v3754, 1
      %v3757 = vsel %vm2000, %v3752, %v3756
      %v3759 = vshrl.u32 %v3560, 16
      %v3761 = vshll.u32 %v3560, 16
      %v3763 = vrot.slane %v3761, 1
      %v3764 = vor.u32 %v3759, %v3763
      %v3766 = vshll.u32 %v3561, 16
      %v3768 = vrot.slane %v3766, 1
      %v3769 = vsel %vm2000, %v3764, %v3768
      %v3770 = vshrl.u32 %v3561, 16
      %v3772 = vor.u32 %v3770, %v3768
      %v3774 = vshll.u32 %v3685, 16
      %v3776 = vrot.slane %v3774, 1
      %v3777 = vsel %vm2000, %v3772, %v3776
      %v3779 = vshrl.u32 %v3562, 16
      %v3781 = vshll.u32 %v3562, 16
      %v3783 = vrot.slane %v3781, 1
      %v3784 = vor.u32 %v3779, %v3783
      %v3786 = vshll.u32 %v3563, 16
      %v3788 = vrot.slane %v3786, 1
      %v3789 = vsel %vm2000, %v3784, %v3788
      %v3790 = vshrl.u32 %v3563, 16
      %v3792 = vor.u32 %v3790, %v3788
      %v3794 = vshll.u32 %v3686, 16
      %v3796 = vrot.slane %v3794, 1
      %v3797 = vsel %vm2000, %v3792, %v3796
      %v3799 = vshrl.u32 %v3564, 16
      %v3801 = vshll.u32 %v3564, 16
      %v3803 = vrot.slane %v3801, 1
      %v3804 = vor.u32 %v3799, %v3803
      %v3806 = vshll.u32 %v3565, 16
      %v3808 = vrot.slane %v3806, 1
      %v3809 = vsel %vm2000, %v3804, %v3808
      %v3810 = vshrl.u32 %v3565, 16
      %v3812 = vor.u32 %v3810, %v3808
      %v3814 = vshll.u32 %v3687, 16
      %v3816 = vrot.slane %v3814, 1
      %v3817 = vsel %vm2000, %v3812, %v3816
      %v3819 = vshrl.u32 %v3566, 16
      %v3821 = vshll.u32 %v3566, 16
      %v3823 = vrot.slane %v3821, 1
      %v3824 = vor.u32 %v3819, %v3823
      %v3826 = vshll.u32 %v3567, 16
      %v3828 = vrot.slane %v3826, 1
      %v3829 = vsel %vm2000, %v3824, %v3828
      %v3830 = vshrl.u32 %v3567, 16
      %v3832 = vor.u32 %v3830, %v3828
      %v3834 = vshll.u32 %v3688, 16
      %v3836 = vrot.slane %v3834, 1
      %v3837 = vsel %vm2000, %v3832, %v3836
      %v3839 = vshrl.u32 %v3568, 16
      %v3841 = vshll.u32 %v3568, 16
      %v3843 = vrot.slane %v3841, 1
      %v3844 = vor.u32 %v3839, %v3843
      %v3846 = vshll.u32 %v3569, 16
      %v3848 = vrot.slane %v3846, 1
      %v3849 = vsel %vm2000, %v3844, %v3848
      %v3850 = vshrl.u32 %v3569, 16
      %v3852 = vor.u32 %v3850, %v3848
      %v3854 = vshll.u32 %v3689, 16
      %v3856 = vrot.slane %v3854, 1
      %v3857 = vsel %vm2000, %v3852, %v3856
      %v3859 = vshrl.u32 %v3570, 16
      %v3861 = vshll.u32 %v3570, 16
      %v3863 = vrot.slane %v3861, 1
      %v3864 = vor.u32 %v3859, %v3863
      %v3866 = vshll.u32 %v3571, 16
      %v3868 = vrot.slane %v3866, 1
      %v3869 = vsel %vm2000, %v3864, %v3868
      %v3870 = vshrl.u32 %v3571, 16
      %v3872 = vor.u32 %v3870, %v3868
      %v3874 = vshll.u32 %v3690, 16
      %v3876 = vrot.slane %v3874, 1
      %v3877 = vsel %vm2000, %v3872, %v3876
      %v3879 = vshrl.u32 %v3572, 16
      %v3881 = vshll.u32 %v3572, 16
      %v3883 = vrot.slane %v3881, 1
      %v3884 = vor.u32 %v3879, %v3883
      %v3886 = vshll.u32 %v3573, 16
      %v3888 = vrot.slane %v3886, 1
      %v3889 = vsel %vm2000, %v3884, %v3888
      %v3890 = vshrl.u32 %v3573, 16
      %v3892 = vor.u32 %v3890, %v3888
      %v3894 = vshll.u32 %v3691, 16
      %v3896 = vrot.slane %v3894, 1
      %v3897 = vsel %vm2000, %v3892, %v3896
      %v3899 = vshrl.u32 %v3574, 16
      %v3901 = vshll.u32 %v3574, 16
      %v3903 = vrot.slane %v3901, 1
      %v3904 = vor.u32 %v3899, %v3903
      %v3906 = vshll.u32 %v3575, 16
      %v3908 = vrot.slane %v3906, 1
      %v3909 = vsel %vm2000, %v3904, %v3908
      %v3910 = vshrl.u32 %v3575, 16
      %v3912 = vor.u32 %v3910, %v3908
      %v3914 = vshll.u32 %v3692, 16
      %v3916 = vrot.slane %v3914, 1
      %v3917 = vsel %vm2000, %v3912, %v3916
      %v3919 = vshrl.u32 %v3576, 16
      %v3921 = vshll.u32 %v3576, 16
      %v3923 = vrot.slane %v3921, 1
      %v3924 = vor.u32 %v3919, %v3923
      %v3926 = vshll.u32 %v3577, 16
      %v3928 = vrot.slane %v3926, 1
      %v3929 = vsel %vm2000, %v3924, %v3928
      %v3930 = vshrl.u32 %v3577, 16
      %v3932 = vor.u32 %v3930, %v3928
      %v3934 = vshll.u32 %v3693, 16
      %v3936 = vrot.slane %v3934, 1
      %v3937 = vsel %vm2000, %v3932, %v3936
      %v3939 = vshrl.u32 %v3578, 16
      %v3941 = vshll.u32 %v3578, 16
      %v3943 = vrot.slane %v3941, 1
      %v3944 = vor.u32 %v3939, %v3943
      %v3946 = vshll.u32 %v3579, 16
      %v3948 = vrot.slane %v3946, 1
      %v3949 = vsel %vm2000, %v3944, %v3948
      %v3950 = vshrl.u32 %v3579, 16
      %v3952 = vor.u32 %v3950, %v3948
      %v3954 = vshll.u32 %v3694, 16
      %v3956 = vrot.slane %v3954, 1
      %v3957 = vsel %vm2000, %v3952, %v3956
      %v3959 = vshrl.u32 %v3580, 16
      %v3961 = vshll.u32 %v3580, 16
      %v3963 = vrot.slane %v3961, 1
      %v3964 = vor.u32 %v3959, %v3963
      %v3966 = vshll.u32 %v3581, 16
      %v3968 = vrot.slane %v3966, 1
      %v3969 = vsel %vm2000, %v3964, %v3968
      %v3970 = vshrl.u32 %v3581, 16
      %v3972 = vor.u32 %v3970, %v3968
      %v3974 = vshll.u32 %v3695, 16
      %v3976 = vrot.slane %v3974, 1
      %v3977 = vsel %vm2000, %v3972, %v3976
      %v3979 = vshrl.u32 %v3582, 16
      %v3981 = vshll.u32 %v3582, 16
      %v3983 = vrot.slane %v3981, 1
      %v3984 = vor.u32 %v3979, %v3983
      %v3986 = vshll.u32 %v3583, 16
      %v3988 = vrot.slane %v3986, 1
      %v3989 = vsel %vm2000, %v3984, %v3988
      %v3990 = vshrl.u32 %v3583, 16
      %v3992 = vor.u32 %v3990, %v3988
      %v3994 = vshll.u32 %v3696, 16
      %v3996 = vrot.slane %v3994, 1
      %v3997 = vsel %vm2000, %v3992, %v3996
      %v3999 = vshrl.u32 %v3584, 16
      %v4001 = vshll.u32 %v3584, 16
      %v4003 = vrot.slane %v4001, 1
      %v4004 = vor.u32 %v3999, %v4003
      %v4006 = vshll.u32 %v3585, 16
      %v4008 = vrot.slane %v4006, 1
      %v4009 = vsel %vm2000, %v4004, %v4008
      %v4010 = vshrl.u32 %v3585, 16
      %v4012 = vor.u32 %v4010, %v4008
      %v4014 = vshll.u32 %v3697, 16
      %v4016 = vrot.slane %v4014, 1
      %v4017 = vsel %vm2000, %v4012, %v4016
      %4018 = vrot.lane.b32.xlu0 %v3709, 21
      %v4019 = vpop.permute.xlu0 %4018
      %4020 = vrot.lane.b32.xlu0 %v3717, 21
      %v4021 = vpop.permute.xlu0 %4020
      %4022 = vrot.lane.b32.xlu0 %v3729, 21
      %v4023 = vpop.permute.xlu0 %4022
      %4024 = vrot.lane.b32.xlu0 %v3737, 21
      %v4025 = vpop.permute.xlu0 %4024
      %4026 = vrot.lane.b32.xlu0 %v3749, 21
      %v4027 = vpop.permute.xlu0 %4026
      %4028 = vrot.lane.b32.xlu0 %v3757, 21
      %v4029 = vpop.permute.xlu0 %4028
      %4030 = vrot.lane.b32.xlu0 %v3769, 21
      %v4031 = vpop.permute.xlu0 %4030
      %4032 = vrot.lane.b32.xlu0 %v3777, 21
      %v4033 = vpop.permute.xlu0 %4032
      %4034 = vrot.lane.b32.xlu0 %v3789, 21
      %v4035 = vpop.permute.xlu0 %4034
      %4036 = vrot.lane.b32.xlu0 %v3797, 21
      %v4037 = vpop.permute.xlu0 %4036
      %4038 = vrot.lane.b32.xlu0 %v3809, 21
      %v4039 = vpop.permute.xlu0 %4038
      %4040 = vrot.lane.b32.xlu0 %v3817, 21
      %v4041 = vpop.permute.xlu0 %4040
      %4042 = vrot.lane.b32.xlu0 %v3829, 21
      %v4043 = vpop.permute.xlu0 %4042
      %4044 = vrot.lane.b32.xlu0 %v3837, 21
      %v4045 = vpop.permute.xlu0 %4044
      %4046 = vrot.lane.b32.xlu0 %v3849, 21
      %v4047 = vpop.permute.xlu0 %4046
      %4048 = vrot.lane.b32.xlu0 %v3857, 21
      %v4049 = vpop.permute.xlu0 %4048
      %4050 = vrot.lane.b32.xlu0 %v3869, 21
      %v4051 = vpop.permute.xlu0 %4050
      %4052 = vrot.lane.b32.xlu0 %v3877, 21
      %v4053 = vpop.permute.xlu0 %4052
      %4054 = vrot.lane.b32.xlu0 %v3889, 21
      %v4055 = vpop.permute.xlu0 %4054
      %4056 = vrot.lane.b32.xlu0 %v3897, 21
      %v4057 = vpop.permute.xlu0 %4056
      %4058 = vrot.lane.b32.xlu0 %v3909, 21
      %v4059 = vpop.permute.xlu0 %4058
      %4060 = vrot.lane.b32.xlu0 %v3917, 21
      %v4061 = vpop.permute.xlu0 %4060
      %4062 = vrot.lane.b32.xlu0 %v3929, 21
      %v4063 = vpop.permute.xlu0 %4062
      %4064 = vrot.lane.b32.xlu0 %v3937, 21
      %v4065 = vpop.permute.xlu0 %4064
      %4066 = vrot.lane.b32.xlu0 %v3949, 21
      %v4067 = vpop.permute.xlu0 %4066
      %4068 = vrot.lane.b32.xlu0 %v3957, 21
      %v4069 = vpop.permute.xlu0 %4068
      %4070 = vrot.lane.b32.xlu0 %v3969, 21
      %v4071 = vpop.permute.xlu0 %4070
      %4072 = vrot.lane.b32.xlu0 %v3977, 21
      %v4073 = vpop.permute.xlu0 %4072
      %4074 = vrot.lane.b32.xlu0 %v3989, 21
      %v4075 = vpop.permute.xlu0 %4074
      %4076 = vrot.lane.b32.xlu0 %v3997, 21
      %v4077 = vpop.permute.xlu0 %4076
      %4078 = vrot.lane.b32.xlu0 %v4009, 21
      %v4079 = vpop.permute.xlu0 %4078
      %4080 = vrot.lane.b32.xlu0 %v4017, 21
      %v4081 = vpop.permute.xlu0 %4080
      %v4098 = vunpack.c.l.b16 %v1776
      %v4099 = vunpack.c.l.b16 %v1777
      %v4100 = vunpack.c.l.b16 %v1778
      %v4101 = vunpack.c.l.b16 %v1779
      %v4102 = vunpack.c.l.b16 %v1780
      %v4103 = vunpack.c.l.b16 %v1781
      %v4104 = vunpack.c.l.b16 %v1782
      %v4105 = vunpack.c.l.b16 %v1783
      %v4106 = vunpack.c.l.b16 %v1784
      %v4107 = vunpack.c.l.b16 %v1785
      %v4108 = vunpack.c.l.b16 %v1786
      %v4109 = vunpack.c.l.b16 %v1787
      %v4110 = vunpack.c.l.b16 %v1788
      %v4111 = vunpack.c.l.b16 %v1789
      %v4112 = vunpack.c.l.b16 %v1790
      %v4113 = vunpack.c.l.b16 %v1791
      %v4114 = vpack.c.b16 %v3491, %v4098
      %v4115 = vpack.c.b16 %v3495, %v4099
      %v4116 = vpack.c.b16 %v3499, %v4100
      %v4117 = vpack.c.b16 %v3503, %v4101
      %v4118 = vpack.c.b16 %v3507, %v4102
      %v4119 = vpack.c.b16 %v3511, %v4103
      %v4120 = vpack.c.b16 %v3515, %v4104
      %v4121 = vpack.c.b16 %v3519, %v4105
      %v4122 = vpack.c.b16 %v3523, %v4106
      %v4123 = vpack.c.b16 %v3527, %v4107
      %v4124 = vpack.c.b16 %v3531, %v4108
      %v4125 = vpack.c.b16 %v3535, %v4109
      %v4126 = vpack.c.b16 %v3539, %v4110
      %v4127 = vpack.c.b16 %v3543, %v4111
      %v4128 = vpack.c.b16 %v3547, %v4112
      %v4129 = vpack.c.b16 %v3551, %v4113
      %v4130 = vrot.slane %v4114, 1
      %v4131 = vrot.slane %v3555, 1
      %v4132 = vsel %vm2433, %v4130, %v4131
      %v4133 = vrot.slane %v3682, 1
      %v4134 = vsel %vm2433, %v4131, %v4133
      %v4135 = vrot.slane %v4115, 1
      %v4136 = vrot.slane %v3557, 1
      %v4137 = vsel %vm2433, %v4135, %v4136
      %v4138 = vrot.slane %v3683, 1
      %v4139 = vsel %vm2433, %v4136, %v4138
      %v4140 = vrot.slane %v4116, 1
      %v4141 = vrot.slane %v3559, 1
      %v4142 = vsel %vm2433, %v4140, %v4141
      %v4143 = vrot.slane %v3684, 1
      %v4144 = vsel %vm2433, %v4141, %v4143
      %v4145 = vrot.slane %v4117, 1
      %v4146 = vrot.slane %v3561, 1
      %v4147 = vsel %vm2433, %v4145, %v4146
      %v4148 = vrot.slane %v3685, 1
      %v4149 = vsel %vm2433, %v4146, %v4148
      %v4150 = vrot.slane %v4118, 1
      %v4151 = vrot.slane %v3563, 1
      %v4152 = vsel %vm2433, %v4150, %v4151
      %v4153 = vrot.slane %v3686, 1
      %v4154 = vsel %vm2433, %v4151, %v4153
      %v4155 = vrot.slane %v4119, 1
      %v4156 = vrot.slane %v3565, 1
      %v4157 = vsel %vm2433, %v4155, %v4156
      %v4158 = vrot.slane %v3687, 1
      %v4159 = vsel %vm2433, %v4156, %v4158
      %v4160 = vrot.slane %v4120, 1
      %v4161 = vrot.slane %v3567, 1
      %v4162 = vsel %vm2433, %v4160, %v4161
      %v4163 = vrot.slane %v3688, 1
      %v4164 = vsel %vm2433, %v4161, %v4163
      %v4165 = vrot.slane %v4121, 1
      %v4166 = vrot.slane %v3569, 1
      %v4167 = vsel %vm2433, %v4165, %v4166
      %v4168 = vrot.slane %v3689, 1
      %v4169 = vsel %vm2433, %v4166, %v4168
      %v4170 = vrot.slane %v4122, 1
      %v4171 = vrot.slane %v3571, 1
      %v4172 = vsel %vm2433, %v4170, %v4171
      %v4173 = vrot.slane %v3690, 1
      %v4174 = vsel %vm2433, %v4171, %v4173
      %v4175 = vrot.slane %v4123, 1
      %v4176 = vrot.slane %v3573, 1
      %v4177 = vsel %vm2433, %v4175, %v4176
      %v4178 = vrot.slane %v3691, 1
      %v4179 = vsel %vm2433, %v4176, %v4178
      %v4180 = vrot.slane %v4124, 1
      %v4181 = vrot.slane %v3575, 1
      %v4182 = vsel %vm2433, %v4180, %v4181
      %v4183 = vrot.slane %v3692, 1
      %v4184 = vsel %vm2433, %v4181, %v4183
      %v4185 = vrot.slane %v4125, 1
      %v4186 = vrot.slane %v3577, 1
      %v4187 = vsel %vm2433, %v4185, %v4186
      %v4188 = vrot.slane %v3693, 1
      %v4189 = vsel %vm2433, %v4186, %v4188
      %v4190 = vrot.slane %v4126, 1
      %v4191 = vrot.slane %v3579, 1
      %v4192 = vsel %vm2433, %v4190, %v4191
      %v4193 = vrot.slane %v3694, 1
      %v4194 = vsel %vm2433, %v4191, %v4193
      %v4195 = vrot.slane %v4127, 1
      %v4196 = vrot.slane %v3581, 1
      %v4197 = vsel %vm2433, %v4195, %v4196
      %v4198 = vrot.slane %v3695, 1
      %v4199 = vsel %vm2433, %v4196, %v4198
      %v4200 = vrot.slane %v4128, 1
      %v4201 = vrot.slane %v3583, 1
      %v4202 = vsel %vm2433, %v4200, %v4201
      %v4203 = vrot.slane %v3696, 1
      %v4204 = vsel %vm2433, %v4201, %v4203
      %v4205 = vrot.slane %v4129, 1
      %v4206 = vrot.slane %v3585, 1
      %v4207 = vsel %vm2433, %v4205, %v4206
      %v4208 = vrot.slane %v3697, 1
      %v4209 = vsel %vm2433, %v4206, %v4208
      %4210 = vrot.lane.b32.xlu0 %v4132, 24
      %v4211 = vpop.permute.xlu0 %4210
      %4212 = vrot.lane.b32.xlu0 %v4134, 24
      %v4213 = vpop.permute.xlu0 %4212
      %4214 = vrot.lane.b32.xlu0 %v4137, 24
      %v4215 = vpop.permute.xlu0 %4214
      %4216 = vrot.lane.b32.xlu0 %v4139, 24
      %v4217 = vpop.permute.xlu0 %4216
      %4218 = vrot.lane.b32.xlu0 %v4142, 24
      %v4219 = vpop.permute.xlu0 %4218
      %4220 = vrot.lane.b32.xlu0 %v4144, 24
      %v4221 = vpop.permute.xlu0 %4220
      %4222 = vrot.lane.b32.xlu0 %v4147, 24
      %v4223 = vpop.permute.xlu0 %4222
      %4224 = vrot.lane.b32.xlu0 %v4149, 24
      %v4225 = vpop.permute.xlu0 %4224
      %4226 = vrot.lane.b32.xlu0 %v4152, 24
      %v4227 = vpop.permute.xlu0 %4226
      %4228 = vrot.lane.b32.xlu0 %v4154, 24
      %v4229 = vpop.permute.xlu0 %4228
      %4230 = vrot.lane.b32.xlu0 %v4157, 24
      %v4231 = vpop.permute.xlu0 %4230
      %4232 = vrot.lane.b32.xlu0 %v4159, 24
      %v4233 = vpop.permute.xlu0 %4232
      %4234 = vrot.lane.b32.xlu0 %v4162, 24
      %v4235 = vpop.permute.xlu0 %4234
      %4236 = vrot.lane.b32.xlu0 %v4164, 24
      %v4237 = vpop.permute.xlu0 %4236
      %4238 = vrot.lane.b32.xlu0 %v4167, 24
      %v4239 = vpop.permute.xlu0 %4238
      %4240 = vrot.lane.b32.xlu0 %v4169, 24
      %v4241 = vpop.permute.xlu0 %4240
      %4242 = vrot.lane.b32.xlu0 %v4172, 24
      %v4243 = vpop.permute.xlu0 %4242
      %4244 = vrot.lane.b32.xlu0 %v4174, 24
      %v4245 = vpop.permute.xlu0 %4244
      %4246 = vrot.lane.b32.xlu0 %v4177, 24
      %v4247 = vpop.permute.xlu0 %4246
      %4248 = vrot.lane.b32.xlu0 %v4179, 24
      %v4249 = vpop.permute.xlu0 %4248
      %4250 = vrot.lane.b32.xlu0 %v4182, 24
      %v4251 = vpop.permute.xlu0 %4250
      %4252 = vrot.lane.b32.xlu0 %v4184, 24
      %v4253 = vpop.permute.xlu0 %4252
      %4254 = vrot.lane.b32.xlu0 %v4187, 24
      %v4255 = vpop.permute.xlu0 %4254
      %4256 = vrot.lane.b32.xlu0 %v4189, 24
      %v4257 = vpop.permute.xlu0 %4256
      %4258 = vrot.lane.b32.xlu0 %v4192, 24
      %v4259 = vpop.permute.xlu0 %4258
      %4260 = vrot.lane.b32.xlu0 %v4194, 24
      %v4261 = vpop.permute.xlu0 %4260
      %4262 = vrot.lane.b32.xlu0 %v4197, 24
      %v4263 = vpop.permute.xlu0 %4262
      %4264 = vrot.lane.b32.xlu0 %v4199, 24
      %v4265 = vpop.permute.xlu0 %4264
      %4266 = vrot.lane.b32.xlu0 %v4202, 24
      %v4267 = vpop.permute.xlu0 %4266
      %4268 = vrot.lane.b32.xlu0 %v4204, 24
      %v4269 = vpop.permute.xlu0 %4268
      %4270 = vrot.lane.b32.xlu0 %v4207, 24
      %v4271 = vpop.permute.xlu0 %4270
      %4272 = vrot.lane.b32.xlu0 %v4209, 24
      %v4273 = vpop.permute.xlu0 %4272
      %vm4274 = vcmask 23552
      %v4276 = vsel %vm4274, %v1920, %v2322
      %v4278 = vsel %vm4274, %v1921, %v2324
      %v4280 = vsel %vm4274, %v1922, %v2326
      %v4282 = vsel %vm4274, %v1923, %v2328
      %v4284 = vsel %vm4274, %v1924, %v2330
      %v4286 = vsel %vm4274, %v1925, %v2332
      %v4288 = vsel %vm4274, %v1926, %v2334
      %v4290 = vsel %vm4274, %v1927, %v2336
      %v4292 = vsel %vm4274, %v1928, %v2338
      %v4294 = vsel %vm4274, %v1929, %v2340
      %v4296 = vsel %vm4274, %v1930, %v2342
      %v4298 = vsel %vm4274, %v1931, %v2344
      %v4300 = vsel %vm4274, %v1932, %v2346
      %v4302 = vsel %vm4274, %v1933, %v2348
      %v4304 = vsel %vm4274, %v1934, %v2350
      %v4306 = vsel %vm4274, %v1935, %v2352
      %v4308 = vsel %vm4274, %v1936, %v2354
      %v4310 = vsel %vm4274, %v1937, %v2356
      %v4312 = vsel %vm4274, %v1938, %v2358
      %v4314 = vsel %vm4274, %v1939, %v2360
      %v4316 = vsel %vm4274, %v1940, %v2362
      %v4318 = vsel %vm4274, %v1941, %v2364
      %v4320 = vsel %vm4274, %v1942, %v2366
      %v4322 = vsel %vm4274, %v1943, %v2368
      %v4324 = vsel %vm4274, %v1944, %v2370
      %v4326 = vsel %vm4274, %v1945, %v2372
      %v4328 = vsel %vm4274, %v1946, %v2374
      %v4330 = vsel %vm4274, %v1947, %v2376
      %v4332 = vsel %vm4274, %v1948, %v2378
      %v4334 = vsel %vm4274, %v1949, %v2380
      %v4336 = vsel %vm4274, %v1950, %v2382
      %v4338 = vsel %vm4274, %v1951, %v2384
      %vm4339 = vcmask 48128
      %v4341 = vsel %vm4339, %v4276, %v2515
      %v4343 = vsel %vm4339, %v4278, %v2517
      %v4345 = vsel %vm4339, %v4280, %v2519
      %v4347 = vsel %vm4339, %v4282, %v2521
      %v4349 = vsel %vm4339, %v4284, %v2523
      %v4351 = vsel %vm4339, %v4286, %v2525
      %v4353 = vsel %vm4339, %v4288, %v2527
      %v4355 = vsel %vm4339, %v4290, %v2529
      %v4357 = vsel %vm4339, %v4292, %v2531
      %v4359 = vsel %vm4339, %v4294, %v2533
      %v4361 = vsel %vm4339, %v4296, %v2535
      %v4363 = vsel %vm4339, %v4298, %v2537
      %v4365 = vsel %vm4339, %v4300, %v2539
      %v4367 = vsel %vm4339, %v4302, %v2541
      %v4369 = vsel %vm4339, %v4304, %v2543
      %v4371 = vsel %vm4339, %v4306, %v2545
      %v4373 = vsel %vm4339, %v4308, %v2547
      %v4375 = vsel %vm4339, %v4310, %v2549
      %v4377 = vsel %vm4339, %v4312, %v2551
      %v4379 = vsel %vm4339, %v4314, %v2553
      %v4381 = vsel %vm4339, %v4316, %v2555
      %v4383 = vsel %vm4339, %v4318, %v2557
      %v4385 = vsel %vm4339, %v4320, %v2559
      %v4387 = vsel %vm4339, %v4322, %v2561
      %v4389 = vsel %vm4339, %v4324, %v2563
      %v4391 = vsel %vm4339, %v4326, %v2565
      %v4393 = vsel %vm4339, %v4328, %v2567
      %v4395 = vsel %vm4339, %v4330, %v2569
      %v4397 = vsel %vm4339, %v4332, %v2571
      %v4399 = vsel %vm4339, %v4334, %v2573
      %v4401 = vsel %vm4339, %v4336, %v2575
      %v4403 = vsel %vm4339, %v4338, %v2577
      %vm4404 = vcmask 72704
      %v4406 = vsel %vm4404, %v4341, %v2739
      %v4408 = vsel %vm4404, %v4343, %v2741
      %v4410 = vsel %vm4404, %v4345, %v2743
      %v4412 = vsel %vm4404, %v4347, %v2745
      %v4414 = vsel %vm4404, %v4349, %v2747
      %v4416 = vsel %vm4404, %v4351, %v2749
      %v4418 = vsel %vm4404, %v4353, %v2751
      %v4420 = vsel %vm4404, %v4355, %v2753
      %v4422 = vsel %vm4404, %v4357, %v2755
      %v4424 = vsel %vm4404, %v4359, %v2757
      %v4426 = vsel %vm4404, %v4361, %v2759
      %v4428 = vsel %vm4404, %v4363, %v2761
      %v4430 = vsel %vm4404, %v4365, %v2763
      %v4432 = vsel %vm4404, %v4367, %v2765
      %v4434 = vsel %vm4404, %v4369, %v2767
      %v4436 = vsel %vm4404, %v4371, %v2769
      %v4438 = vsel %vm4404, %v4373, %v2771
      %v4440 = vsel %vm4404, %v4375, %v2773
      %v4442 = vsel %vm4404, %v4377, %v2775
      %v4444 = vsel %vm4404, %v4379, %v2777
      %v4446 = vsel %vm4404, %v4381, %v2779
      %v4448 = vsel %vm4404, %v4383, %v2781
      %v4450 = vsel %vm4404, %v4385, %v2783
      %v4452 = vsel %vm4404, %v4387, %v2785
      %v4454 = vsel %vm4404, %v4389, %v2787
      %v4456 = vsel %vm4404, %v4391, %v2789
      %v4458 = vsel %vm4404, %v4393, %v2791
      %v4460 = vsel %vm4404, %v4395, %v2793
      %v4462 = vsel %vm4404, %v4397, %v2795
      %v4464 = vsel %vm4404, %v4399, %v2797
      %v4466 = vsel %vm4404, %v4401, %v2799
      %v4468 = vsel %vm4404, %v4403, %v2801
      %vm4469 = vcmask 97280
      %v4471 = vsel %vm4469, %v4406, %v3171
      %v4473 = vsel %vm4469, %v4408, %v3173
      %v4475 = vsel %vm4469, %v4410, %v3175
      %v4477 = vsel %vm4469, %v4412, %v3177
      %v4479 = vsel %vm4469, %v4414, %v3179
      %v4481 = vsel %vm4469, %v4416, %v3181
      %v4483 = vsel %vm4469, %v4418, %v3183
      %v4485 = vsel %vm4469, %v4420, %v3185
      %v4487 = vsel %vm4469, %v4422, %v3187
      %v4489 = vsel %vm4469, %v4424, %v3189
      %v4491 = vsel %vm4469, %v4426, %v3191
      %v4493 = vsel %vm4469, %v4428, %v3193
      %v4495 = vsel %vm4469, %v4430, %v3195
      %v4497 = vsel %vm4469, %v4432, %v3197
      %v4499 = vsel %vm4469, %v4434, %v3199
      %v4501 = vsel %vm4469, %v4436, %v3201
      %v4503 = vsel %vm4469, %v4438, %v3203
      %v4505 = vsel %vm4469, %v4440, %v3205
      %v4507 = vsel %vm4469, %v4442, %v3207
      %v4509 = vsel %vm4469, %v4444, %v3209
      %v4511 = vsel %vm4469, %v4446, %v3211
      %v4513 = vsel %vm4469, %v4448, %v3213
      %v4515 = vsel %vm4469, %v4450, %v3215
      %v4517 = vsel %vm4469, %v4452, %v3217
      %v4519 = vsel %vm4469, %v4454, %v3219
      %v4521 = vsel %vm4469, %v4456, %v3221
      %v4523 = vsel %vm4469, %v4458, %v3223
      %v4525 = vsel %vm4469, %v4460, %v3225
      %v4527 = vsel %vm4469, %v4462, %v3227
      %v4529 = vsel %vm4469, %v4464, %v3229
      %v4531 = vsel %vm4469, %v4466, %v3231
      %v4533 = vsel %vm4469, %v4468, %v3233
      %vm4534 = vcmask 121856
      %v4536 = vsel %vm4534, %v4471, %v3363
      %v4538 = vsel %vm4534, %v4473, %v3365
      %v4540 = vsel %vm4534, %v4475, %v3367
      %v4542 = vsel %vm4534, %v4477, %v3369
      %v4544 = vsel %vm4534, %v4479, %v3371
      %v4546 = vsel %vm4534, %v4481, %v3373
      %v4548 = vsel %vm4534, %v4483, %v3375
      %v4550 = vsel %vm4534, %v4485, %v3377
      %v4552 = vsel %vm4534, %v4487, %v3379
      %v4554 = vsel %vm4534, %v4489, %v3381
      %v4556 = vsel %vm4534, %v4491, %v3383
      %v4558 = vsel %vm4534, %v4493, %v3385
      %v4560 = vsel %vm4534, %v4495, %v3387
      %v4562 = vsel %vm4534, %v4497, %v3389
      %v4564 = vsel %vm4534, %v4499, %v3391
      %v4566 = vsel %vm4534, %v4501, %v3393
      %v4568 = vsel %vm4534, %v4503, %v3395
      %v4570 = vsel %vm4534, %v4505, %v3397
      %v4572 = vsel %vm4534, %v4507, %v3399
      %v4574 = vsel %vm4534, %v4509, %v3401
      %v4576 = vsel %vm4534, %v4511, %v3403
      %v4578 = vsel %vm4534, %v4513, %v3405
      %v4580 = vsel %vm4534, %v4515, %v3407
      %v4582 = vsel %vm4534, %v4517, %v3409
      %v4584 = vsel %vm4534, %v4519, %v3411
      %v4586 = vsel %vm4534, %v4521, %v3413
      %v4588 = vsel %vm4534, %v4523, %v3415
      %v4590 = vsel %vm4534, %v4525, %v3417
      %v4592 = vsel %vm4534, %v4527, %v3419
      %v4594 = vsel %vm4534, %v4529, %v3421
      %v4596 = vsel %vm4534, %v4531, %v3423
      %v4598 = vsel %vm4534, %v4533, %v3425
      %vm4599 = vcmask 146432
      %v4601 = vsel %vm4599, %v4536, %v3587
      %v4603 = vsel %vm4599, %v4538, %v3589
      %v4605 = vsel %vm4599, %v4540, %v3591
      %v4607 = vsel %vm4599, %v4542, %v3593
      %v4609 = vsel %vm4599, %v4544, %v3595
      %v4611 = vsel %vm4599, %v4546, %v3597
      %v4613 = vsel %vm4599, %v4548, %v3599
      %v4615 = vsel %vm4599, %v4550, %v3601
      %v4617 = vsel %vm4599, %v4552, %v3603
      %v4619 = vsel %vm4599, %v4554, %v3605
      %v4621 = vsel %vm4599, %v4556, %v3607
      %v4623 = vsel %vm4599, %v4558, %v3609
      %v4625 = vsel %vm4599, %v4560, %v3611
      %v4627 = vsel %vm4599, %v4562, %v3613
      %v4629 = vsel %vm4599, %v4564, %v3615
      %v4631 = vsel %vm4599, %v4566, %v3617
      %v4633 = vsel %vm4599, %v4568, %v3619
      %v4635 = vsel %vm4599, %v4570, %v3621
      %v4637 = vsel %vm4599, %v4572, %v3623
      %v4639 = vsel %vm4599, %v4574, %v3625
      %v4641 = vsel %vm4599, %v4576, %v3627
      %v4643 = vsel %vm4599, %v4578, %v3629
      %v4645 = vsel %vm4599, %v4580, %v3631
      %v4647 = vsel %vm4599, %v4582, %v3633
      %v4649 = vsel %vm4599, %v4584, %v3635
      %v4651 = vsel %vm4599, %v4586, %v3637
      %v4653 = vsel %vm4599, %v4588, %v3639
      %v4655 = vsel %vm4599, %v4590, %v3641
      %v4657 = vsel %vm4599, %v4592, %v3643
      %v4659 = vsel %vm4599, %v4594, %v3645
      %v4661 = vsel %vm4599, %v4596, %v3647
      %v4663 = vsel %vm4599, %v4598, %v3649
      %vm4664 = vcmask 171008
      %v4666 = vsel %vm4664, %v4601, %v4019
      %v4668 = vsel %vm4664, %v4603, %v4021
      %v4670 = vsel %vm4664, %v4605, %v4023
      %v4672 = vsel %vm4664, %v4607, %v4025
      %v4674 = vsel %vm4664, %v4609, %v4027
      %v4676 = vsel %vm4664, %v4611, %v4029
      %v4678 = vsel %vm4664, %v4613, %v4031
      %v4680 = vsel %vm4664, %v4615, %v4033
      %v4682 = vsel %vm4664, %v4617, %v4035
      %v4684 = vsel %vm4664, %v4619, %v4037
      %v4686 = vsel %vm4664, %v4621, %v4039
      %v4688 = vsel %vm4664, %v4623, %v4041
      %v4690 = vsel %vm4664, %v4625, %v4043
      %v4692 = vsel %vm4664, %v4627, %v4045
      %v4694 = vsel %vm4664, %v4629, %v4047
      %v4696 = vsel %vm4664, %v4631, %v4049
      %v4698 = vsel %vm4664, %v4633, %v4051
      %v4700 = vsel %vm4664, %v4635, %v4053
      %v4702 = vsel %vm4664, %v4637, %v4055
      %v4704 = vsel %vm4664, %v4639, %v4057
      %v4706 = vsel %vm4664, %v4641, %v4059
      %v4708 = vsel %vm4664, %v4643, %v4061
      %v4710 = vsel %vm4664, %v4645, %v4063
      %v4712 = vsel %vm4664, %v4647, %v4065
      %v4714 = vsel %vm4664, %v4649, %v4067
      %v4716 = vsel %vm4664, %v4651, %v4069
      %v4718 = vsel %vm4664, %v4653, %v4071
      %v4720 = vsel %vm4664, %v4655, %v4073
      %v4722 = vsel %vm4664, %v4657, %v4075
      %v4724 = vsel %vm4664, %v4659, %v4077
      %v4726 = vsel %vm4664, %v4661, %v4079
      %v4728 = vsel %vm4664, %v4663, %v4081
      %vm4729 = vcmask 195584
      %v4731 = vsel %vm4729, %v4666, %v4211
      %v4733 = vsel %vm4729, %v4668, %v4213
      %v4735 = vsel %vm4729, %v4670, %v4215
      %v4737 = vsel %vm4729, %v4672, %v4217
      %v4739 = vsel %vm4729, %v4674, %v4219
      %v4741 = vsel %vm4729, %v4676, %v4221
      %v4743 = vsel %vm4729, %v4678, %v4223
      %v4745 = vsel %vm4729, %v4680, %v4225
      %v4747 = vsel %vm4729, %v4682, %v4227
      %v4749 = vsel %vm4729, %v4684, %v4229
      %v4751 = vsel %vm4729, %v4686, %v4231
      %v4753 = vsel %vm4729, %v4688, %v4233
      %v4755 = vsel %vm4729, %v4690, %v4235
      %v4757 = vsel %vm4729, %v4692, %v4237
      %v4759 = vsel %vm4729, %v4694, %v4239
      %v4761 = vsel %vm4729, %v4696, %v4241
      %v4763 = vsel %vm4729, %v4698, %v4243
      %v4765 = vsel %vm4729, %v4700, %v4245
      %v4767 = vsel %vm4729, %v4702, %v4247
      %v4769 = vsel %vm4729, %v4704, %v4249
      %v4771 = vsel %vm4729, %v4706, %v4251
      %v4773 = vsel %vm4729, %v4708, %v4253
      %v4775 = vsel %vm4729, %v4710, %v4255
      %v4777 = vsel %vm4729, %v4712, %v4257
      %v4779 = vsel %vm4729, %v4714, %v4259
      %v4781 = vsel %vm4729, %v4716, %v4261
      %v4783 = vsel %vm4729, %v4718, %v4263
      %v4785 = vsel %vm4729, %v4720, %v4265
      %v4787 = vsel %vm4729, %v4722, %v4267
      %v4789 = vsel %vm4729, %v4724, %v4269
      %v4791 = vsel %vm4729, %v4726, %v4271
      %v4793 = vsel %vm4729, %v4728, %v4273
      %v4794 = vld [vmem:[%s1] sm:$0xf]
      %v4795 = vld [vmem:[%s1 + $0x4] sm:$0xf]
      %v4796 = vld [vmem:[%s1 + $0x8] sm:$0xf]
      %v4797 = vld [vmem:[%s1 + $0xc] sm:$0x3]
      %v4798 = vld [vmem:[%s2] sm:$0x1]
      %v4800 = vlaneseq
      %v4801 = vshrl.u32 %v4800, 7
      %v4802 = vsub.s32 0, %v4801
      %v4803 = vrot.slane %v4798, %v4802
      %v4809 = vunpack.c.l.b16 %v4794
      %v4810 = vunpack.c.l.b16 %v4795
      %v4811 = vunpack.c.l.b16 %v4796
      %v4812 = vunpack.c.l.b16 %v4797
      %v4813 = vpack.c.b16 %v4810, %v4809
      %v4814 = vpack.c.b16 %v4812, %v4811
      %vm4816 = vcmask 220160
      %v4817 = vsel %vm4816, %v4731, 0
      %v4819 = vsel %vm4816, %v4733, 0
      %v4821 = vsel %vm4816, %v4735, 0
      %v4823 = vsel %vm4816, %v4737, 0
      %v4825 = vsel %vm4816, %v4739, 0
      %v4827 = vsel %vm4816, %v4741, 0
      %v4829 = vsel %vm4816, %v4743, 0
      %v4831 = vsel %vm4816, %v4745, 0
      %v4833 = vsel %vm4816, %v4747, 0
      %v4835 = vsel %vm4816, %v4749, 0
      %v4837 = vsel %vm4816, %v4751, 0
      %v4839 = vsel %vm4816, %v4753, 0
      %v4841 = vsel %vm4816, %v4755, 0
      %v4843 = vsel %vm4816, %v4757, 0
      %v4845 = vsel %vm4816, %v4759, 0
      %v4847 = vsel %vm4816, %v4761, 0
      %v4849 = vsel %vm4816, %v4763, 0
      %v4851 = vsel %vm4816, %v4765, 0
      %v4853 = vsel %vm4816, %v4767, 0
      %v4855 = vsel %vm4816, %v4769, 0
      %v4857 = vsel %vm4816, %v4771, 0
      %v4859 = vsel %vm4816, %v4773, 0
      %v4861 = vsel %vm4816, %v4775, 0
      %v4863 = vsel %vm4816, %v4777, 0
      %v4865 = vsel %vm4816, %v4779, 0
      %v4867 = vsel %vm4816, %v4781, 0
      %v4869 = vsel %vm4816, %v4783, 0
      %v4871 = vsel %vm4816, %v4785, 0
      %v4873 = vsel %vm4816, %v4787, 0
      %v4875 = vsel %vm4816, %v4789, 0
      %v4877 = vsel %vm4816, %v4791, 0
      %v4879 = vsel %vm4816, %v4793, 0
      %vm4881 = vcmask 1044480
      %vm4882 = vcmask 1045504
      %v4883 = vsel %vm4881, 4294967295, 65535
      %v4884 = vsel %vm4882, %v4883, 0
      %v4886 = vand.u32 %v4814, %v4884
      %4888 = vmatprep.subr.bf16.mxu0 0
      %4889 = vmatpush1.bf16.msra.mxu0 0
      %4890 = vmatprep.subr.bf16.mxu0 0
      %4891 = vmatpush1.bf16.msra.mxu0 0
      %4892 = vmatprep.subr.bf16.mxu0 0
      %4893 = vmatpush1.bf16.msra.mxu0 0
      %4894 = vmatprep.subr.bf16.mxu0 0
      %4895 = vmatpush1.bf16.msra.mxu0 0
      %4896 = vmatprep.subr.bf16.mxu0 0
      %4897 = vmatpush1.bf16.msra.mxu0 0
      %4898 = vmatprep.subr.bf16.mxu0 0
      %4899 = vmatpush1.bf16.msra.mxu0 0
      %4900 = vmatprep.subr.bf16.mxu0 0
      %4901 = vmatpush1.bf16.msra.mxu0 %v4886
      %4902 = vmatprep.subr.bf16.mxu0 0
      %4903 = vmatpush1.bf16.msra.mxu0 %v4813
      %4904 = vmatprep.subr.bf16.mxu0 0
      %4905 = vmatpush2.bf16.msra.mxu0 0
      %4906 = vmatprep.subr.bf16.mxu0 0
      %4907 = vmatpush2.bf16.msra.mxu0 0
      %4908 = vmatprep.subr.bf16.mxu0 0
      %4909 = vmatpush2.bf16.msra.mxu0 0
      %4910 = vmatprep.subr.bf16.mxu0 0
      %4911 = vmatpush2.bf16.msra.mxu0 0
      %4912 = vmatprep.subr.bf16.mxu0 0
      %4913 = vmatpush2.bf16.msra.mxu0 0
      %4914 = vmatprep.subr.bf16.mxu0 0
      %4915 = vmatpush2.bf16.msra.mxu0 0
      %4916 = vmatprep.subr.bf16.mxu0 0
      %4917 = vmatpush2.bf16.msra.mxu0 0
      %4918 = vmatprep.subr.bf16.mxu0 0
      %4919 = vmatpush2.bf16.msra.mxu0 0
      %4920 = vmatprep.mubr.bf16.mxu0 0
      %4921 = vmatmul.mubr.bf16.gmra.mxu0 %v4817
      %v4922 = vpop.f32.mrf.mxu0
      %v4923 = vadd.f32 %v4803, %v4922
      %v4924 = vpop.f32.mrf.mxu0
      %v4925 = vpop.f32.mrf.mxu0
      %v4926 = vadd.f32 %v4803, %v4925
      %v4927 = vpop.f32.mrf.mxu0
      %4928 = vmatprep.mubr.bf16.mxu0 0
      %4929 = vmatmul.mubr.bf16.gmra.mxu0 %v4819
      %v4930 = vpop.f32.mrf.mxu0
      %v4931 = vadd.f32 %v4803, %v4930
      %v4932 = vpop.f32.mrf.mxu0
      %v4933 = vpop.f32.mrf.mxu0
      %v4934 = vadd.f32 %v4803, %v4933
      %v4935 = vpop.f32.mrf.mxu0
      %4936 = vmatprep.mubr.bf16.mxu0 0
      %4937 = vmatmul.mubr.bf16.gmra.mxu0 %v4821
      %v4938 = vpop.f32.mrf.mxu0
      %v4939 = vadd.f32 %v4803, %v4938
      %v4940 = vpop.f32.mrf.mxu0
      %v4941 = vpop.f32.mrf.mxu0
      %v4942 = vadd.f32 %v4803, %v4941
      %v4943 = vpop.f32.mrf.mxu0
      %4944 = vmatprep.mubr.bf16.mxu0 0
      %4945 = vmatmul.mubr.bf16.gmra.mxu0 %v4823
      %v4946 = vpop.f32.mrf.mxu0
      %v4947 = vadd.f32 %v4803, %v4946
      %v4948 = vpop.f32.mrf.mxu0
      %v4949 = vpop.f32.mrf.mxu0
      %v4950 = vadd.f32 %v4803, %v4949
      %v4951 = vpop.f32.mrf.mxu0
      %4952 = vmatprep.mubr.bf16.mxu0 0
      %4953 = vmatmul.mubr.bf16.gmra.mxu0 %v4825
      %v4954 = vpop.f32.mrf.mxu0
      %v4955 = vadd.f32 %v4803, %v4954
      %v4956 = vpop.f32.mrf.mxu0
      %v4957 = vpop.f32.mrf.mxu0
      %v4958 = vadd.f32 %v4803, %v4957
      %v4959 = vpop.f32.mrf.mxu0
      %4960 = vmatprep.mubr.bf16.mxu0 0
      %4961 = vmatmul.mubr.bf16.gmra.mxu0 %v4827
      %v4962 = vpop.f32.mrf.mxu0
      %v4963 = vadd.f32 %v4803, %v4962
      %v4964 = vpop.f32.mrf.mxu0
      %v4965 = vpop.f32.mrf.mxu0
      %v4966 = vadd.f32 %v4803, %v4965
      %v4967 = vpop.f32.mrf.mxu0
      %4968 = vmatprep.mubr.bf16.mxu0 0
      %4969 = vmatmul.mubr.bf16.gmra.mxu0 %v4829
      %v4970 = vpop.f32.mrf.mxu0
      %v4971 = vadd.f32 %v4803, %v4970
      %v4972 = vpop.f32.mrf.mxu0
      %v4973 = vpop.f32.mrf.mxu0
      %v4974 = vadd.f32 %v4803, %v4973
      %v4975 = vpop.f32.mrf.mxu0
      %4976 = vmatprep.mubr.bf16.mxu0 0
      %4977 = vmatmul.mubr.bf16.gmra.mxu0 %v4831
      %v4978 = vpop.f32.mrf.mxu0
      %v4979 = vadd.f32 %v4803, %v4978
      %v4980 = vpop.f32.mrf.mxu0
      %v4981 = vpop.f32.mrf.mxu0
      %v4982 = vadd.f32 %v4803, %v4981
      %v4983 = vpop.f32.mrf.mxu0
      %4984 = vmatprep.mubr.bf16.mxu0 0
      %4985 = vmatmul.mubr.bf16.gmra.mxu0 %v4833
      %v4986 = vpop.f32.mrf.mxu0
      %v4987 = vadd.f32 %v4803, %v4986
      %v4988 = vpop.f32.mrf.mxu0
      %v4989 = vpop.f32.mrf.mxu0
      %v4990 = vadd.f32 %v4803, %v4989
      %v4991 = vpop.f32.mrf.mxu0
      %4992 = vmatprep.mubr.bf16.mxu0 0
      %4993 = vmatmul.mubr.bf16.gmra.mxu0 %v4835
      %v4994 = vpop.f32.mrf.mxu0
      %v4995 = vadd.f32 %v4803, %v4994
      %v4996 = vpop.f32.mrf.mxu0
      %v4997 = vpop.f32.mrf.mxu0
      %v4998 = vadd.f32 %v4803, %v4997
      %v4999 = vpop.f32.mrf.mxu0
      %5000 = vmatprep.mubr.bf16.mxu0 0
      %5001 = vmatmul.mubr.bf16.gmra.mxu0 %v4837
      %v5002 = vpop.f32.mrf.mxu0
      %v5003 = vadd.f32 %v4803, %v5002
      %v5004 = vpop.f32.mrf.mxu0
      %v5005 = vpop.f32.mrf.mxu0
      %v5006 = vadd.f32 %v4803, %v5005
      %v5007 = vpop.f32.mrf.mxu0
      %5008 = vmatprep.mubr.bf16.mxu0 0
      %5009 = vmatmul.mubr.bf16.gmra.mxu0 %v4839
      %v5010 = vpop.f32.mrf.mxu0
      %v5011 = vadd.f32 %v4803, %v5010
      %v5012 = vpop.f32.mrf.mxu0
      %v5013 = vpop.f32.mrf.mxu0
      %v5014 = vadd.f32 %v4803, %v5013
      %v5015 = vpop.f32.mrf.mxu0
      %5016 = vmatprep.mubr.bf16.mxu0 0
      %5017 = vmatmul.mubr.bf16.gmra.mxu0 %v4841
      %v5018 = vpop.f32.mrf.mxu0
      %v5019 = vadd.f32 %v4803, %v5018
      %v5020 = vpop.f32.mrf.mxu0
      %v5021 = vpop.f32.mrf.mxu0
      %v5022 = vadd.f32 %v4803, %v5021
      %v5023 = vpop.f32.mrf.mxu0
      %5024 = vmatprep.mubr.bf16.mxu0 0
      %5025 = vmatmul.mubr.bf16.gmra.mxu0 %v4843
      %v5026 = vpop.f32.mrf.mxu0
      %v5027 = vadd.f32 %v4803, %v5026
      %v5028 = vpop.f32.mrf.mxu0
      %v5029 = vpop.f32.mrf.mxu0
      %v5030 = vadd.f32 %v4803, %v5029
      %v5031 = vpop.f32.mrf.mxu0
      %5032 = vmatprep.mubr.bf16.mxu0 0
      %5033 = vmatmul.mubr.bf16.gmra.mxu0 %v4845
      %v5034 = vpop.f32.mrf.mxu0
      %v5035 = vadd.f32 %v4803, %v5034
      %v5036 = vpop.f32.mrf.mxu0
      %v5037 = vpop.f32.mrf.mxu0
      %v5038 = vadd.f32 %v4803, %v5037
      %v5039 = vpop.f32.mrf.mxu0
      %5040 = vmatprep.mubr.bf16.mxu0 0
      %5041 = vmatmul.mubr.bf16.gmra.mxu0 %v4847
      %v5042 = vpop.f32.mrf.mxu0
      %v5043 = vadd.f32 %v4803, %v5042
      %v5044 = vpop.f32.mrf.mxu0
      %v5045 = vpop.f32.mrf.mxu0
      %v5046 = vadd.f32 %v4803, %v5045
      %v5047 = vpop.f32.mrf.mxu0
      %5048 = vmatprep.mubr.bf16.mxu0 0
      %5049 = vmatmul.mubr.bf16.gmra.mxu0 %v4849
      %v5050 = vpop.f32.mrf.mxu0
      %v5051 = vadd.f32 %v4803, %v5050
      %v5052 = vpop.f32.mrf.mxu0
      %v5053 = vpop.f32.mrf.mxu0
      %v5054 = vadd.f32 %v4803, %v5053
      %v5055 = vpop.f32.mrf.mxu0
      %5056 = vmatprep.mubr.bf16.mxu0 0
      %5057 = vmatmul.mubr.bf16.gmra.mxu0 %v4851
      %v5058 = vpop.f32.mrf.mxu0
      %v5059 = vadd.f32 %v4803, %v5058
      %v5060 = vpop.f32.mrf.mxu0
      %v5061 = vpop.f32.mrf.mxu0
      %v5062 = vadd.f32 %v4803, %v5061
      %v5063 = vpop.f32.mrf.mxu0
      %5064 = vmatprep.mubr.bf16.mxu0 0
      %5065 = vmatmul.mubr.bf16.gmra.mxu0 %v4853
      %v5066 = vpop.f32.mrf.mxu0
      %v5067 = vadd.f32 %v4803, %v5066
      %v5068 = vpop.f32.mrf.mxu0
      %v5069 = vpop.f32.mrf.mxu0
      %v5070 = vadd.f32 %v4803, %v5069
      %v5071 = vpop.f32.mrf.mxu0
      %5072 = vmatprep.mubr.bf16.mxu0 0
      %5073 = vmatmul.mubr.bf16.gmra.mxu0 %v4855
      %v5074 = vpop.f32.mrf.mxu0
      %v5075 = vadd.f32 %v4803, %v5074
      %v5076 = vpop.f32.mrf.mxu0
      %v5077 = vpop.f32.mrf.mxu0
      %v5078 = vadd.f32 %v4803, %v5077
      %v5079 = vpop.f32.mrf.mxu0
      %5080 = vmatprep.mubr.bf16.mxu0 0
      %5081 = vmatmul.mubr.bf16.gmra.mxu0 %v4857
      %v5082 = vpop.f32.mrf.mxu0
      %v5083 = vadd.f32 %v4803, %v5082
      %v5084 = vpop.f32.mrf.mxu0
      %v5085 = vpop.f32.mrf.mxu0
      %v5086 = vadd.f32 %v4803, %v5085
      %v5087 = vpop.f32.mrf.mxu0
      %5088 = vmatprep.mubr.bf16.mxu0 0
      %5089 = vmatmul.mubr.bf16.gmra.mxu0 %v4859
      %v5090 = vpop.f32.mrf.mxu0
      %v5091 = vadd.f32 %v4803, %v5090
      %v5092 = vpop.f32.mrf.mxu0
      %v5093 = vpop.f32.mrf.mxu0
      %v5094 = vadd.f32 %v4803, %v5093
      %v5095 = vpop.f32.mrf.mxu0
      %5096 = vmatprep.mubr.bf16.mxu0 0
      %5097 = vmatmul.mubr.bf16.gmra.mxu0 %v4861
      %v5098 = vpop.f32.mrf.mxu0
      %v5099 = vadd.f32 %v4803, %v5098
      %v5100 = vpop.f32.mrf.mxu0
      %v5101 = vpop.f32.mrf.mxu0
      %v5102 = vadd.f32 %v4803, %v5101
      %v5103 = vpop.f32.mrf.mxu0
      %5104 = vmatprep.mubr.bf16.mxu0 0
      %5105 = vmatmul.mubr.bf16.gmra.mxu0 %v4863
      %v5106 = vpop.f32.mrf.mxu0
      %v5107 = vadd.f32 %v4803, %v5106
      %v5108 = vpop.f32.mrf.mxu0
      %v5109 = vpop.f32.mrf.mxu0
      %v5110 = vadd.f32 %v4803, %v5109
      %v5111 = vpop.f32.mrf.mxu0
      %5112 = vmatprep.mubr.bf16.mxu0 0
      %5113 = vmatmul.mubr.bf16.gmra.mxu0 %v4865
      %v5114 = vpop.f32.mrf.mxu0
      %v5115 = vadd.f32 %v4803, %v5114
      %v5116 = vpop.f32.mrf.mxu0
      %v5117 = vpop.f32.mrf.mxu0
      %v5118 = vadd.f32 %v4803, %v5117
      %v5119 = vpop.f32.mrf.mxu0
      %5120 = vmatprep.mubr.bf16.mxu0 0
      %5121 = vmatmul.mubr.bf16.gmra.mxu0 %v4867
      %v5122 = vpop.f32.mrf.mxu0
      %v5123 = vadd.f32 %v4803, %v5122
      %v5124 = vpop.f32.mrf.mxu0
      %v5125 = vpop.f32.mrf.mxu0
      %v5126 = vadd.f32 %v4803, %v5125
      %v5127 = vpop.f32.mrf.mxu0
      %5128 = vmatprep.mubr.bf16.mxu0 0
      %5129 = vmatmul.mubr.bf16.gmra.mxu0 %v4869
      %v5130 = vpop.f32.mrf.mxu0
      %v5131 = vadd.f32 %v4803, %v5130
      %v5132 = vpop.f32.mrf.mxu0
      %v5133 = vpop.f32.mrf.mxu0
      %v5134 = vadd.f32 %v4803, %v5133
      %v5135 = vpop.f32.mrf.mxu0
      %5136 = vmatprep.mubr.bf16.mxu0 0
      %5137 = vmatmul.mubr.bf16.gmra.mxu0 %v4871
      %v5138 = vpop.f32.mrf.mxu0
      %v5139 = vadd.f32 %v4803, %v5138
      %v5140 = vpop.f32.mrf.mxu0
      %v5141 = vpop.f32.mrf.mxu0
      %v5142 = vadd.f32 %v4803, %v5141
      %v5143 = vpop.f32.mrf.mxu0
      %5144 = vmatprep.mubr.bf16.mxu0 0
      %5145 = vmatmul.mubr.bf16.gmra.mxu0 %v4873
      %v5146 = vpop.f32.mrf.mxu0
      %v5147 = vadd.f32 %v4803, %v5146
      %v5148 = vpop.f32.mrf.mxu0
      %v5149 = vpop.f32.mrf.mxu0
      %v5150 = vadd.f32 %v4803, %v5149
      %v5151 = vpop.f32.mrf.mxu0
      %5152 = vmatprep.mubr.bf16.mxu0 0
      %5153 = vmatmul.mubr.bf16.gmra.mxu0 %v4875
      %v5154 = vpop.f32.mrf.mxu0
      %v5155 = vadd.f32 %v4803, %v5154
      %v5156 = vpop.f32.mrf.mxu0
      %v5157 = vpop.f32.mrf.mxu0
      %v5158 = vadd.f32 %v4803, %v5157
      %v5159 = vpop.f32.mrf.mxu0
      %5160 = vmatprep.mubr.bf16.mxu0 0
      %5161 = vmatmul.mubr.bf16.gmra.mxu0 %v4877
      %v5162 = vpop.f32.mrf.mxu0
      %v5163 = vadd.f32 %v4803, %v5162
      %v5164 = vpop.f32.mrf.mxu0
      %v5165 = vpop.f32.mrf.mxu0
      %v5166 = vadd.f32 %v4803, %v5165
      %v5167 = vpop.f32.mrf.mxu0
      %5168 = vmatprep.mubr.bf16.mxu0 0
      %5169 = vmatmul.mubr.bf16.gmra.mxu0 %v4879
      %v5170 = vpop.f32.mrf.mxu0
      %v5171 = vadd.f32 %v4803, %v5170
      %v5172 = vpop.f32.mrf.mxu0
      %v5173 = vpop.f32.mrf.mxu0
      %v5174 = vadd.f32 %v4803, %v5173
      %v5175 = vpop.f32.mrf.mxu0
      %5176 = vdwg.mxu0
      %v5177 = vmax.f32 %v4923, 0.0
      %v5178 = vmax.f32 %v4926, 0.0
      %v5179 = vmax.f32 %v4931, 0.0
      %v5180 = vmax.f32 %v4934, 0.0
      %v5181 = vmax.f32 %v4939, 0.0
      %v5182 = vmax.f32 %v4942, 0.0
      %v5183 = vmax.f32 %v4947, 0.0
      %v5184 = vmax.f32 %v4950, 0.0
      %v5185 = vmax.f32 %v4955, 0.0
      %v5186 = vmax.f32 %v4958, 0.0
      %v5187 = vmax.f32 %v4963, 0.0
      %v5188 = vmax.f32 %v4966, 0.0
      %v5189 = vmax.f32 %v4971, 0.0
      %v5190 = vmax.f32 %v4974, 0.0
      %v5191 = vmax.f32 %v4979, 0.0
      %v5192 = vmax.f32 %v4982, 0.0
      %v5193 = vmax.f32 %v4987, 0.0
      %v5194 = vmax.f32 %v4990, 0.0
      %v5195 = vmax.f32 %v4995, 0.0
      %v5196 = vmax.f32 %v4998, 0.0
      %v5197 = vmax.f32 %v5003, 0.0
      %v5198 = vmax.f32 %v5006, 0.0
      %v5199 = vmax.f32 %v5011, 0.0
      %v5200 = vmax.f32 %v5014, 0.0
      %v5201 = vmax.f32 %v5019, 0.0
      %v5202 = vmax.f32 %v5022, 0.0
      %v5203 = vmax.f32 %v5027, 0.0
      %v5204 = vmax.f32 %v5030, 0.0
      %v5205 = vmax.f32 %v5035, 0.0
      %v5206 = vmax.f32 %v5038, 0.0
      %v5207 = vmax.f32 %v5043, 0.0
      %v5208 = vmax.f32 %v5046, 0.0
      %v5209 = vmax.f32 %v5051, 0.0
      %v5210 = vmax.f32 %v5054, 0.0
      %v5211 = vmax.f32 %v5059, 0.0
      %v5212 = vmax.f32 %v5062, 0.0
      %v5213 = vmax.f32 %v5067, 0.0
      %v5214 = vmax.f32 %v5070, 0.0
      %v5215 = vmax.f32 %v5075, 0.0
      %v5216 = vmax.f32 %v5078, 0.0
      %v5217 = vmax.f32 %v5083, 0.0
      %v5218 = vmax.f32 %v5086, 0.0
      %v5219 = vmax.f32 %v5091, 0.0
      %v5220 = vmax.f32 %v5094, 0.0
      %v5221 = vmax.f32 %v5099, 0.0
      %v5222 = vmax.f32 %v5102, 0.0
      %v5223 = vmax.f32 %v5107, 0.0
      %v5224 = vmax.f32 %v5110, 0.0
      %v5225 = vmax.f32 %v5115, 0.0
      %v5226 = vmax.f32 %v5118, 0.0
      %v5227 = vmax.f32 %v5123, 0.0
      %v5228 = vmax.f32 %v5126, 0.0
      %v5229 = vmax.f32 %v5131, 0.0
      %v5230 = vmax.f32 %v5134, 0.0
      %v5231 = vmax.f32 %v5139, 0.0
      %v5232 = vmax.f32 %v5142, 0.0
      %v5233 = vmax.f32 %v5147, 0.0
      %v5234 = vmax.f32 %v5150, 0.0
      %v5235 = vmax.f32 %v5155, 0.0
      %v5236 = vmax.f32 %v5158, 0.0
      %v5237 = vmax.f32 %v5163, 0.0
      %v5238 = vmax.f32 %v5166, 0.0
      %v5239 = vmax.f32 %v5171, 0.0
      %v5240 = vmax.f32 %v5174, 0.0
      %v5241 = vpack.c.bf16 %v5178, %v5177
      %v5242 = vpack.c.bf16 %v5180, %v5179
      %v5243 = vpack.c.bf16 %v5182, %v5181
      %v5244 = vpack.c.bf16 %v5184, %v5183
      %v5245 = vpack.c.bf16 %v5186, %v5185
      %v5246 = vpack.c.bf16 %v5188, %v5187
      %v5247 = vpack.c.bf16 %v5190, %v5189
      %v5248 = vpack.c.bf16 %v5192, %v5191
      %v5249 = vpack.c.bf16 %v5194, %v5193
      %v5250 = vpack.c.bf16 %v5196, %v5195
      %v5251 = vpack.c.bf16 %v5198, %v5197
      %v5252 = vpack.c.bf16 %v5200, %v5199
      %v5253 = vpack.c.bf16 %v5202, %v5201
      %v5254 = vpack.c.bf16 %v5204, %v5203
      %v5255 = vpack.c.bf16 %v5206, %v5205
      %v5256 = vpack.c.bf16 %v5208, %v5207
      %v5257 = vpack.c.bf16 %v5210, %v5209
      %v5258 = vpack.c.bf16 %v5212, %v5211
      %v5259 = vpack.c.bf16 %v5214, %v5213
      %v5260 = vpack.c.bf16 %v5216, %v5215
      %v5261 = vpack.c.bf16 %v5218, %v5217
      %v5262 = vpack.c.bf16 %v5220, %v5219
      %v5263 = vpack.c.bf16 %v5222, %v5221
      %v5264 = vpack.c.bf16 %v5224, %v5223
      %v5265 = vpack.c.bf16 %v5226, %v5225
      %v5266 = vpack.c.bf16 %v5228, %v5227
      %v5267 = vpack.c.bf16 %v5230, %v5229
      %v5268 = vpack.c.bf16 %v5232, %v5231
      %v5269 = vpack.c.bf16 %v5234, %v5233
      %v5270 = vpack.c.bf16 %v5236, %v5235
      %v5271 = vpack.c.bf16 %v5238, %v5237
      %v5272 = vpack.c.bf16 %v5240, %v5239
      %v5305 = vunpack.c.l.b16 %v5241
      %v5306 = vunpack.c.h.b16 %v5241
      %v5307 = vunpack.c.l.b16 %v5242
      %v5308 = vunpack.c.h.b16 %v5242
      %v5309 = vunpack.c.l.b16 %v5243
      %v5310 = vunpack.c.h.b16 %v5243
      %v5311 = vunpack.c.l.b16 %v5244
      %v5312 = vunpack.c.h.b16 %v5244
      %v5313 = vunpack.c.l.b16 %v5245
      %v5314 = vunpack.c.h.b16 %v5245
      %v5315 = vunpack.c.l.b16 %v5246
      %v5316 = vunpack.c.h.b16 %v5246
      %v5317 = vunpack.c.l.b16 %v5247
      %v5318 = vunpack.c.h.b16 %v5247
      %v5319 = vunpack.c.l.b16 %v5248
      %v5320 = vunpack.c.h.b16 %v5248
      %v5321 = vunpack.c.l.b16 %v5249
      %v5322 = vunpack.c.h.b16 %v5249
      %v5323 = vunpack.c.l.b16 %v5250
      %v5324 = vunpack.c.h.b16 %v5250
      %v5325 = vunpack.c.l.b16 %v5251
      %v5326 = vunpack.c.h.b16 %v5251
      %v5327 = vunpack.c.l.b16 %v5252
      %v5328 = vunpack.c.h.b16 %v5252
      %v5329 = vunpack.c.l.b16 %v5253
      %v5330 = vunpack.c.h.b16 %v5253
      %v5331 = vunpack.c.l.b16 %v5254
      %v5332 = vunpack.c.h.b16 %v5254
      %v5333 = vunpack.c.l.b16 %v5255
      %v5334 = vunpack.c.h.b16 %v5255
      %v5335 = vunpack.c.l.b16 %v5256
      %v5336 = vunpack.c.h.b16 %v5256
      %v5337 = vunpack.c.l.b16 %v5257
      %v5338 = vunpack.c.h.b16 %v5257
      %v5339 = vunpack.c.l.b16 %v5258
      %v5340 = vunpack.c.h.b16 %v5258
      %v5341 = vunpack.c.l.b16 %v5259
      %v5342 = vunpack.c.h.b16 %v5259
      %v5343 = vunpack.c.l.b16 %v5260
      %v5344 = vunpack.c.h.b16 %v5260
      %v5345 = vunpack.c.l.b16 %v5261
      %v5346 = vunpack.c.h.b16 %v5261
      %v5347 = vunpack.c.l.b16 %v5262
      %v5348 = vunpack.c.h.b16 %v5262
      %v5349 = vunpack.c.l.b16 %v5263
      %v5350 = vunpack.c.h.b16 %v5263
      %v5351 = vunpack.c.l.b16 %v5264
      %v5352 = vunpack.c.h.b16 %v5264
      %v5353 = vunpack.c.l.b16 %v5265
      %v5354 = vunpack.c.h.b16 %v5265
      %v5355 = vunpack.c.l.b16 %v5266
      %v5356 = vunpack.c.h.b16 %v5266
      %v5357 = vunpack.c.l.b16 %v5267
      %v5358 = vunpack.c.h.b16 %v5267
      %v5359 = vunpack.c.l.b16 %v5268
      %v5360 = vunpack.c.h.b16 %v5268
      %v5361 = vunpack.c.l.b16 %v5269
      %v5362 = vunpack.c.h.b16 %v5269
      %v5363 = vunpack.c.l.b16 %v5270
      %v5364 = vunpack.c.h.b16 %v5270
      %v5365 = vunpack.c.l.b16 %v5271
      %v5366 = vunpack.c.h.b16 %v5271
      %v5367 = vunpack.c.l.b16 %v5272
      %v5368 = vunpack.c.h.b16 %v5272
      %v5369 = vpack.c.b16 %v5305, %v5305
      %v5370 = vpack.c.b16 %v5306, %v5306
      %v5371 = vpack.c.b16 %v5307, %v5307
      %v5372 = vpack.c.b16 %v5308, %v5308
      %v5373 = vpack.c.b16 %v5309, %v5309
      %v5374 = vpack.c.b16 %v5310, %v5310
      %v5375 = vpack.c.b16 %v5311, %v5311
      %v5376 = vpack.c.b16 %v5312, %v5312
      %v5377 = vpack.c.b16 %v5313, %v5313
      %v5378 = vpack.c.b16 %v5314, %v5314
      %v5379 = vpack.c.b16 %v5315, %v5315
      %v5380 = vpack.c.b16 %v5316, %v5316
      %v5381 = vpack.c.b16 %v5317, %v5317
      %v5382 = vpack.c.b16 %v5318, %v5318
      %v5383 = vpack.c.b16 %v5319, %v5319
      %v5384 = vpack.c.b16 %v5320, %v5320
      %v5385 = vpack.c.b16 %v5321, %v5321
      %v5386 = vpack.c.b16 %v5322, %v5322
      %v5387 = vpack.c.b16 %v5323, %v5323
      %v5388 = vpack.c.b16 %v5324, %v5324
      %v5389 = vpack.c.b16 %v5325, %v5325
      %v5390 = vpack.c.b16 %v5326, %v5326
      %v5391 = vpack.c.b16 %v5327, %v5327
      %v5392 = vpack.c.b16 %v5328, %v5328
      %v5393 = vpack.c.b16 %v5329, %v5329
      %v5394 = vpack.c.b16 %v5330, %v5330
      %v5395 = vpack.c.b16 %v5331, %v5331
      %v5396 = vpack.c.b16 %v5332, %v5332
      %v5397 = vpack.c.b16 %v5333, %v5333
      %v5398 = vpack.c.b16 %v5334, %v5334
      %v5399 = vpack.c.b16 %v5335, %v5335
      %v5400 = vpack.c.b16 %v5336, %v5336
      %v5401 = vpack.c.b16 %v5337, %v5337
      %v5402 = vpack.c.b16 %v5338, %v5338
      %v5403 = vpack.c.b16 %v5339, %v5339
      %v5404 = vpack.c.b16 %v5340, %v5340
      %v5405 = vpack.c.b16 %v5341, %v5341
      %v5406 = vpack.c.b16 %v5342, %v5342
      %v5407 = vpack.c.b16 %v5343, %v5343
      %v5408 = vpack.c.b16 %v5344, %v5344
      %v5409 = vpack.c.b16 %v5345, %v5345
      %v5410 = vpack.c.b16 %v5346, %v5346
      %v5411 = vpack.c.b16 %v5347, %v5347
      %v5412 = vpack.c.b16 %v5348, %v5348
      %v5413 = vpack.c.b16 %v5349, %v5349
      %v5414 = vpack.c.b16 %v5350, %v5350
      %v5415 = vpack.c.b16 %v5351, %v5351
      %v5416 = vpack.c.b16 %v5352, %v5352
      %v5417 = vpack.c.b16 %v5353, %v5353
      %v5418 = vpack.c.b16 %v5354, %v5354
      %v5419 = vpack.c.b16 %v5355, %v5355
      %v5420 = vpack.c.b16 %v5356, %v5356
      %v5421 = vpack.c.b16 %v5357, %v5357
      %v5422 = vpack.c.b16 %v5358, %v5358
      %v5423 = vpack.c.b16 %v5359, %v5359
      %v5424 = vpack.c.b16 %v5360, %v5360
      %v5425 = vpack.c.b16 %v5361, %v5361
      %v5426 = vpack.c.b16 %v5362, %v5362
      %v5427 = vpack.c.b16 %v5363, %v5363
      %v5428 = vpack.c.b16 %v5364, %v5364
      %v5429 = vpack.c.b16 %v5365, %v5365
      %v5430 = vpack.c.b16 %v5366, %v5366
      %v5431 = vpack.c.b16 %v5367, %v5367
      %v5432 = vpack.c.b16 %v5368, %v5368
      %vm5497 = vcmask 60416
      %5498 = vst.msk [vmem:[%s194] sm:$0xf] %vm5497, %v5369
      %5499 = vst.msk [vmem:[%s194 + $0x4] sm:$0xf] %vm5497, %v5370
      %5500 = vst.msk [vmem:[%s194 + $0x8] sm:$0xf] %vm5497, %v5371
      %5501 = vst.msk [vmem:[%s194 + $0xc] sm:$0xf] %vm5497, %v5372
      %5502 = vst.msk [vmem:[%s194 + $0x10] sm:$0xf] %vm5497, %v5373
      %5503 = vst.msk [vmem:[%s194 + $0x14] sm:$0xf] %vm5497, %v5374
      %5504 = vst.msk [vmem:[%s194 + $0x18] sm:$0xf] %vm5497, %v5375
      %5505 = vst.msk [vmem:[%s194 + $0x1c] sm:$0xf] %vm5497, %v5376
      %5506 = vst.msk [vmem:[%s194 + $0x20] sm:$0xf] %vm5497, %v5377
      %5507 = vst.msk [vmem:[%s194 + $0x24] sm:$0xf] %vm5497, %v5378
      %5508 = vst.msk [vmem:[%s194 + $0x28] sm:$0xf] %vm5497, %v5379
      %5509 = vst.msk [vmem:[%s194 + $0x2c] sm:$0xf] %vm5497, %v5380
      %5510 = vst.msk [vmem:[%s194 + $0x30] sm:$0xf] %vm5497, %v5381
      %5511 = vst.msk [vmem:[%s194 + $0x34] sm:$0xf] %vm5497, %v5382
      %5512 = vst.msk [vmem:[%s194 + $0x38] sm:$0xf] %vm5497, %v5383
      %5513 = vst.msk [vmem:[%s194 + $0x3c] sm:$0xf] %vm5497, %v5384
      %5514 = vst.msk [vmem:[%s194 + $0x40] sm:$0xf] %vm5497, %v5385
      %5515 = vst.msk [vmem:[%s194 + $0x44] sm:$0xf] %vm5497, %v5386
      %5516 = vst.msk [vmem:[%s194 + $0x48] sm:$0xf] %vm5497, %v5387
      %5517 = vst.msk [vmem:[%s194 + $0x4c] sm:$0xf] %vm5497, %v5388
      %5518 = vst.msk [vmem:[%s194 + $0x50] sm:$0xf] %vm5497, %v5389
      %5519 = vst.msk [vmem:[%s194 + $0x54] sm:$0xf] %vm5497, %v5390
      %5520 = vst.msk [vmem:[%s194 + $0x58] sm:$0xf] %vm5497, %v5391
      %5521 = vst.msk [vmem:[%s194 + $0x5c] sm:$0xf] %vm5497, %v5392
      %5522 = vst.msk [vmem:[%s194 + $0x60] sm:$0xf] %vm5497, %v5393
      %5523 = vst.msk [vmem:[%s194 + $0x64] sm:$0xf] %vm5497, %v5394
      %5524 = vst.msk [vmem:[%s194 + $0x68] sm:$0xf] %vm5497, %v5395
      %5525 = vst.msk [vmem:[%s194 + $0x6c] sm:$0xf] %vm5497, %v5396
      %5526 = vst.msk [vmem:[%s194 + $0x70] sm:$0xf] %vm5497, %v5397
      %5527 = vst.msk [vmem:[%s194 + $0x74] sm:$0xf] %vm5497, %v5398
      %5528 = vst.msk [vmem:[%s194 + $0x78] sm:$0xf] %vm5497, %v5399
      %5529 = vst.msk [vmem:[%s194 + $0x7c] sm:$0xf] %vm5497, %v5400
      %5530 = vst.msk [vmem:[%s194 + $0x80] sm:$0xf] %vm5497, %v5401
      %5531 = vst.msk [vmem:[%s194 + $0x84] sm:$0xf] %vm5497, %v5402
      %5532 = vst.msk [vmem:[%s194 + $0x88] sm:$0xf] %vm5497, %v5403
      %5533 = vst.msk [vmem:[%s194 + $0x8c] sm:$0xf] %vm5497, %v5404
      %5534 = vst.msk [vmem:[%s194 + $0x90] sm:$0xf] %vm5497, %v5405
      %5535 = vst.msk [vmem:[%s194 + $0x94] sm:$0xf] %vm5497, %v5406
      %5536 = vst.msk [vmem:[%s194 + $0x98] sm:$0xf] %vm5497, %v5407
      %5537 = vst.msk [vmem:[%s194 + $0x9c] sm:$0xf] %vm5497, %v5408
      %5538 = vst.msk [vmem:[%s194 + $0xa0] sm:$0xf] %vm5497, %v5409
      %5539 = vst.msk [vmem:[%s194 + $0xa4] sm:$0xf] %vm5497, %v5410
      %5540 = vst.msk [vmem:[%s194 + $0xa8] sm:$0xf] %vm5497, %v5411
      %5541 = vst.msk [vmem:[%s194 + $0xac] sm:$0xf] %vm5497, %v5412
      %5542 = vst.msk [vmem:[%s194 + $0xb0] sm:$0xf] %vm5497, %v5413
      %5543 = vst.msk [vmem:[%s194 + $0xb4] sm:$0xf] %vm5497, %v5414
      %5544 = vst.msk [vmem:[%s194 + $0xb8] sm:$0xf] %vm5497, %v5415
      %5545 = vst.msk [vmem:[%s194 + $0xbc] sm:$0xf] %vm5497, %v5416
      %5546 = vst.msk [vmem:[%s194 + $0xc0] sm:$0xf] %vm5497, %v5417
      %5547 = vst.msk [vmem:[%s194 + $0xc4] sm:$0xf] %vm5497, %v5418
      %5548 = vst.msk [vmem:[%s194 + $0xc8] sm:$0xf] %vm5497, %v5419
      %5549 = vst.msk [vmem:[%s194 + $0xcc] sm:$0xf] %vm5497, %v5420
      %5550 = vst.msk [vmem:[%s194 + $0xd0] sm:$0xf] %vm5497, %v5421
      %5551 = vst.msk [vmem:[%s194 + $0xd4] sm:$0xf] %vm5497, %v5422
      %5552 = vst.msk [vmem:[%s194 + $0xd8] sm:$0xf] %vm5497, %v5423
      %5553 = vst.msk [vmem:[%s194 + $0xdc] sm:$0xf] %vm5497, %v5424
      %5554 = vst.msk [vmem:[%s194 + $0xe0] sm:$0xf] %vm5497, %v5425
      %5555 = vst.msk [vmem:[%s194 + $0xe4] sm:$0xf] %vm5497, %v5426
      %5556 = vst.msk [vmem:[%s194 + $0xe8] sm:$0xf] %vm5497, %v5427
      %5557 = vst.msk [vmem:[%s194 + $0xec] sm:$0xf] %vm5497, %v5428
      %5558 = vst.msk [vmem:[%s194 + $0xf0] sm:$0xf] %vm5497, %v5429
      %5559 = vst.msk [vmem:[%s194 + $0xf4] sm:$0xf] %vm5497, %v5430
      %5560 = vst.msk [vmem:[%s194 + $0xf8] sm:$0xf] %vm5497, %v5431
      %5561 = vst.msk [vmem:[%s194 + $0xfc] sm:$0xf] %vm5497, %v5432
      %s5562 = smul.u32 16, %s19
      %p5563 = scmp.lt.s32.totalorder %s18, 1
      %s5564 = scalar_select %p5563, %s18, 1
      %p5565 = scmp.lt.s32.totalorder %s5562, 31
      %s5566 = scalar_select %p5565, %s5562, 31
      %s5567 = smul.addr %s5566, 4
      %s5568 = smul.addr %s5564, 128
      %s5569 = sadd.s32 %s5567, %s5568
      %s5570 = smul.addr %s5569, 4
      %s5571 = scalar_lea.vmem %s3, %s5570
      // Predicated region
      $region41: #{tpu_custom_call.1} parent=31 // pred_check
        %p5572 = pneg %p114
      $region42: #{tpu_custom_call.1} parent=31 // pred_check_branch
        %5574 = sbr.rel (%p5572) target = $region44
      $region43: #{tpu_custom_call.1} parent=31 // pred_region
        %s5575 = smul.u32 16, %s19
      $region44: #{tpu_custom_call.1} parent=31 // pred_fallthru
        _
    $region32: #{tpu_custom_call.1} parent=5 // pred_fallthru
      _
    %p5576 = scmp.le.s32.totalorder 2, %s9
    // Predicated region
    $region45: #{tpu_custom_call.1} parent=5 // pred_check
      %p5577 = pneg %p5576
    $region46: #{tpu_custom_call.1} parent=5 // pred_check_branch
      %5579 = sbr.rel (%p5577) target = $region48
    $region47: #{tpu_custom_call.1} parent=5 // pred_region
      %s5580 = ssub.s32 %s9, 2
      // Predicated region
      $region49: #{tpu_custom_call.1} parent=47 // pred_check
        %p5581 = pneg %p120
      $region50: #{tpu_custom_call.1} parent=47 // pred_check_branch
        %5583 = sbr.rel (%p5581) target = $region52
      $region51: #{tpu_custom_call.1} parent=47 // pred_region
        %s5584 = smul.u32 16, %s21
        %p5585 = scmp.lt.s32.totalorder %s20, 1
        %s5586 = scalar_select %p5585, %s20, 1
        %p5587 = scmp.lt.s32.totalorder %s5584, 31
        %s5588 = scalar_select %p5587, %s5584, 31
        %s5589 = smul.addr %s5588, 4
        %s5590 = smul.addr %s5586, 128
        %s5591 = sadd.s32 %s5589, %s5590
        %s5592 = smul.addr %s5591, 4
        %s5593 = scalar_lea.vmem %s3, %s5592
      $region52: #{tpu_custom_call.1} parent=47 // pred_fallthru
        _
    $region48: #{tpu_custom_call.1} parent=5 // pred_fallthru
      _
  $region6: #{tpu_custom_call.1} parent=0 // loop_footer
    %s13 = sadd.s32 1, %s9
  $region7: #{tpu_custom_call.1} parent=0 // loop_footer_branch
    %8 = sbr.rel target = $region3
  $region8: #{tpu_custom_call.1} parent=0 // loop_exit
    _

</llo_original>
